<compile_context>
chip_gen: v7x
topology: tpu7x:2x2x1
jax: 0.10.0
libtpu: 0.0.40
codegen_flags: <defaults>
</compile_context>

<pallas_src>
import functools

import jax
import jax.numpy as jnp
from jax.experimental import pallas as pl
from jax.experimental.pallas import tpu as pltpu


# ---------------------------------------------------------------------------
# Kernel bodies
# ---------------------------------------------------------------------------
def _bn_lrelu_conv3x3(xp, w, b, s, t, *, negative_slope):
    """Fused folded-BN affine -> LeakyReLU -> 3x3 'same' conv (f32).

    xp: (TB, H+2, W+2, Cin) spatially zero-padded input tile.
    w : (9, Cin, Cout) conv taps (index = dy*3 + dx).
    b : (Cout,) conv bias.   s, t: (Cin,) folded BatchNorm scale / shift.
    returns (TB, H, W, Cout) float32.
    """
    tb, hp, wp, cin = xp.shape
    cout = w.shape[-1]
    h, wd = hp - 2, wp - 2

    # Folded BatchNorm affine + LeakyReLU (one fma + one select per element).
    a = xp * s.reshape(1, 1, 1, cin) + t.reshape(1, 1, 1, cin)
    a = jnp.where(a >= 0, a, negative_slope * a)

    # Conv2d's zero padding applies to the *activation*: zero the halo ring
    # (the wrapper padded the raw input with zeros, and lrelu(0*s+t) != 0).
    row = jax.lax.broadcasted_iota(jnp.int32, (tb, hp, wp, cin), 1)
    col = jax.lax.broadcasted_iota(jnp.int32, (tb, hp, wp, cin), 2)
    interior = (row >= 1) & (row <= h) & (col >= 1) & (col <= wd)
    a = jnp.where(interior, a, 0.0)

    # 3x3 conv = 9 shifted (pixels, Cin) @ (Cin, Cout) matmuls on the MXU.
    acc = jnp.zeros((tb * h * wd, cout), jnp.float32)
    for dy in range(3):
        for dx in range(3):
            win = a[:, dy:dy + h, dx:dx + wd, :].reshape(tb * h * wd, cin)
            acc = acc + jnp.dot(win, w[dy * 3 + dx],
                                preferred_element_type=jnp.float32)
    return acc.reshape(tb, h, wd, cout) + b.reshape(1, 1, 1, cout)


def _stage_kernel(xp_ref, w_ref, b_ref, s_ref, t_ref, o_ref, *, negative_slope):
    out = _bn_lrelu_conv3x3(xp_ref[...].astype(jnp.float32),
                            w_ref[...].astype(jnp.float32),
                            b_ref[...].astype(jnp.float32)[0],
                            s_ref[...].astype(jnp.float32)[0],
                            t_ref[...].astype(jnp.float32)[0],
                            negative_slope=negative_slope)
    o_ref[...] = out.astype(o_ref.dtype)


def _stage_res_kernel(xp_ref, res_ref, w_ref, b_ref, s_ref, t_ref, o_ref, *,
                      negative_slope):
    out = _bn_lrelu_conv3x3(xp_ref[...].astype(jnp.float32),
                            w_ref[...].astype(jnp.float32),
                            b_ref[...].astype(jnp.float32)[0],
                            s_ref[...].astype(jnp.float32)[0],
                            t_ref[...].astype(jnp.float32)[0],
                            negative_slope=negative_slope)
    out = out + res_ref[...].astype(jnp.float32)   # identity shortcut
    o_ref[...] = out.astype(o_ref.dtype)


# ---------------------------------------------------------------------------
# pallas_call wrappers
# ---------------------------------------------------------------------------
def _pick_batch_block(n, hp, wp, c, budget_bytes=12 * 1024 * 1024):
    """Largest divisor of n whose per-step VMEM footprint stays well under the
    limit (~10 f32 tile-sized live values: double-buffered I/O + activations +
    accumulator). Keeps tiles safe on v7x's 64 MiB VMEM while amortizing the
    per-grid-step overhead for small images."""
    per_sample = hp * wp * max(c, 1) * 4 * 10
    cap = max(1, budget_bytes // per_sample)
    for d in range(min(n, cap), 0, -1):
        if n % d == 0:
            return d
    return 1


def _norm_act_conv(xp, res, w9, b, s, t, *, out_dtype, negative_slope, tb,
                   vmem_limit_bytes):
    """One ResBlock stage: folded-BN -> LeakyReLU -> conv3x3 (+ residual)."""
    n, hp, wp, cin = xp.shape
    cout = w9.shape[-1]
    h, wd = hp - 2, wp - 2

    in_specs = [pl.BlockSpec((tb, hp, wp, cin), lambda i: (i, 0, 0, 0))]
    args = [xp]
    if res is not None:
        in_specs.append(pl.BlockSpec((tb, h, wd, cout), lambda i: (i, 0, 0, 0)))
        args.append(res)
        kernel = functools.partial(_stage_res_kernel,
                                   negative_slope=negative_slope)
    else:
        kernel = functools.partial(_stage_kernel,
                                   negative_slope=negative_slope)
    in_specs += [
        pl.BlockSpec((9, cin, cout), lambda i: (0, 0, 0)),   # conv taps (resident)
        pl.BlockSpec((1, cout), lambda i: (0, 0)),           # conv bias
        pl.BlockSpec((1, cin), lambda i: (0, 0)),            # folded BN scale
        pl.BlockSpec((1, cin), lambda i: (0, 0)),            # folded BN shift
    ]
    args += [w9, b.reshape(1, cout), s.reshape(1, cin), t.reshape(1, cin)]

    return pl.pallas_call(
        kernel,
        out_shape=jax.ShapeDtypeStruct((n, h, wd, cout), out_dtype),
        grid=(n // tb,),
        in_specs=in_specs,
        out_specs=pl.BlockSpec((tb, h, wd, cout), lambda i: (i, 0, 0, 0)),
        compiler_params=pltpu.CompilerParams(
            dimension_semantics=("parallel",),        # shard batch across TCs (v7x)
            vmem_limit_bytes=vmem_limit_bytes),
    )(*args)


def res_block(x, w1, b1, gamma1, beta1, w2, b2, gamma2, beta2, *,
              eps=1e-5, negative_slope=0.01,
              vmem_limit_bytes=48 * 1024 * 1024):
    """ResBlock forward (default config).  x: (N, C, H, W) NCHW; conv weights in
    PyTorch OIHW layout; gamma/beta are BatchNorm2d affine parameters."""
    n, cin, h, w = x.shape
    chid = w1.shape[0]
    cout = w2.shape[0]
    assert cin == cout, "identity shortcut requires input_nc == output_nc"
    # TODO(synk): learnable_shortcut (1x1 bypass conv), CoordConv coordinate
    # channels and spectral_norm are disabled in the default ResBlock config
    # and are not implemented here.

    x_nhwc = jnp.transpose(x, (0, 2, 3, 1))                        # (N, H, W, C)
    w1_taps = jnp.transpose(w1, (2, 3, 1, 0)).reshape(9, cin, chid)
    w2_taps = jnp.transpose(w2, (2, 3, 1, 0)).reshape(9, chid, cout)

    def fold_bn(feat_f32, gamma, beta):
        # BatchNorm2d (train-mode) batch statistics per channel over (N, H, W),
        # folded into scale/shift so the kernel does one fma per element.
        mean = jnp.mean(feat_f32, axis=(0, 1, 2))
        var = jnp.mean(jnp.square(feat_f32 - mean), axis=(0, 1, 2))
        s = gamma.astype(jnp.float32) * jax.lax.rsqrt(var + eps)
        t = beta.astype(jnp.float32) - mean * s
        return s, t

    pad = ((0, 0), (1, 1), (1, 1), (0, 0))
    tb = _pick_batch_block(n, h + 2, w + 2, max(cin, chid, cout))

    # Stage 1: c1 = conv1(lrelu(bn1(x)))
    s1, t1 = fold_bn(x_nhwc.astype(jnp.float32), gamma1, beta1)
    c1 = _norm_act_conv(jnp.pad(x_nhwc, pad), None, w1_taps, b1, s1, t1,
                        out_dtype=jnp.float32, negative_slope=negative_slope,
                        tb=tb, vmem_limit_bytes=vmem_limit_bytes)

    # Stage 2: out = conv2(lrelu(bn2(c1))) + x
    s2, t2 = fold_bn(c1, gamma2, beta2)
    out_nhwc = _norm_act_conv(jnp.pad(c1, pad), x_nhwc, w2_taps, b2, s2, t2,
                              out_dtype=x.dtype, negative_slope=negative_slope,
                              tb=tb, vmem_limit_bytes=vmem_limit_bytes)
    return jnp.transpose(out_nhwc, (0, 3, 1, 2))


# ---------------------------------------------------------------------------
# Pure-JAX reference (mirrors the PyTorch module's default forward)
# ---------------------------------------------------------------------------
def res_block_ref(x, w1, b1, gamma1, beta1, w2, b2, gamma2, beta2, *,
                  eps=1e-5, negative_slope=0.01):
    def bn(h, g, b):
        m = jnp.mean(h, axis=(0, 2, 3), keepdims=True)
        v = jnp.mean(jnp.square(h - m), axis=(0, 2, 3), keepdims=True)
        return ((h - m) * jax.lax.rsqrt(v + eps) * g.reshape(1, -1, 1, 1)
                + b.reshape(1, -1, 1, 1))

    def lrelu(h):
        return jnp.where(h >= 0, h, negative_slope * h)

    def conv(h, wgt, b):
        y = jax.lax.conv_general_dilated(
            h, wgt, window_strides=(1, 1), padding=((1, 1), (1, 1)),
            dimension_numbers=("NCHW", "OIHW", "NCHW"),
            precision=jax.lax.Precision.HIGHEST)
        return y + b.reshape(1, -1, 1, 1)

    h1 = conv(lrelu(bn(x.astype(jnp.float32), gamma1, beta1)), w1, b1)
    h2 = conv(lrelu(bn(h1, gamma2, beta2)), w2, b2)
    return (h2 + x).astype(x.dtype)


if __name__ == "__main__":
    key = jax.random.PRNGKey(0)
    keys = jax.random.split(key, 9)
    N, C, H, W = 2, 4, 16, 16          # input_nc = hidden_nc = output_nc = 4
    x = jax.random.normal(keys[0], (N, C, H, W), dtype=jnp.float32)
    w1 = 0.1 * jax.random.normal(keys[1], (C, C, 3, 3), dtype=jnp.float32)
    b1 = 0.1 * jax.random.normal(keys[2], (C,), dtype=jnp.float32)
    w2 = 0.1 * jax.random.normal(keys[3], (C, C, 3, 3), dtype=jnp.float32)
    b2 = 0.1 * jax.random.normal(keys[4], (C,), dtype=jnp.float32)
    gamma1 = 1.0 + 0.1 * jax.random.normal(keys[5], (C,), dtype=jnp.float32)
    beta1 = 0.1 * jax.random.normal(keys[6], (C,), dtype=jnp.float32)
    gamma2 = 1.0 + 0.1 * jax.random.normal(keys[7], (C,), dtype=jnp.float32)
    beta2 = 0.1 * jax.random.normal(keys[8], (C,), dtype=jnp.float32)

    out = res_block(x, w1, b1, gamma1, beta1, w2, b2, gamma2, beta2)
    out = jax.block_until_ready(out)

    ref = res_block_ref(x, w1, b1, gamma1, beta1, w2, b2, gamma2, beta2)
    assert out.shape == x.shape and out.dtype == x.dtype
    # Tolerance sized for MXU multi-pass f32 matmuls vs XLA's HIGHEST-precision
    # conv; structural errors would be orders of magnitude larger.
    assert jnp.allclose(out, ref, atol=2e-3, rtol=2e-3), float(
        jnp.max(jnp.abs(out - ref)))
    print("KERNEL_OK")
</pallas_src>

<mosaic_0001>
module attributes {stable_mosaic.version = 11 : i64} {
  func.func @_stage_kernel(%arg0: i32, %arg1: memref<2x18x18x4xf32, #tpu.memory_space<vmem>>, %arg2: memref<9x4x4xf32, #tpu.memory_space<vmem>>, %arg3: memref<1x4xf32, #tpu.memory_space<vmem>>, %arg4: memref<1x4xf32, #tpu.memory_space<vmem>>, %arg5: memref<1x4xf32, #tpu.memory_space<vmem>>, %arg6: memref<2x16x16x4xf32, #tpu.memory_space<vmem>>) attributes {dimension_semantics = [#tpu.dimension_semantics<parallel>], iteration_bounds = array<i64: 1>, scalar_prefetch = 0 : i64, scratch_operands = 0 : i64, tpu.core_type = #tpu.core_type<tc>, window_params = [{transform_indices = @transform_0, window_bounds = array<i64: 2, 18, 18, 4>}, {pipeline_mode = #tpu.pipeline_mode<synchronous>, transform_indices = @transform_1, window_bounds = array<i64: 9, 4, 4>}, {pipeline_mode = #tpu.pipeline_mode<synchronous>, transform_indices = @transform_2, window_bounds = array<i64: 1, 4>}, {pipeline_mode = #tpu.pipeline_mode<synchronous>, transform_indices = @transform_3, window_bounds = array<i64: 1, 4>}, {pipeline_mode = #tpu.pipeline_mode<synchronous>, transform_indices = @transform_4, window_bounds = array<i64: 1, 4>}, {transform_indices = @transform_5, window_bounds = array<i64: 2, 16, 16, 4>}]} {
    %c0 = arith.constant 0 : index
    %c0_0 = arith.constant 0 : index
    %c0_1 = arith.constant 0 : index
    %c0_2 = arith.constant 0 : index
    %0 = vector.load %arg1[%c0, %c0_0, %c0_1, %c0_2] : memref<2x18x18x4xf32, #tpu.memory_space<vmem>>, vector<2x18x18x4xf32>
    %c0_3 = arith.constant 0 : index
    %c0_4 = arith.constant 0 : index
    %c0_5 = arith.constant 0 : index
    %1 = vector.load %arg2[%c0_3, %c0_4, %c0_5] : memref<9x4x4xf32, #tpu.memory_space<vmem>>, vector<9x4x4xf32>
    %c0_6 = arith.constant 0 : index
    %c0_7 = arith.constant 0 : index
    %2 = vector.load %arg3[%c0_6, %c0_7] : memref<1x4xf32, #tpu.memory_space<vmem>>, vector<1x4xf32>
    %3 = vector.shape_cast %2 : vector<1x4xf32> to vector<4xf32>
    %c0_8 = arith.constant 0 : index
    %c0_9 = arith.constant 0 : index
    %4 = vector.load %arg4[%c0_8, %c0_9] : memref<1x4xf32, #tpu.memory_space<vmem>>, vector<1x4xf32>
    %5 = vector.shape_cast %4 : vector<1x4xf32> to vector<4xf32>
    %c0_10 = arith.constant 0 : index
    %c0_11 = arith.constant 0 : index
    %6 = vector.load %arg5[%c0_10, %c0_11] : memref<1x4xf32, #tpu.memory_space<vmem>>, vector<1x4xf32>
    %7 = vector.shape_cast %6 : vector<1x4xf32> to vector<4xf32>
    %8 = vector.shape_cast %5 : vector<4xf32> to vector<1x1x1x4xf32>
    %9 = vector.broadcast %8 : vector<1x1x1x4xf32> to vector<2x18x18x4xf32>
    %10 = arith.mulf %0, %9 : vector<2x18x18x4xf32>
    %11 = vector.shape_cast %7 : vector<4xf32> to vector<1x1x1x4xf32>
    %12 = vector.broadcast %11 : vector<1x1x1x4xf32> to vector<2x18x18x4xf32>
    %13 = arith.addf %10, %12 : vector<2x18x18x4xf32>
    %cst = arith.constant 0.000000e+00 : f32
    %14 = vector.broadcast %cst : f32 to vector<2x18x18x4xf32>
    %15 = arith.cmpf oge, %13, %14 : vector<2x18x18x4xf32>
    %cst_12 = arith.constant 0.00999999977 : f32
    %16 = vector.broadcast %cst_12 : f32 to vector<2x18x18x4xf32>
    %17 = arith.mulf %16, %13 : vector<2x18x18x4xf32>
    %18 = arith.select %15, %13, %17 : vector<2x18x18x4xi1>, vector<2x18x18x4xf32>
    %19 = tpu.iota {dimensions = array<i32: 1>} : vector<2x18x18x4xi32>
    %20 = tpu.iota {dimensions = array<i32: 2>} : vector<2x18x18x4xi32>
    %c1_i32 = arith.constant 1 : i32
    %21 = vector.broadcast %c1_i32 : i32 to vector<2x18x18x4xi32>
    %22 = arith.cmpi sge, %19, %21 : vector<2x18x18x4xi32>
    %c16_i32 = arith.constant 16 : i32
    %23 = vector.broadcast %c16_i32 : i32 to vector<2x18x18x4xi32>
    %24 = arith.cmpi sle, %19, %23 : vector<2x18x18x4xi32>
    %25 = arith.andi %22, %24 : vector<2x18x18x4xi1>
    %c1_i32_13 = arith.constant 1 : i32
    %26 = vector.broadcast %c1_i32_13 : i32 to vector<2x18x18x4xi32>
    %27 = arith.cmpi sge, %20, %26 : vector<2x18x18x4xi32>
    %28 = arith.andi %25, %27 : vector<2x18x18x4xi1>
    %c16_i32_14 = arith.constant 16 : i32
    %29 = vector.broadcast %c16_i32_14 : i32 to vector<2x18x18x4xi32>
    %30 = arith.cmpi sle, %20, %29 : vector<2x18x18x4xi32>
    %31 = arith.andi %28, %30 : vector<2x18x18x4xi1>
    %cst_15 = arith.constant 0.000000e+00 : f32
    %32 = vector.broadcast %cst_15 : f32 to vector<2x18x18x4xf32>
    %33 = arith.select %31, %18, %32 : vector<2x18x18x4xi1>, vector<2x18x18x4xf32>
    %cst_16 = arith.constant 0.000000e+00 : f32
    %34 = vector.broadcast %cst_16 : f32 to vector<512x4xf32>
    %35 = vector.extract_strided_slice %33 {offsets = [0, 0, 0, 0], sizes = [2, 16, 16, 4], strides = [1, 1, 1, 1]} : vector<2x18x18x4xf32> to vector<2x16x16x4xf32>
    %36 = vector.shape_cast %35 : vector<2x16x16x4xf32> to vector<512x4xf32>
    %37 = vector.extract_strided_slice %1 {offsets = [0, 0, 0], sizes = [1, 4, 4], strides = [1, 1, 1]} : vector<9x4x4xf32> to vector<1x4x4xf32>
    %38 = vector.shape_cast %37 : vector<1x4x4xf32> to vector<4x4xf32>
    %cst_17 = arith.constant dense<0.000000e+00> : vector<512x4xf32>
    %39 = tpu.matmul %36, %38, %cst_17 {dimension_numbers = #tpu.dot_dimension_numbers<[1], [0], [0], [1], [0, 0, 1, 1], [], []>} : vector<512x4xf32>, vector<4x4xf32>, vector<512x4xf32> -> vector<512x4xf32>
    %40 = arith.addf %34, %39 : vector<512x4xf32>
    %41 = vector.extract_strided_slice %33 {offsets = [0, 0, 1, 0], sizes = [2, 16, 16, 4], strides = [1, 1, 1, 1]} : vector<2x18x18x4xf32> to vector<2x16x16x4xf32>
    %42 = vector.shape_cast %41 : vector<2x16x16x4xf32> to vector<512x4xf32>
    %43 = vector.extract_strided_slice %1 {offsets = [1, 0, 0], sizes = [1, 4, 4], strides = [1, 1, 1]} : vector<9x4x4xf32> to vector<1x4x4xf32>
    %44 = vector.shape_cast %43 : vector<1x4x4xf32> to vector<4x4xf32>
    %cst_18 = arith.constant dense<0.000000e+00> : vector<512x4xf32>
    %45 = tpu.matmul %42, %44, %cst_18 {dimension_numbers = #tpu.dot_dimension_numbers<[1], [0], [0], [1], [0, 0, 1, 1], [], []>} : vector<512x4xf32>, vector<4x4xf32>, vector<512x4xf32> -> vector<512x4xf32>
    %46 = arith.addf %40, %45 : vector<512x4xf32>
    %47 = vector.extract_strided_slice %33 {offsets = [0, 0, 2, 0], sizes = [2, 16, 16, 4], strides = [1, 1, 1, 1]} : vector<2x18x18x4xf32> to vector<2x16x16x4xf32>
    %48 = vector.shape_cast %47 : vector<2x16x16x4xf32> to vector<512x4xf32>
    %49 = vector.extract_strided_slice %1 {offsets = [2, 0, 0], sizes = [1, 4, 4], strides = [1, 1, 1]} : vector<9x4x4xf32> to vector<1x4x4xf32>
    %50 = vector.shape_cast %49 : vector<1x4x4xf32> to vector<4x4xf32>
    %cst_19 = arith.constant dense<0.000000e+00> : vector<512x4xf32>
    %51 = tpu.matmul %48, %50, %cst_19 {dimension_numbers = #tpu.dot_dimension_numbers<[1], [0], [0], [1], [0, 0, 1, 1], [], []>} : vector<512x4xf32>, vector<4x4xf32>, vector<512x4xf32> -> vector<512x4xf32>
    %52 = arith.addf %46, %51 : vector<512x4xf32>
    %53 = vector.extract_strided_slice %33 {offsets = [0, 1, 0, 0], sizes = [2, 16, 16, 4], strides = [1, 1, 1, 1]} : vector<2x18x18x4xf32> to vector<2x16x16x4xf32>
    %54 = vector.shape_cast %53 : vector<2x16x16x4xf32> to vector<512x4xf32>
    %55 = vector.extract_strided_slice %1 {offsets = [3, 0, 0], sizes = [1, 4, 4], strides = [1, 1, 1]} : vector<9x4x4xf32> to vector<1x4x4xf32>
    %56 = vector.shape_cast %55 : vector<1x4x4xf32> to vector<4x4xf32>
    %cst_20 = arith.constant dense<0.000000e+00> : vector<512x4xf32>
    %57 = tpu.matmul %54, %56, %cst_20 {dimension_numbers = #tpu.dot_dimension_numbers<[1], [0], [0], [1], [0, 0, 1, 1], [], []>} : vector<512x4xf32>, vector<4x4xf32>, vector<512x4xf32> -> vector<512x4xf32>
    %58 = arith.addf %52, %57 : vector<512x4xf32>
    %59 = vector.extract_strided_slice %33 {offsets = [0, 1, 1, 0], sizes = [2, 16, 16, 4], strides = [1, 1, 1, 1]} : vector<2x18x18x4xf32> to vector<2x16x16x4xf32>
    %60 = vector.shape_cast %59 : vector<2x16x16x4xf32> to vector<512x4xf32>
    %61 = vector.extract_strided_slice %1 {offsets = [4, 0, 0], sizes = [1, 4, 4], strides = [1, 1, 1]} : vector<9x4x4xf32> to vector<1x4x4xf32>
    %62 = vector.shape_cast %61 : vector<1x4x4xf32> to vector<4x4xf32>
    %cst_21 = arith.constant dense<0.000000e+00> : vector<512x4xf32>
    %63 = tpu.matmul %60, %62, %cst_21 {dimension_numbers = #tpu.dot_dimension_numbers<[1], [0], [0], [1], [0, 0, 1, 1], [], []>} : vector<512x4xf32>, vector<4x4xf32>, vector<512x4xf32> -> vector<512x4xf32>
    %64 = arith.addf %58, %63 : vector<512x4xf32>
    %65 = vector.extract_strided_slice %33 {offsets = [0, 1, 2, 0], sizes = [2, 16, 16, 4], strides = [1, 1, 1, 1]} : vector<2x18x18x4xf32> to vector<2x16x16x4xf32>
    %66 = vector.shape_cast %65 : vector<2x16x16x4xf32> to vector<512x4xf32>
    %67 = vector.extract_strided_slice %1 {offsets = [5, 0, 0], sizes = [1, 4, 4], strides = [1, 1, 1]} : vector<9x4x4xf32> to vector<1x4x4xf32>
    %68 = vector.shape_cast %67 : vector<1x4x4xf32> to vector<4x4xf32>
    %cst_22 = arith.constant dense<0.000000e+00> : vector<512x4xf32>
    %69 = tpu.matmul %66, %68, %cst_22 {dimension_numbers = #tpu.dot_dimension_numbers<[1], [0], [0], [1], [0, 0, 1, 1], [], []>} : vector<512x4xf32>, vector<4x4xf32>, vector<512x4xf32> -> vector<512x4xf32>
    %70 = arith.addf %64, %69 : vector<512x4xf32>
    %71 = vector.extract_strided_slice %33 {offsets = [0, 2, 0, 0], sizes = [2, 16, 16, 4], strides = [1, 1, 1, 1]} : vector<2x18x18x4xf32> to vector<2x16x16x4xf32>
    %72 = vector.shape_cast %71 : vector<2x16x16x4xf32> to vector<512x4xf32>
    %73 = vector.extract_strided_slice %1 {offsets = [6, 0, 0], sizes = [1, 4, 4], strides = [1, 1, 1]} : vector<9x4x4xf32> to vector<1x4x4xf32>
    %74 = vector.shape_cast %73 : vector<1x4x4xf32> to vector<4x4xf32>
    %cst_23 = arith.constant dense<0.000000e+00> : vector<512x4xf32>
    %75 = tpu.matmul %72, %74, %cst_23 {dimension_numbers = #tpu.dot_dimension_numbers<[1], [0], [0], [1], [0, 0, 1, 1], [], []>} : vector<512x4xf32>, vector<4x4xf32>, vector<512x4xf32> -> vector<512x4xf32>
    %76 = arith.addf %70, %75 : vector<512x4xf32>
    %77 = vector.extract_strided_slice %33 {offsets = [0, 2, 1, 0], sizes = [2, 16, 16, 4], strides = [1, 1, 1, 1]} : vector<2x18x18x4xf32> to vector<2x16x16x4xf32>
    %78 = vector.shape_cast %77 : vector<2x16x16x4xf32> to vector<512x4xf32>
    %79 = vector.extract_strided_slice %1 {offsets = [7, 0, 0], sizes = [1, 4, 4], strides = [1, 1, 1]} : vector<9x4x4xf32> to vector<1x4x4xf32>
    %80 = vector.shape_cast %79 : vector<1x4x4xf32> to vector<4x4xf32>
    %cst_24 = arith.constant dense<0.000000e+00> : vector<512x4xf32>
    %81 = tpu.matmul %78, %80, %cst_24 {dimension_numbers = #tpu.dot_dimension_numbers<[1], [0], [0], [1], [0, 0, 1, 1], [], []>} : vector<512x4xf32>, vector<4x4xf32>, vector<512x4xf32> -> vector<512x4xf32>
    %82 = arith.addf %76, %81 : vector<512x4xf32>
    %83 = vector.extract_strided_slice %33 {offsets = [0, 2, 2, 0], sizes = [2, 16, 16, 4], strides = [1, 1, 1, 1]} : vector<2x18x18x4xf32> to vector<2x16x16x4xf32>
    %84 = vector.shape_cast %83 : vector<2x16x16x4xf32> to vector<512x4xf32>
    %85 = vector.extract_strided_slice %1 {offsets = [8, 0, 0], sizes = [1, 4, 4], strides = [1, 1, 1]} : vector<9x4x4xf32> to vector<1x4x4xf32>
    %86 = vector.shape_cast %85 : vector<1x4x4xf32> to vector<4x4xf32>
    %cst_25 = arith.constant dense<0.000000e+00> : vector<512x4xf32>
    %87 = tpu.matmul %84, %86, %cst_25 {dimension_numbers = #tpu.dot_dimension_numbers<[1], [0], [0], [1], [0, 0, 1, 1], [], []>} : vector<512x4xf32>, vector<4x4xf32>, vector<512x4xf32> -> vector<512x4xf32>
    %88 = arith.addf %82, %87 : vector<512x4xf32>
    %89 = vector.shape_cast %88 : vector<512x4xf32> to vector<2x16x16x4xf32>
    %90 = vector.shape_cast %3 : vector<4xf32> to vector<1x1x1x4xf32>
    %91 = vector.broadcast %90 : vector<1x1x1x4xf32> to vector<2x16x16x4xf32>
    %92 = arith.addf %89, %91 : vector<2x16x16x4xf32>
    %c0_26 = arith.constant 0 : index
    %c0_27 = arith.constant 0 : index
    %c0_28 = arith.constant 0 : index
    %c0_29 = arith.constant 0 : index
    %93 = vector.load %arg6[%c0_26, %c0_27, %c0_28, %c0_29] : memref<2x16x16x4xf32, #tpu.memory_space<vmem>>, vector<2x16x16x4xf32>
    tpu.vector_store %arg6[%c0_26, %c0_27, %c0_28, %c0_29], %92 {strides = array<i32>} : memref<2x16x16x4xf32, #tpu.memory_space<vmem>>, vector<2x16x16x4xf32>,
    return
  }
  func.func @transform_0(%arg0: i32) -> (i32, i32, i32, i32) {
    %c0_i32 = arith.constant 0 : i32
    %c0_i32_0 = arith.constant 0 : i32
    %c0_i32_1 = arith.constant 0 : i32
    %c0_i32_2 = arith.constant 0 : i32
    return %arg0, %c0_i32, %c0_i32_0, %c0_i32_1 : i32, i32, i32, i32
  }
  func.func @transform_1(%arg0: i32) -> (i32, i32, i32) {
    %c0_i32 = arith.constant 0 : i32
    %c0_i32_0 = arith.constant 0 : i32
    %c0_i32_1 = arith.constant 0 : i32
    %c0_i32_2 = arith.constant 0 : i32
    return %c0_i32, %c0_i32_0, %c0_i32_1 : i32, i32, i32
  }
  func.func @transform_2(%arg0: i32) -> (i32, i32) {
    %c0_i32 = arith.constant 0 : i32
    %c0_i32_0 = arith.constant 0 : i32
    %c0_i32_1 = arith.constant 0 : i32
    return %c0_i32, %c0_i32_0 : i32, i32
  }
  func.func @transform_3(%arg0: i32) -> (i32, i32) {
    %c0_i32 = arith.constant 0 : i32
    %c0_i32_0 = arith.constant 0 : i32
    %c0_i32_1 = arith.constant 0 : i32
    return %c0_i32, %c0_i32_0 : i32, i32
  }
  func.func @transform_4(%arg0: i32) -> (i32, i32) {
    %c0_i32 = arith.constant 0 : i32
    %c0_i32_0 = arith.constant 0 : i32
    %c0_i32_1 = arith.constant 0 : i32
    return %c0_i32, %c0_i32_0 : i32, i32
  }
  func.func @transform_5(%arg0: i32) -> (i32, i32, i32, i32) {
    %c0_i32 = arith.constant 0 : i32
    %c0_i32_0 = arith.constant 0 : i32
    %c0_i32_1 = arith.constant 0 : i32
    %c0_i32_2 = arith.constant 0 : i32
    return %arg0, %c0_i32, %c0_i32_0, %c0_i32_1 : i32, i32, i32, i32
  }
}

</mosaic_0001>

<llo_original>
// kernel: tpu_custom_call.1
$region0: #{tpu_custom_call.1}
  #allocation0 [shape = 'u32[]', space=smem, size = 0x4, offset = 0x4, fixed_abs, tag = 'smem constant byte address 0x4 - core index']
  #allocation1 [shape = 'u32[144,128]{1,0:T(1,128)}', space=vmem, size = 0x12000, scoped, tag = 'internal scratch']
  %s0 = inlined_call_operand.vmem [shape: f32[2,18,18,4], index: 0, kind: input, shape index: {}]
  %s1 = inlined_call_operand.vmem [shape: f32[9,4,4], index: 1, kind: input, shape index: {}]
  %s2 = inlined_call_operand.vmem [shape: f32[1,4], index: 2, kind: input, shape index: {}]
  %s3 = inlined_call_operand.vmem [shape: f32[1,4], index: 3, kind: input, shape index: {}]
  %s4 = inlined_call_operand.vmem [shape: f32[1,4], index: 4, kind: input, shape index: {}]
  %s5 = inlined_call_operand.vmem [shape: f32[2,16,16,4], index: 5, kind: output, shape index: {}]
  %s6 = sld [smem:[#allocation0]]
  $region30: #{tpu_custom_call.1} parent=0
    _
  %s8 = ssub.s32 1, %s6
  %s9 = scalar_select 0, %s8, %s6
  // Predicated region
  $region2: #{tpu_custom_call.1} parent=0 // pred_check
    _
  $region3: #{tpu_custom_call.1} parent=0 // pred_check_branch
    %11 = sbr.rel (0) target = $region5
  $region4: #{tpu_custom_call.1} parent=0 // pred_region
    _
  $region5: #{tpu_custom_call.1} parent=0 // pred_fallthru
    _
  // Predicated region
  $region6: #{tpu_custom_call.1} parent=0 // pred_check
    _
  $region7: #{tpu_custom_call.1} parent=0 // pred_check_branch
    %13 = sbr.rel (0) target = $region9
  $region8: #{tpu_custom_call.1} parent=0 // pred_region
    _
  $region9: #{tpu_custom_call.1} parent=0 // pred_fallthru
    _
  // Predicated region
  $region10: #{tpu_custom_call.1} parent=0 // pred_check
    _
  $region11: #{tpu_custom_call.1} parent=0 // pred_check_branch
    %15 = sbr.rel (0) target = $region13
  $region12: #{tpu_custom_call.1} parent=0 // pred_region
    _
  $region13: #{tpu_custom_call.1} parent=0 // pred_fallthru
    _
  // Predicated region
  $region14: #{tpu_custom_call.1} parent=0 // pred_check
    _
  $region15: #{tpu_custom_call.1} parent=0 // pred_check_branch
    %17 = sbr.rel (0) target = $region17
  $region16: #{tpu_custom_call.1} parent=0 // pred_region
    _
  $region17: #{tpu_custom_call.1} parent=0 // pred_fallthru
    _
  // Predicated region
  $region18: #{tpu_custom_call.1} parent=0 // pred_check
    _
  $region19: #{tpu_custom_call.1} parent=0 // pred_check_branch
    %19 = sbr.rel (0) target = $region21
  $region20: #{tpu_custom_call.1} parent=0 // pred_region
    _
  $region21: #{tpu_custom_call.1} parent=0 // pred_fallthru
    _
  %v20 = vld [vmem:[%s0] sm:$0xff]
  %v21 = vld [vmem:[%s0 + $0x8] sm:$0xff]
  %v22 = vld [vmem:[%s0 + $0x10] sm:$0x3]
  %v23 = vld [vmem:[%s0 + $0x18] sm:$0xff]
  %v24 = vld [vmem:[%s0 + $0x20] sm:$0xff]
  %v25 = vld [vmem:[%s0 + $0x28] sm:$0x3]
  %v26 = vld [vmem:[%s0 + $0x30] sm:$0xff]
  %v27 = vld [vmem:[%s0 + $0x38] sm:$0xff]
  %v28 = vld [vmem:[%s0 + $0x40] sm:$0x3]
  %v29 = vld [vmem:[%s0 + $0x48] sm:$0xff]
  %v30 = vld [vmem:[%s0 + $0x50] sm:$0xff]
  %v31 = vld [vmem:[%s0 + $0x58] sm:$0x3]
  %v32 = vld [vmem:[%s0 + $0x60] sm:$0xff]
  %v33 = vld [vmem:[%s0 + $0x68] sm:$0xff]
  %v34 = vld [vmem:[%s0 + $0x70] sm:$0x3]
  %v35 = vld [vmem:[%s0 + $0x78] sm:$0xff]
  %v36 = vld [vmem:[%s0 + $0x80] sm:$0xff]
  %v37 = vld [vmem:[%s0 + $0x88] sm:$0x3]
  %v38 = vld [vmem:[%s0 + $0x90] sm:$0xff]
  %v39 = vld [vmem:[%s0 + $0x98] sm:$0xff]
  %v40 = vld [vmem:[%s0 + $0xa0] sm:$0x3]
  %v41 = vld [vmem:[%s0 + $0xa8] sm:$0xff]
  %v42 = vld [vmem:[%s0 + $0xb0] sm:$0xff]
  %v43 = vld [vmem:[%s0 + $0xb8] sm:$0x3]
  %v44 = vld [vmem:[%s0 + $0xc0] sm:$0xff]
  %v45 = vld [vmem:[%s0 + $0xc8] sm:$0xff]
  %v46 = vld [vmem:[%s0 + $0xd0] sm:$0x3]
  %v47 = vld [vmem:[%s0 + $0xd8] sm:$0xff]
  %v48 = vld [vmem:[%s0 + $0xe0] sm:$0xff]
  %v49 = vld [vmem:[%s0 + $0xe8] sm:$0x3]
  %v50 = vld [vmem:[%s0 + $0xf0] sm:$0xff]
  %v51 = vld [vmem:[%s0 + $0xf8] sm:$0xff]
  %v52 = vld [vmem:[%s0 + $0x100] sm:$0x3]
  %v53 = vld [vmem:[%s0 + $0x108] sm:$0xff]
  %v54 = vld [vmem:[%s0 + $0x110] sm:$0xff]
  %v55 = vld [vmem:[%s0 + $0x118] sm:$0x3]
  %v56 = vld [vmem:[%s0 + $0x120] sm:$0xff]
  %v57 = vld [vmem:[%s0 + $0x128] sm:$0xff]
  %v58 = vld [vmem:[%s0 + $0x130] sm:$0x3]
  %v59 = vld [vmem:[%s0 + $0x138] sm:$0xff]
  %v60 = vld [vmem:[%s0 + $0x140] sm:$0xff]
  %v61 = vld [vmem:[%s0 + $0x148] sm:$0x3]
  %v62 = vld [vmem:[%s0 + $0x150] sm:$0xff]
  %v63 = vld [vmem:[%s0 + $0x158] sm:$0xff]
  %v64 = vld [vmem:[%s0 + $0x160] sm:$0x3]
  %v65 = vld [vmem:[%s0 + $0x168] sm:$0xff]
  %v66 = vld [vmem:[%s0 + $0x170] sm:$0xff]
  %v67 = vld [vmem:[%s0 + $0x178] sm:$0x3]
  %v68 = vld [vmem:[%s0 + $0x180] sm:$0xff]
  %v69 = vld [vmem:[%s0 + $0x188] sm:$0xff]
  %v70 = vld [vmem:[%s0 + $0x190] sm:$0x3]
  %v71 = vld [vmem:[%s0 + $0x198] sm:$0xff]
  %v72 = vld [vmem:[%s0 + $0x1a0] sm:$0xff]
  %v73 = vld [vmem:[%s0 + $0x1a8] sm:$0x3]
  %v74 = vld [vmem:[%s0 + $0x1b0] sm:$0xff]
  %v75 = vld [vmem:[%s0 + $0x1b8] sm:$0xff]
  %v76 = vld [vmem:[%s0 + $0x1c0] sm:$0x3]
  %v77 = vld [vmem:[%s0 + $0x1c8] sm:$0xff]
  %v78 = vld [vmem:[%s0 + $0x1d0] sm:$0xff]
  %v79 = vld [vmem:[%s0 + $0x1d8] sm:$0x3]
  %v80 = vld [vmem:[%s0 + $0x1e0] sm:$0xff]
  %v81 = vld [vmem:[%s0 + $0x1e8] sm:$0xff]
  %v82 = vld [vmem:[%s0 + $0x1f0] sm:$0x3]
  %v83 = vld [vmem:[%s0 + $0x1f8] sm:$0xff]
  %v84 = vld [vmem:[%s0 + $0x200] sm:$0xff]
  %v85 = vld [vmem:[%s0 + $0x208] sm:$0x3]
  %v86 = vld [vmem:[%s0 + $0x210] sm:$0xff]
  %v87 = vld [vmem:[%s0 + $0x218] sm:$0xff]
  %v88 = vld [vmem:[%s0 + $0x220] sm:$0x3]
  %v89 = vld [vmem:[%s0 + $0x228] sm:$0xff]
  %v90 = vld [vmem:[%s0 + $0x230] sm:$0xff]
  %v91 = vld [vmem:[%s0 + $0x238] sm:$0x3]
  %v92 = vld [vmem:[%s0 + $0x240] sm:$0xff]
  %v93 = vld [vmem:[%s0 + $0x248] sm:$0xff]
  %v94 = vld [vmem:[%s0 + $0x250] sm:$0x3]
  %v95 = vld [vmem:[%s0 + $0x258] sm:$0xff]
  %v96 = vld [vmem:[%s0 + $0x260] sm:$0xff]
  %v97 = vld [vmem:[%s0 + $0x268] sm:$0x3]
  %v98 = vld [vmem:[%s0 + $0x270] sm:$0xff]
  %v99 = vld [vmem:[%s0 + $0x278] sm:$0xff]
  %v100 = vld [vmem:[%s0 + $0x280] sm:$0x3]
  %v101 = vld [vmem:[%s0 + $0x288] sm:$0xff]
  %v102 = vld [vmem:[%s0 + $0x290] sm:$0xff]
  %v103 = vld [vmem:[%s0 + $0x298] sm:$0x3]
  %v104 = vld [vmem:[%s0 + $0x2a0] sm:$0xff]
  %v105 = vld [vmem:[%s0 + $0x2a8] sm:$0xff]
  %v106 = vld [vmem:[%s0 + $0x2b0] sm:$0x3]
  %v107 = vld [vmem:[%s0 + $0x2b8] sm:$0xff]
  %v108 = vld [vmem:[%s0 + $0x2c0] sm:$0xff]
  %v109 = vld [vmem:[%s0 + $0x2c8] sm:$0x3]
  %v110 = vld [vmem:[%s0 + $0x2d0] sm:$0xff]
  %v111 = vld [vmem:[%s0 + $0x2d8] sm:$0xff]
  %v112 = vld [vmem:[%s0 + $0x2e0] sm:$0x3]
  %v113 = vld [vmem:[%s0 + $0x2e8] sm:$0xff]
  %v114 = vld [vmem:[%s0 + $0x2f0] sm:$0xff]
  %v115 = vld [vmem:[%s0 + $0x2f8] sm:$0x3]
  %v116 = vld [vmem:[%s0 + $0x300] sm:$0xff]
  %v117 = vld [vmem:[%s0 + $0x308] sm:$0xff]
  %v118 = vld [vmem:[%s0 + $0x310] sm:$0x3]
  %v119 = vld [vmem:[%s0 + $0x318] sm:$0xff]
  %v120 = vld [vmem:[%s0 + $0x320] sm:$0xff]
  %v121 = vld [vmem:[%s0 + $0x328] sm:$0x3]
  %v122 = vld [vmem:[%s0 + $0x330] sm:$0xff]
  %v123 = vld [vmem:[%s0 + $0x338] sm:$0xff]
  %v124 = vld [vmem:[%s0 + $0x340] sm:$0x3]
  %v125 = vld [vmem:[%s0 + $0x348] sm:$0xff]
  %v126 = vld [vmem:[%s0 + $0x350] sm:$0xff]
  %v127 = vld [vmem:[%s0 + $0x358] sm:$0x3]
  %v128 = vld [vmem:[%s1] sm:$0xf]
  %v129 = vld [vmem:[%s1 + $0x4] sm:$0xf]
  %v130 = vld [vmem:[%s1 + $0x8] sm:$0xf]
  %v131 = vld [vmem:[%s1 + $0xc] sm:$0xf]
  %v132 = vld [vmem:[%s1 + $0x10] sm:$0xf]
  %v133 = vld [vmem:[%s1 + $0x14] sm:$0xf]
  %v134 = vld [vmem:[%s1 + $0x18] sm:$0xf]
  %v135 = vld [vmem:[%s1 + $0x1c] sm:$0xf]
  %v136 = vld [vmem:[%s1 + $0x20] sm:$0xf]
  %v137 = vld [vmem:[%s2] sm:$0x1]
  %v138 = vld [vmem:[%s3] sm:$0x1]
  %v139 = vld [vmem:[%s4] sm:$0x1]
  %v141 = vlaneseq
  %v142 = vshrl.u32 %v141, 7
  %v143 = vsub.s32 0, %v142
  %v144 = vrot.slane %v138, %v143
  %v146 = vmul.f32 %v20, %v144
  %v147 = vmul.f32 %v21, %v144
  %v148 = vmul.f32 %v22, %v144
  %v149 = vmul.f32 %v23, %v144
  %v150 = vmul.f32 %v24, %v144
  %v151 = vmul.f32 %v25, %v144
  %v152 = vmul.f32 %v26, %v144
  %v153 = vmul.f32 %v27, %v144
  %v154 = vmul.f32 %v28, %v144
  %v155 = vmul.f32 %v29, %v144
  %v156 = vmul.f32 %v30, %v144
  %v157 = vmul.f32 %v31, %v144
  %v158 = vmul.f32 %v32, %v144
  %v159 = vmul.f32 %v33, %v144
  %v160 = vmul.f32 %v34, %v144
  %v161 = vmul.f32 %v35, %v144
  %v162 = vmul.f32 %v36, %v144
  %v163 = vmul.f32 %v37, %v144
  %v164 = vmul.f32 %v38, %v144
  %v165 = vmul.f32 %v39, %v144
  %v166 = vmul.f32 %v40, %v144
  %v167 = vmul.f32 %v41, %v144
  %v168 = vmul.f32 %v42, %v144
  %v169 = vmul.f32 %v43, %v144
  %v170 = vmul.f32 %v44, %v144
  %v171 = vmul.f32 %v45, %v144
  %v172 = vmul.f32 %v46, %v144
  %v173 = vmul.f32 %v47, %v144
  %v174 = vmul.f32 %v48, %v144
  %v175 = vmul.f32 %v49, %v144
  %v176 = vmul.f32 %v50, %v144
  %v177 = vmul.f32 %v51, %v144
  %v178 = vmul.f32 %v52, %v144
  %v179 = vmul.f32 %v53, %v144
  %v180 = vmul.f32 %v54, %v144
  %v181 = vmul.f32 %v55, %v144
  %v182 = vmul.f32 %v56, %v144
  %v183 = vmul.f32 %v57, %v144
  %v184 = vmul.f32 %v58, %v144
  %v185 = vmul.f32 %v59, %v144
  %v186 = vmul.f32 %v60, %v144
  %v187 = vmul.f32 %v61, %v144
  %v188 = vmul.f32 %v62, %v144
  %v189 = vmul.f32 %v63, %v144
  %v190 = vmul.f32 %v64, %v144
  %v191 = vmul.f32 %v65, %v144
  %v192 = vmul.f32 %v66, %v144
  %v193 = vmul.f32 %v67, %v144
  %v194 = vmul.f32 %v68, %v144
  %v195 = vmul.f32 %v69, %v144
  %v196 = vmul.f32 %v70, %v144
  %v197 = vmul.f32 %v71, %v144
  %v198 = vmul.f32 %v72, %v144
  %v199 = vmul.f32 %v73, %v144
  %v200 = vmul.f32 %v74, %v144
  %v201 = vmul.f32 %v75, %v144
  %v202 = vmul.f32 %v76, %v144
  %v203 = vmul.f32 %v77, %v144
  %v204 = vmul.f32 %v78, %v144
  %v205 = vmul.f32 %v79, %v144
  %v206 = vmul.f32 %v80, %v144
  %v207 = vmul.f32 %v81, %v144
  %v208 = vmul.f32 %v82, %v144
  %v209 = vmul.f32 %v83, %v144
  %v210 = vmul.f32 %v84, %v144
  %v211 = vmul.f32 %v85, %v144
  %v212 = vmul.f32 %v86, %v144
  %v213 = vmul.f32 %v87, %v144
  %v214 = vmul.f32 %v88, %v144
  %v215 = vmul.f32 %v89, %v144
  %v216 = vmul.f32 %v90, %v144
  %v217 = vmul.f32 %v91, %v144
  %v218 = vmul.f32 %v92, %v144
  %v219 = vmul.f32 %v93, %v144
  %v220 = vmul.f32 %v94, %v144
  %v221 = vmul.f32 %v95, %v144
  %v222 = vmul.f32 %v96, %v144
  %v223 = vmul.f32 %v97, %v144
  %v224 = vmul.f32 %v98, %v144
  %v225 = vmul.f32 %v99, %v144
  %v226 = vmul.f32 %v100, %v144
  %v227 = vmul.f32 %v101, %v144
  %v228 = vmul.f32 %v102, %v144
  %v229 = vmul.f32 %v103, %v144
  %v230 = vmul.f32 %v104, %v144
  %v231 = vmul.f32 %v105, %v144
  %v232 = vmul.f32 %v106, %v144
  %v233 = vmul.f32 %v107, %v144
  %v234 = vmul.f32 %v108, %v144
  %v235 = vmul.f32 %v109, %v144
  %v236 = vmul.f32 %v110, %v144
  %v237 = vmul.f32 %v111, %v144
  %v238 = vmul.f32 %v112, %v144
  %v239 = vmul.f32 %v113, %v144
  %v240 = vmul.f32 %v114, %v144
  %v241 = vmul.f32 %v115, %v144
  %v242 = vmul.f32 %v116, %v144
  %v243 = vmul.f32 %v117, %v144
  %v244 = vmul.f32 %v118, %v144
  %v245 = vmul.f32 %v119, %v144
  %v246 = vmul.f32 %v120, %v144
  %v247 = vmul.f32 %v121, %v144
  %v248 = vmul.f32 %v122, %v144
  %v249 = vmul.f32 %v123, %v144
  %v250 = vmul.f32 %v124, %v144
  %v251 = vmul.f32 %v125, %v144
  %v252 = vmul.f32 %v126, %v144
  %v253 = vmul.f32 %v127, %v144
  %v255 = vlaneseq
  %v256 = vshrl.u32 %v255, 7
  %v257 = vsub.s32 0, %v256
  %v258 = vrot.slane %v139, %v257
  %v260 = vadd.f32 %v146, %v258
  %v261 = vadd.f32 %v147, %v258
  %v262 = vadd.f32 %v148, %v258
  %v263 = vadd.f32 %v149, %v258
  %v264 = vadd.f32 %v150, %v258
  %v265 = vadd.f32 %v151, %v258
  %v266 = vadd.f32 %v152, %v258
  %v267 = vadd.f32 %v153, %v258
  %v268 = vadd.f32 %v154, %v258
  %v269 = vadd.f32 %v155, %v258
  %v270 = vadd.f32 %v156, %v258
  %v271 = vadd.f32 %v157, %v258
  %v272 = vadd.f32 %v158, %v258
  %v273 = vadd.f32 %v159, %v258
  %v274 = vadd.f32 %v160, %v258
  %v275 = vadd.f32 %v161, %v258
  %v276 = vadd.f32 %v162, %v258
  %v277 = vadd.f32 %v163, %v258
  %v278 = vadd.f32 %v164, %v258
  %v279 = vadd.f32 %v165, %v258
  %v280 = vadd.f32 %v166, %v258
  %v281 = vadd.f32 %v167, %v258
  %v282 = vadd.f32 %v168, %v258
  %v283 = vadd.f32 %v169, %v258
  %v284 = vadd.f32 %v170, %v258
  %v285 = vadd.f32 %v171, %v258
  %v286 = vadd.f32 %v172, %v258
  %v287 = vadd.f32 %v173, %v258
  %v288 = vadd.f32 %v174, %v258
  %v289 = vadd.f32 %v175, %v258
  %v290 = vadd.f32 %v176, %v258
  %v291 = vadd.f32 %v177, %v258
  %v292 = vadd.f32 %v178, %v258
  %v293 = vadd.f32 %v179, %v258
  %v294 = vadd.f32 %v180, %v258
  %v295 = vadd.f32 %v181, %v258
  %v296 = vadd.f32 %v182, %v258
  %v297 = vadd.f32 %v183, %v258
  %v298 = vadd.f32 %v184, %v258
  %v299 = vadd.f32 %v185, %v258
  %v300 = vadd.f32 %v186, %v258
  %v301 = vadd.f32 %v187, %v258
  %v302 = vadd.f32 %v188, %v258
  %v303 = vadd.f32 %v189, %v258
  %v304 = vadd.f32 %v190, %v258
  %v305 = vadd.f32 %v191, %v258
  %v306 = vadd.f32 %v192, %v258
  %v307 = vadd.f32 %v193, %v258
  %v308 = vadd.f32 %v194, %v258
  %v309 = vadd.f32 %v195, %v258
  %v310 = vadd.f32 %v196, %v258
  %v311 = vadd.f32 %v197, %v258
  %v312 = vadd.f32 %v198, %v258
  %v313 = vadd.f32 %v199, %v258
  %v314 = vadd.f32 %v200, %v258
  %v315 = vadd.f32 %v201, %v258
  %v316 = vadd.f32 %v202, %v258
  %v317 = vadd.f32 %v203, %v258
  %v318 = vadd.f32 %v204, %v258
  %v319 = vadd.f32 %v205, %v258
  %v320 = vadd.f32 %v206, %v258
  %v321 = vadd.f32 %v207, %v258
  %v322 = vadd.f32 %v208, %v258
  %v323 = vadd.f32 %v209, %v258
  %v324 = vadd.f32 %v210, %v258
  %v325 = vadd.f32 %v211, %v258
  %v326 = vadd.f32 %v212, %v258
  %v327 = vadd.f32 %v213, %v258
  %v328 = vadd.f32 %v214, %v258
  %v329 = vadd.f32 %v215, %v258
  %v330 = vadd.f32 %v216, %v258
  %v331 = vadd.f32 %v217, %v258
  %v332 = vadd.f32 %v218, %v258
  %v333 = vadd.f32 %v219, %v258
  %v334 = vadd.f32 %v220, %v258
  %v335 = vadd.f32 %v221, %v258
  %v336 = vadd.f32 %v222, %v258
  %v337 = vadd.f32 %v223, %v258
  %v338 = vadd.f32 %v224, %v258
  %v339 = vadd.f32 %v225, %v258
  %v340 = vadd.f32 %v226, %v258
  %v341 = vadd.f32 %v227, %v258
  %v342 = vadd.f32 %v228, %v258
  %v343 = vadd.f32 %v229, %v258
  %v344 = vadd.f32 %v230, %v258
  %v345 = vadd.f32 %v231, %v258
  %v346 = vadd.f32 %v232, %v258
  %v347 = vadd.f32 %v233, %v258
  %v348 = vadd.f32 %v234, %v258
  %v349 = vadd.f32 %v235, %v258
  %v350 = vadd.f32 %v236, %v258
  %v351 = vadd.f32 %v237, %v258
  %v352 = vadd.f32 %v238, %v258
  %v353 = vadd.f32 %v239, %v258
  %v354 = vadd.f32 %v240, %v258
  %v355 = vadd.f32 %v241, %v258
  %v356 = vadd.f32 %v242, %v258
  %v357 = vadd.f32 %v243, %v258
  %v358 = vadd.f32 %v244, %v258
  %v359 = vadd.f32 %v245, %v258
  %v360 = vadd.f32 %v246, %v258
  %v361 = vadd.f32 %v247, %v258
  %v362 = vadd.f32 %v248, %v258
  %v363 = vadd.f32 %v249, %v258
  %v364 = vadd.f32 %v250, %v258
  %v365 = vadd.f32 %v251, %v258
  %v366 = vadd.f32 %v252, %v258
  %v367 = vadd.f32 %v253, %v258
  %vm368 = vcmp.ge.f32.partialorder %v260, 0.0
  %vm369 = vcmp.ge.f32.partialorder %v261, 0.0
  %vm370 = vcmp.ge.f32.partialorder %v262, 0.0
  %vm371 = vcmp.ge.f32.partialorder %v263, 0.0
  %vm372 = vcmp.ge.f32.partialorder %v264, 0.0
  %vm373 = vcmp.ge.f32.partialorder %v265, 0.0
  %vm374 = vcmp.ge.f32.partialorder %v266, 0.0
  %vm375 = vcmp.ge.f32.partialorder %v267, 0.0
  %vm376 = vcmp.ge.f32.partialorder %v268, 0.0
  %vm377 = vcmp.ge.f32.partialorder %v269, 0.0
  %vm378 = vcmp.ge.f32.partialorder %v270, 0.0
  %vm379 = vcmp.ge.f32.partialorder %v271, 0.0
  %vm380 = vcmp.ge.f32.partialorder %v272, 0.0
  %vm381 = vcmp.ge.f32.partialorder %v273, 0.0
  %vm382 = vcmp.ge.f32.partialorder %v274, 0.0
  %vm383 = vcmp.ge.f32.partialorder %v275, 0.0
  %vm384 = vcmp.ge.f32.partialorder %v276, 0.0
  %vm385 = vcmp.ge.f32.partialorder %v277, 0.0
  %vm386 = vcmp.ge.f32.partialorder %v278, 0.0
  %vm387 = vcmp.ge.f32.partialorder %v279, 0.0
  %vm388 = vcmp.ge.f32.partialorder %v280, 0.0
  %vm389 = vcmp.ge.f32.partialorder %v281, 0.0
  %vm390 = vcmp.ge.f32.partialorder %v282, 0.0
  %vm391 = vcmp.ge.f32.partialorder %v283, 0.0
  %vm392 = vcmp.ge.f32.partialorder %v284, 0.0
  %vm393 = vcmp.ge.f32.partialorder %v285, 0.0
  %vm394 = vcmp.ge.f32.partialorder %v286, 0.0
  %vm395 = vcmp.ge.f32.partialorder %v287, 0.0
  %vm396 = vcmp.ge.f32.partialorder %v288, 0.0
  %vm397 = vcmp.ge.f32.partialorder %v289, 0.0
  %vm398 = vcmp.ge.f32.partialorder %v290, 0.0
  %vm399 = vcmp.ge.f32.partialorder %v291, 0.0
  %vm400 = vcmp.ge.f32.partialorder %v292, 0.0
  %vm401 = vcmp.ge.f32.partialorder %v293, 0.0
  %vm402 = vcmp.ge.f32.partialorder %v294, 0.0
  %vm403 = vcmp.ge.f32.partialorder %v295, 0.0
  %vm404 = vcmp.ge.f32.partialorder %v296, 0.0
  %vm405 = vcmp.ge.f32.partialorder %v297, 0.0
  %vm406 = vcmp.ge.f32.partialorder %v298, 0.0
  %vm407 = vcmp.ge.f32.partialorder %v299, 0.0
  %vm408 = vcmp.ge.f32.partialorder %v300, 0.0
  %vm409 = vcmp.ge.f32.partialorder %v301, 0.0
  %vm410 = vcmp.ge.f32.partialorder %v302, 0.0
  %vm411 = vcmp.ge.f32.partialorder %v303, 0.0
  %vm412 = vcmp.ge.f32.partialorder %v304, 0.0
  %vm413 = vcmp.ge.f32.partialorder %v305, 0.0
  %vm414 = vcmp.ge.f32.partialorder %v306, 0.0
  %vm415 = vcmp.ge.f32.partialorder %v307, 0.0
  %vm416 = vcmp.ge.f32.partialorder %v308, 0.0
  %vm417 = vcmp.ge.f32.partialorder %v309, 0.0
  %vm418 = vcmp.ge.f32.partialorder %v310, 0.0
  %vm419 = vcmp.ge.f32.partialorder %v311, 0.0
  %vm420 = vcmp.ge.f32.partialorder %v312, 0.0
  %vm421 = vcmp.ge.f32.partialorder %v313, 0.0
  %vm422 = vcmp.ge.f32.partialorder %v314, 0.0
  %vm423 = vcmp.ge.f32.partialorder %v315, 0.0
  %vm424 = vcmp.ge.f32.partialorder %v316, 0.0
  %vm425 = vcmp.ge.f32.partialorder %v317, 0.0
  %vm426 = vcmp.ge.f32.partialorder %v318, 0.0
  %vm427 = vcmp.ge.f32.partialorder %v319, 0.0
  %vm428 = vcmp.ge.f32.partialorder %v320, 0.0
  %vm429 = vcmp.ge.f32.partialorder %v321, 0.0
  %vm430 = vcmp.ge.f32.partialorder %v322, 0.0
  %vm431 = vcmp.ge.f32.partialorder %v323, 0.0
  %vm432 = vcmp.ge.f32.partialorder %v324, 0.0
  %vm433 = vcmp.ge.f32.partialorder %v325, 0.0
  %vm434 = vcmp.ge.f32.partialorder %v326, 0.0
  %vm435 = vcmp.ge.f32.partialorder %v327, 0.0
  %vm436 = vcmp.ge.f32.partialorder %v328, 0.0
  %vm437 = vcmp.ge.f32.partialorder %v329, 0.0
  %vm438 = vcmp.ge.f32.partialorder %v330, 0.0
  %vm439 = vcmp.ge.f32.partialorder %v331, 0.0
  %vm440 = vcmp.ge.f32.partialorder %v332, 0.0
  %vm441 = vcmp.ge.f32.partialorder %v333, 0.0
  %vm442 = vcmp.ge.f32.partialorder %v334, 0.0
  %vm443 = vcmp.ge.f32.partialorder %v335, 0.0
  %vm444 = vcmp.ge.f32.partialorder %v336, 0.0
  %vm445 = vcmp.ge.f32.partialorder %v337, 0.0
  %vm446 = vcmp.ge.f32.partialorder %v338, 0.0
  %vm447 = vcmp.ge.f32.partialorder %v339, 0.0
  %vm448 = vcmp.ge.f32.partialorder %v340, 0.0
  %vm449 = vcmp.ge.f32.partialorder %v341, 0.0
  %vm450 = vcmp.ge.f32.partialorder %v342, 0.0
  %vm451 = vcmp.ge.f32.partialorder %v343, 0.0
  %vm452 = vcmp.ge.f32.partialorder %v344, 0.0
  %vm453 = vcmp.ge.f32.partialorder %v345, 0.0
  %vm454 = vcmp.ge.f32.partialorder %v346, 0.0
  %vm455 = vcmp.ge.f32.partialorder %v347, 0.0
  %vm456 = vcmp.ge.f32.partialorder %v348, 0.0
  %vm457 = vcmp.ge.f32.partialorder %v349, 0.0
  %vm458 = vcmp.ge.f32.partialorder %v350, 0.0
  %vm459 = vcmp.ge.f32.partialorder %v351, 0.0
  %vm460 = vcmp.ge.f32.partialorder %v352, 0.0
  %vm461 = vcmp.ge.f32.partialorder %v353, 0.0
  %vm462 = vcmp.ge.f32.partialorder %v354, 0.0
  %vm463 = vcmp.ge.f32.partialorder %v355, 0.0
  %vm464 = vcmp.ge.f32.partialorder %v356, 0.0
  %vm465 = vcmp.ge.f32.partialorder %v357, 0.0
  %vm466 = vcmp.ge.f32.partialorder %v358, 0.0
  %vm467 = vcmp.ge.f32.partialorder %v359, 0.0
  %vm468 = vcmp.ge.f32.partialorder %v360, 0.0
  %vm469 = vcmp.ge.f32.partialorder %v361, 0.0
  %vm470 = vcmp.ge.f32.partialorder %v362, 0.0
  %vm471 = vcmp.ge.f32.partialorder %v363, 0.0
  %vm472 = vcmp.ge.f32.partialorder %v364, 0.0
  %vm473 = vcmp.ge.f32.partialorder %v365, 0.0
  %vm474 = vcmp.ge.f32.partialorder %v366, 0.0
  %vm475 = vcmp.ge.f32.partialorder %v367, 0.0
  %v476 = vmul.f32 %v260, 0.01
  %v477 = vmul.f32 %v261, 0.01
  %v478 = vmul.f32 %v262, 0.01
  %v479 = vmul.f32 %v263, 0.01
  %v480 = vmul.f32 %v264, 0.01
  %v481 = vmul.f32 %v265, 0.01
  %v482 = vmul.f32 %v266, 0.01
  %v483 = vmul.f32 %v267, 0.01
  %v484 = vmul.f32 %v268, 0.01
  %v485 = vmul.f32 %v269, 0.01
  %v486 = vmul.f32 %v270, 0.01
  %v487 = vmul.f32 %v271, 0.01
  %v488 = vmul.f32 %v272, 0.01
  %v489 = vmul.f32 %v273, 0.01
  %v490 = vmul.f32 %v274, 0.01
  %v491 = vmul.f32 %v275, 0.01
  %v492 = vmul.f32 %v276, 0.01
  %v493 = vmul.f32 %v277, 0.01
  %v494 = vmul.f32 %v278, 0.01
  %v495 = vmul.f32 %v279, 0.01
  %v496 = vmul.f32 %v280, 0.01
  %v497 = vmul.f32 %v281, 0.01
  %v498 = vmul.f32 %v282, 0.01
  %v499 = vmul.f32 %v283, 0.01
  %v500 = vmul.f32 %v284, 0.01
  %v501 = vmul.f32 %v285, 0.01
  %v502 = vmul.f32 %v286, 0.01
  %v503 = vmul.f32 %v287, 0.01
  %v504 = vmul.f32 %v288, 0.01
  %v505 = vmul.f32 %v289, 0.01
  %v506 = vmul.f32 %v290, 0.01
  %v507 = vmul.f32 %v291, 0.01
  %v508 = vmul.f32 %v292, 0.01
  %v509 = vmul.f32 %v293, 0.01
  %v510 = vmul.f32 %v294, 0.01
  %v511 = vmul.f32 %v295, 0.01
  %v512 = vmul.f32 %v296, 0.01
  %v513 = vmul.f32 %v297, 0.01
  %v514 = vmul.f32 %v298, 0.01
  %v515 = vmul.f32 %v299, 0.01
  %v516 = vmul.f32 %v300, 0.01
  %v517 = vmul.f32 %v301, 0.01
  %v518 = vmul.f32 %v302, 0.01
  %v519 = vmul.f32 %v303, 0.01
  %v520 = vmul.f32 %v304, 0.01
  %v521 = vmul.f32 %v305, 0.01
  %v522 = vmul.f32 %v306, 0.01
  %v523 = vmul.f32 %v307, 0.01
  %v524 = vmul.f32 %v308, 0.01
  %v525 = vmul.f32 %v309, 0.01
  %v526 = vmul.f32 %v310, 0.01
  %v527 = vmul.f32 %v311, 0.01
  %v528 = vmul.f32 %v312, 0.01
  %v529 = vmul.f32 %v313, 0.01
  %v530 = vmul.f32 %v314, 0.01
  %v531 = vmul.f32 %v315, 0.01
  %v532 = vmul.f32 %v316, 0.01
  %v533 = vmul.f32 %v317, 0.01
  %v534 = vmul.f32 %v318, 0.01
  %v535 = vmul.f32 %v319, 0.01
  %v536 = vmul.f32 %v320, 0.01
  %v537 = vmul.f32 %v321, 0.01
  %v538 = vmul.f32 %v322, 0.01
  %v539 = vmul.f32 %v323, 0.01
  %v540 = vmul.f32 %v324, 0.01
  %v541 = vmul.f32 %v325, 0.01
  %v542 = vmul.f32 %v326, 0.01
  %v543 = vmul.f32 %v327, 0.01
  %v544 = vmul.f32 %v328, 0.01
  %v545 = vmul.f32 %v329, 0.01
  %v546 = vmul.f32 %v330, 0.01
  %v547 = vmul.f32 %v331, 0.01
  %v548 = vmul.f32 %v332, 0.01
  %v549 = vmul.f32 %v333, 0.01
  %v550 = vmul.f32 %v334, 0.01
  %v551 = vmul.f32 %v335, 0.01
  %v552 = vmul.f32 %v336, 0.01
  %v553 = vmul.f32 %v337, 0.01
  %v554 = vmul.f32 %v338, 0.01
  %v555 = vmul.f32 %v339, 0.01
  %v556 = vmul.f32 %v340, 0.01
  %v557 = vmul.f32 %v341, 0.01
  %v558 = vmul.f32 %v342, 0.01
  %v559 = vmul.f32 %v343, 0.01
  %v560 = vmul.f32 %v344, 0.01
  %v561 = vmul.f32 %v345, 0.01
  %v562 = vmul.f32 %v346, 0.01
  %v563 = vmul.f32 %v347, 0.01
  %v564 = vmul.f32 %v348, 0.01
  %v565 = vmul.f32 %v349, 0.01
  %v566 = vmul.f32 %v350, 0.01
  %v567 = vmul.f32 %v351, 0.01
  %v568 = vmul.f32 %v352, 0.01
  %v569 = vmul.f32 %v353, 0.01
  %v570 = vmul.f32 %v354, 0.01
  %v571 = vmul.f32 %v355, 0.01
  %v572 = vmul.f32 %v356, 0.01
  %v573 = vmul.f32 %v357, 0.01
  %v574 = vmul.f32 %v358, 0.01
  %v575 = vmul.f32 %v359, 0.01
  %v576 = vmul.f32 %v360, 0.01
  %v577 = vmul.f32 %v361, 0.01
  %v578 = vmul.f32 %v362, 0.01
  %v579 = vmul.f32 %v363, 0.01
  %v580 = vmul.f32 %v364, 0.01
  %v581 = vmul.f32 %v365, 0.01
  %v582 = vmul.f32 %v366, 0.01
  %v583 = vmul.f32 %v367, 0.01
  %v584 = vsel %vm368, %v260, %v476
  %v585 = vsel %vm369, %v261, %v477
  %v586 = vsel %vm370, %v262, %v478
  %v587 = vsel %vm371, %v263, %v479
  %v588 = vsel %vm372, %v264, %v480
  %v589 = vsel %vm373, %v265, %v481
  %v590 = vsel %vm374, %v266, %v482
  %v591 = vsel %vm375, %v267, %v483
  %v592 = vsel %vm376, %v268, %v484
  %v593 = vsel %vm377, %v269, %v485
  %v594 = vsel %vm378, %v270, %v486
  %v595 = vsel %vm379, %v271, %v487
  %v596 = vsel %vm380, %v272, %v488
  %v597 = vsel %vm381, %v273, %v489
  %v598 = vsel %vm382, %v274, %v490
  %v599 = vsel %vm383, %v275, %v491
  %v600 = vsel %vm384, %v276, %v492
  %v601 = vsel %vm385, %v277, %v493
  %v602 = vsel %vm386, %v278, %v494
  %v603 = vsel %vm387, %v279, %v495
  %v604 = vsel %vm388, %v280, %v496
  %v605 = vsel %vm389, %v281, %v497
  %v606 = vsel %vm390, %v282, %v498
  %v607 = vsel %vm391, %v283, %v499
  %v608 = vsel %vm392, %v284, %v500
  %v609 = vsel %vm393, %v285, %v501
  %v610 = vsel %vm394, %v286, %v502
  %v611 = vsel %vm395, %v287, %v503
  %v612 = vsel %vm396, %v288, %v504
  %v613 = vsel %vm397, %v289, %v505
  %v614 = vsel %vm398, %v290, %v506
  %v615 = vsel %vm399, %v291, %v507
  %v616 = vsel %vm400, %v292, %v508
  %v617 = vsel %vm401, %v293, %v509
  %v618 = vsel %vm402, %v294, %v510
  %v619 = vsel %vm403, %v295, %v511
  %v620 = vsel %vm404, %v296, %v512
  %v621 = vsel %vm405, %v297, %v513
  %v622 = vsel %vm406, %v298, %v514
  %v623 = vsel %vm407, %v299, %v515
  %v624 = vsel %vm408, %v300, %v516
  %v625 = vsel %vm409, %v301, %v517
  %v626 = vsel %vm410, %v302, %v518
  %v627 = vsel %vm411, %v303, %v519
  %v628 = vsel %vm412, %v304, %v520
  %v629 = vsel %vm413, %v305, %v521
  %v630 = vsel %vm414, %v306, %v522
  %v631 = vsel %vm415, %v307, %v523
  %v632 = vsel %vm416, %v308, %v524
  %v633 = vsel %vm417, %v309, %v525
  %v634 = vsel %vm418, %v310, %v526
  %v635 = vsel %vm419, %v311, %v527
  %v636 = vsel %vm420, %v312, %v528
  %v637 = vsel %vm421, %v313, %v529
  %v638 = vsel %vm422, %v314, %v530
  %v639 = vsel %vm423, %v315, %v531
  %v640 = vsel %vm424, %v316, %v532
  %v641 = vsel %vm425, %v317, %v533
  %v642 = vsel %vm426, %v318, %v534
  %v643 = vsel %vm427, %v319, %v535
  %v644 = vsel %vm428, %v320, %v536
  %v645 = vsel %vm429, %v321, %v537
  %v646 = vsel %vm430, %v322, %v538
  %v647 = vsel %vm431, %v323, %v539
  %v648 = vsel %vm432, %v324, %v540
  %v649 = vsel %vm433, %v325, %v541
  %v650 = vsel %vm434, %v326, %v542
  %v651 = vsel %vm435, %v327, %v543
  %v652 = vsel %vm436, %v328, %v544
  %v653 = vsel %vm437, %v329, %v545
  %v654 = vsel %vm438, %v330, %v546
  %v655 = vsel %vm439, %v331, %v547
  %v656 = vsel %vm440, %v332, %v548
  %v657 = vsel %vm441, %v333, %v549
  %v658 = vsel %vm442, %v334, %v550
  %v659 = vsel %vm443, %v335, %v551
  %v660 = vsel %vm444, %v336, %v552
  %v661 = vsel %vm445, %v337, %v553
  %v662 = vsel %vm446, %v338, %v554
  %v663 = vsel %vm447, %v339, %v555
  %v664 = vsel %vm448, %v340, %v556
  %v665 = vsel %vm449, %v341, %v557
  %v666 = vsel %vm450, %v342, %v558
  %v667 = vsel %vm451, %v343, %v559
  %v668 = vsel %vm452, %v344, %v560
  %v669 = vsel %vm453, %v345, %v561
  %v670 = vsel %vm454, %v346, %v562
  %v671 = vsel %vm455, %v347, %v563
  %v672 = vsel %vm456, %v348, %v564
  %v673 = vsel %vm457, %v349, %v565
  %v674 = vsel %vm458, %v350, %v566
  %v675 = vsel %vm459, %v351, %v567
  %v676 = vsel %vm460, %v352, %v568
  %v677 = vsel %vm461, %v353, %v569
  %v678 = vsel %vm462, %v354, %v570
  %v679 = vsel %vm463, %v355, %v571
  %v680 = vsel %vm464, %v356, %v572
  %v681 = vsel %vm465, %v357, %v573
  %v682 = vsel %vm466, %v358, %v574
  %v683 = vsel %vm467, %v359, %v575
  %v684 = vsel %vm468, %v360, %v576
  %v685 = vsel %vm469, %v361, %v577
  %v686 = vsel %vm470, %v362, %v578
  %v687 = vsel %vm471, %v363, %v579
  %v688 = vsel %vm472, %v364, %v580
  %v689 = vsel %vm473, %v365, %v581
  %v690 = vsel %vm474, %v366, %v582
  %v691 = vsel %vm475, %v367, %v583
  %v692 = vlaneseq
  %v693 = vshrl.u32 %v692, 7
  %v694 = vadd.s32 %v693, 8
  %v695 = vadd.s32 %v693, 16
  %vm696 = vcmp.ge.s32.totalorder %v693, 1
  %vm697 = vcmp.ge.s32.totalorder %v694, 1
  %vm698 = vcmp.ge.s32.totalorder %v695, 1
  %vm699 = vmand 0, %vm696
  %vm700 = vmand 0, %vm697
  %vm701 = vmand 0, %vm698
  %vm702 = vmand 1, %vm696
  %vm703 = vmand 1, %vm697
  %vm704 = vmand 1, %vm698
  %vm705 = vcmp.le.s32.totalorder %v693, 16
  %vm706 = vcmp.le.s32.totalorder %v694, 16
  %vm707 = vcmp.le.s32.totalorder %v695, 16
  %vm708 = vmand %vm699, %vm705
  %vm709 = vmand %vm700, %vm706
  %vm710 = vmand %vm701, %vm707
  %vm711 = vmand %vm702, %vm705
  %vm712 = vmand %vm703, %vm706
  %vm713 = vmand %vm704, %vm707
  %v714 = vsel %vm708, %v584, 0.0
  %v715 = vsel %vm709, %v585, 0.0
  %v716 = vsel %vm710, %v586, 0.0
  %v717 = vsel %vm711, %v587, 0.0
  %v718 = vsel %vm712, %v588, 0.0
  %v719 = vsel %vm713, %v589, 0.0
  %v720 = vsel %vm711, %v590, 0.0
  %v721 = vsel %vm712, %v591, 0.0
  %v722 = vsel %vm713, %v592, 0.0
  %v723 = vsel %vm711, %v593, 0.0
  %v724 = vsel %vm712, %v594, 0.0
  %v725 = vsel %vm713, %v595, 0.0
  %v726 = vsel %vm711, %v596, 0.0
  %v727 = vsel %vm712, %v597, 0.0
  %v728 = vsel %vm713, %v598, 0.0
  %v729 = vsel %vm711, %v599, 0.0
  %v730 = vsel %vm712, %v600, 0.0
  %v731 = vsel %vm713, %v601, 0.0
  %v732 = vsel %vm711, %v602, 0.0
  %v733 = vsel %vm712, %v603, 0.0
  %v734 = vsel %vm713, %v604, 0.0
  %v735 = vsel %vm711, %v605, 0.0
  %v736 = vsel %vm712, %v606, 0.0
  %v737 = vsel %vm713, %v607, 0.0
  %v738 = vsel %vm711, %v608, 0.0
  %v739 = vsel %vm712, %v609, 0.0
  %v740 = vsel %vm713, %v610, 0.0
  %v741 = vsel %vm711, %v611, 0.0
  %v742 = vsel %vm712, %v612, 0.0
  %v743 = vsel %vm713, %v613, 0.0
  %v744 = vsel %vm711, %v614, 0.0
  %v745 = vsel %vm712, %v615, 0.0
  %v746 = vsel %vm713, %v616, 0.0
  %v747 = vsel %vm711, %v617, 0.0
  %v748 = vsel %vm712, %v618, 0.0
  %v749 = vsel %vm713, %v619, 0.0
  %v750 = vsel %vm711, %v620, 0.0
  %v751 = vsel %vm712, %v621, 0.0
  %v752 = vsel %vm713, %v622, 0.0
  %v753 = vsel %vm711, %v623, 0.0
  %v754 = vsel %vm712, %v624, 0.0
  %v755 = vsel %vm713, %v625, 0.0
  %v756 = vsel %vm711, %v626, 0.0
  %v757 = vsel %vm712, %v627, 0.0
  %v758 = vsel %vm713, %v628, 0.0
  %v759 = vsel %vm711, %v629, 0.0
  %v760 = vsel %vm712, %v630, 0.0
  %v761 = vsel %vm713, %v631, 0.0
  %v762 = vsel %vm711, %v632, 0.0
  %v763 = vsel %vm712, %v633, 0.0
  %v764 = vsel %vm713, %v634, 0.0
  %v765 = vsel %vm708, %v635, 0.0
  %v766 = vsel %vm709, %v636, 0.0
  %v767 = vsel %vm710, %v637, 0.0
  %v768 = vsel %vm708, %v638, 0.0
  %v769 = vsel %vm709, %v639, 0.0
  %v770 = vsel %vm710, %v640, 0.0
  %v771 = vsel %vm711, %v641, 0.0
  %v772 = vsel %vm712, %v642, 0.0
  %v773 = vsel %vm713, %v643, 0.0
  %v774 = vsel %vm711, %v644, 0.0
  %v775 = vsel %vm712, %v645, 0.0
  %v776 = vsel %vm713, %v646, 0.0
  %v777 = vsel %vm711, %v647, 0.0
  %v778 = vsel %vm712, %v648, 0.0
  %v779 = vsel %vm713, %v649, 0.0
  %v780 = vsel %vm711, %v650, 0.0
  %v781 = vsel %vm712, %v651, 0.0
  %v782 = vsel %vm713, %v652, 0.0
  %v783 = vsel %vm711, %v653, 0.0
  %v784 = vsel %vm712, %v654, 0.0
  %v785 = vsel %vm713, %v655, 0.0
  %v786 = vsel %vm711, %v656, 0.0
  %v787 = vsel %vm712, %v657, 0.0
  %v788 = vsel %vm713, %v658, 0.0
  %v789 = vsel %vm711, %v659, 0.0
  %v790 = vsel %vm712, %v660, 0.0
  %v791 = vsel %vm713, %v661, 0.0
  %v792 = vsel %vm711, %v662, 0.0
  %v793 = vsel %vm712, %v663, 0.0
  %v794 = vsel %vm713, %v664, 0.0
  %v795 = vsel %vm711, %v665, 0.0
  %v796 = vsel %vm712, %v666, 0.0
  %v797 = vsel %vm713, %v667, 0.0
  %v798 = vsel %vm711, %v668, 0.0
  %v799 = vsel %vm712, %v669, 0.0
  %v800 = vsel %vm713, %v670, 0.0
  %v801 = vsel %vm711, %v671, 0.0
  %v802 = vsel %vm712, %v672, 0.0
  %v803 = vsel %vm713, %v673, 0.0
  %v804 = vsel %vm711, %v674, 0.0
  %v805 = vsel %vm712, %v675, 0.0
  %v806 = vsel %vm713, %v676, 0.0
  %v807 = vsel %vm711, %v677, 0.0
  %v808 = vsel %vm712, %v678, 0.0
  %v809 = vsel %vm713, %v679, 0.0
  %v810 = vsel %vm711, %v680, 0.0
  %v811 = vsel %vm712, %v681, 0.0
  %v812 = vsel %vm713, %v682, 0.0
  %v813 = vsel %vm711, %v683, 0.0
  %v814 = vsel %vm712, %v684, 0.0
  %v815 = vsel %vm713, %v685, 0.0
  %v816 = vsel %vm711, %v686, 0.0
  %v817 = vsel %vm712, %v687, 0.0
  %v818 = vsel %vm713, %v688, 0.0
  %v819 = vsel %vm708, %v689, 0.0
  %v820 = vsel %vm709, %v690, 0.0
  %v821 = vsel %vm710, %v691, 0.0
  %vm918 = vcmask 1046528
  %v919 = vrot.slane %v714, 1
  %v920 = vrot.slane %v715, 1
  %v921 = vsel %vm918, %v919, %v920
  %v922 = vrot.slane %v716, 1
  %v923 = vsel %vm918, %v920, %v922
  %v924 = vrot.slane %v717, 1
  %v925 = vrot.slane %v718, 1
  %v926 = vsel %vm918, %v924, %v925
  %v927 = vrot.slane %v719, 1
  %v928 = vsel %vm918, %v925, %v927
  %v929 = vrot.slane %v720, 1
  %v930 = vrot.slane %v721, 1
  %v931 = vsel %vm918, %v929, %v930
  %v932 = vrot.slane %v722, 1
  %v933 = vsel %vm918, %v930, %v932
  %v934 = vrot.slane %v723, 1
  %v935 = vrot.slane %v724, 1
  %v936 = vsel %vm918, %v934, %v935
  %v937 = vrot.slane %v725, 1
  %v938 = vsel %vm918, %v935, %v937
  %v939 = vrot.slane %v726, 1
  %v940 = vrot.slane %v727, 1
  %v941 = vsel %vm918, %v939, %v940
  %v942 = vrot.slane %v728, 1
  %v943 = vsel %vm918, %v940, %v942
  %v944 = vrot.slane %v729, 1
  %v945 = vrot.slane %v730, 1
  %v946 = vsel %vm918, %v944, %v945
  %v947 = vrot.slane %v731, 1
  %v948 = vsel %vm918, %v945, %v947
  %v949 = vrot.slane %v732, 1
  %v950 = vrot.slane %v733, 1
  %v951 = vsel %vm918, %v949, %v950
  %v952 = vrot.slane %v734, 1
  %v953 = vsel %vm918, %v950, %v952
  %v954 = vrot.slane %v735, 1
  %v955 = vrot.slane %v736, 1
  %v956 = vsel %vm918, %v954, %v955
  %v957 = vrot.slane %v737, 1
  %v958 = vsel %vm918, %v955, %v957
  %v959 = vrot.slane %v738, 1
  %v960 = vrot.slane %v739, 1
  %v961 = vsel %vm918, %v959, %v960
  %v962 = vrot.slane %v740, 1
  %v963 = vsel %vm918, %v960, %v962
  %v964 = vrot.slane %v741, 1
  %v965 = vrot.slane %v742, 1
  %v966 = vsel %vm918, %v964, %v965
  %v967 = vrot.slane %v743, 1
  %v968 = vsel %vm918, %v965, %v967
  %v969 = vrot.slane %v744, 1
  %v970 = vrot.slane %v745, 1
  %v971 = vsel %vm918, %v969, %v970
  %v972 = vrot.slane %v746, 1
  %v973 = vsel %vm918, %v970, %v972
  %v974 = vrot.slane %v747, 1
  %v975 = vrot.slane %v748, 1
  %v976 = vsel %vm918, %v974, %v975
  %v977 = vrot.slane %v749, 1
  %v978 = vsel %vm918, %v975, %v977
  %v979 = vrot.slane %v750, 1
  %v980 = vrot.slane %v751, 1
  %v981 = vsel %vm918, %v979, %v980
  %v982 = vrot.slane %v752, 1
  %v983 = vsel %vm918, %v980, %v982
  %v984 = vrot.slane %v753, 1
  %v985 = vrot.slane %v754, 1
  %v986 = vsel %vm918, %v984, %v985
  %v987 = vrot.slane %v755, 1
  %v988 = vsel %vm918, %v985, %v987
  %v989 = vrot.slane %v756, 1
  %v990 = vrot.slane %v757, 1
  %v991 = vsel %vm918, %v989, %v990
  %v992 = vrot.slane %v758, 1
  %v993 = vsel %vm918, %v990, %v992
  %v994 = vrot.slane %v759, 1
  %v995 = vrot.slane %v760, 1
  %v996 = vsel %vm918, %v994, %v995
  %v997 = vrot.slane %v761, 1
  %v998 = vsel %vm918, %v995, %v997
  %v999 = vrot.slane %v768, 1
  %v1000 = vrot.slane %v769, 1
  %v1001 = vsel %vm918, %v999, %v1000
  %v1002 = vrot.slane %v770, 1
  %v1003 = vsel %vm918, %v1000, %v1002
  %v1004 = vrot.slane %v771, 1
  %v1005 = vrot.slane %v772, 1
  %v1006 = vsel %vm918, %v1004, %v1005
  %v1007 = vrot.slane %v773, 1
  %v1008 = vsel %vm918, %v1005, %v1007
  %v1009 = vrot.slane %v774, 1
  %v1010 = vrot.slane %v775, 1
  %v1011 = vsel %vm918, %v1009, %v1010
  %v1012 = vrot.slane %v776, 1
  %v1013 = vsel %vm918, %v1010, %v1012
  %v1014 = vrot.slane %v777, 1
  %v1015 = vrot.slane %v778, 1
  %v1016 = vsel %vm918, %v1014, %v1015
  %v1017 = vrot.slane %v779, 1
  %v1018 = vsel %vm918, %v1015, %v1017
  %v1019 = vrot.slane %v780, 1
  %v1020 = vrot.slane %v781, 1
  %v1021 = vsel %vm918, %v1019, %v1020
  %v1022 = vrot.slane %v782, 1
  %v1023 = vsel %vm918, %v1020, %v1022
  %v1024 = vrot.slane %v783, 1
  %v1025 = vrot.slane %v784, 1
  %v1026 = vsel %vm918, %v1024, %v1025
  %v1027 = vrot.slane %v785, 1
  %v1028 = vsel %vm918, %v1025, %v1027
  %v1029 = vrot.slane %v786, 1
  %v1030 = vrot.slane %v787, 1
  %v1031 = vsel %vm918, %v1029, %v1030
  %v1032 = vrot.slane %v788, 1
  %v1033 = vsel %vm918, %v1030, %v1032
  %v1034 = vrot.slane %v789, 1
  %v1035 = vrot.slane %v790, 1
  %v1036 = vsel %vm918, %v1034, %v1035
  %v1037 = vrot.slane %v791, 1
  %v1038 = vsel %vm918, %v1035, %v1037
  %v1039 = vrot.slane %v792, 1
  %v1040 = vrot.slane %v793, 1
  %v1041 = vsel %vm918, %v1039, %v1040
  %v1042 = vrot.slane %v794, 1
  %v1043 = vsel %vm918, %v1040, %v1042
  %v1044 = vrot.slane %v795, 1
  %v1045 = vrot.slane %v796, 1
  %v1046 = vsel %vm918, %v1044, %v1045
  %v1047 = vrot.slane %v797, 1
  %v1048 = vsel %vm918, %v1045, %v1047
  %v1049 = vrot.slane %v798, 1
  %v1050 = vrot.slane %v799, 1
  %v1051 = vsel %vm918, %v1049, %v1050
  %v1052 = vrot.slane %v800, 1
  %v1053 = vsel %vm918, %v1050, %v1052
  %v1054 = vrot.slane %v801, 1
  %v1055 = vrot.slane %v802, 1
  %v1056 = vsel %vm918, %v1054, %v1055
  %v1057 = vrot.slane %v803, 1
  %v1058 = vsel %vm918, %v1055, %v1057
  %v1059 = vrot.slane %v804, 1
  %v1060 = vrot.slane %v805, 1
  %v1061 = vsel %vm918, %v1059, %v1060
  %v1062 = vrot.slane %v806, 1
  %v1063 = vsel %vm918, %v1060, %v1062
  %v1064 = vrot.slane %v807, 1
  %v1065 = vrot.slane %v808, 1
  %v1066 = vsel %vm918, %v1064, %v1065
  %v1067 = vrot.slane %v809, 1
  %v1068 = vsel %vm918, %v1065, %v1067
  %v1069 = vrot.slane %v810, 1
  %v1070 = vrot.slane %v811, 1
  %v1071 = vsel %vm918, %v1069, %v1070
  %v1072 = vrot.slane %v812, 1
  %v1073 = vsel %vm918, %v1070, %v1072
  %v1074 = vrot.slane %v813, 1
  %v1075 = vrot.slane %v814, 1
  %v1076 = vsel %vm918, %v1074, %v1075
  %v1077 = vrot.slane %v815, 1
  %v1078 = vsel %vm918, %v1075, %v1077
  %vm1079 = vcmask 31744
  %v1080 = vsel %vm1079, %v921, 0
  %v1082 = vsel %vm1079, %v923, 0
  %v1084 = vsel %vm1079, %v926, 0
  %v1086 = vsel %vm1079, %v928, 0
  %v1088 = vsel %vm1079, %v931, 0
  %v1090 = vsel %vm1079, %v933, 0
  %v1092 = vsel %vm1079, %v936, 0
  %v1094 = vsel %vm1079, %v938, 0
  %v1096 = vsel %vm1079, %v941, 0
  %v1098 = vsel %vm1079, %v943, 0
  %v1100 = vsel %vm1079, %v946, 0
  %v1102 = vsel %vm1079, %v948, 0
  %v1104 = vsel %vm1079, %v951, 0
  %v1106 = vsel %vm1079, %v953, 0
  %v1108 = vsel %vm1079, %v956, 0
  %v1110 = vsel %vm1079, %v958, 0
  %v1112 = vsel %vm1079, %v961, 0
  %v1114 = vsel %vm1079, %v963, 0
  %v1116 = vsel %vm1079, %v966, 0
  %v1118 = vsel %vm1079, %v968, 0
  %v1120 = vsel %vm1079, %v971, 0
  %v1122 = vsel %vm1079, %v973, 0
  %v1124 = vsel %vm1079, %v976, 0
  %v1126 = vsel %vm1079, %v978, 0
  %v1128 = vsel %vm1079, %v981, 0
  %v1130 = vsel %vm1079, %v983, 0
  %v1132 = vsel %vm1079, %v986, 0
  %v1134 = vsel %vm1079, %v988, 0
  %v1136 = vsel %vm1079, %v991, 0
  %v1138 = vsel %vm1079, %v993, 0
  %v1140 = vsel %vm1079, %v996, 0
  %v1142 = vsel %vm1079, %v998, 0
  %v1144 = vsel %vm1079, %v1001, 0
  %v1146 = vsel %vm1079, %v1003, 0
  %v1148 = vsel %vm1079, %v1006, 0
  %v1150 = vsel %vm1079, %v1008, 0
  %v1152 = vsel %vm1079, %v1011, 0
  %v1154 = vsel %vm1079, %v1013, 0
  %v1156 = vsel %vm1079, %v1016, 0
  %v1158 = vsel %vm1079, %v1018, 0
  %v1160 = vsel %vm1079, %v1021, 0
  %v1162 = vsel %vm1079, %v1023, 0
  %v1164 = vsel %vm1079, %v1026, 0
  %v1166 = vsel %vm1079, %v1028, 0
  %v1168 = vsel %vm1079, %v1031, 0
  %v1170 = vsel %vm1079, %v1033, 0
  %v1172 = vsel %vm1079, %v1036, 0
  %v1174 = vsel %vm1079, %v1038, 0
  %v1176 = vsel %vm1079, %v1041, 0
  %v1178 = vsel %vm1079, %v1043, 0
  %v1180 = vsel %vm1079, %v1046, 0
  %v1182 = vsel %vm1079, %v1048, 0
  %v1184 = vsel %vm1079, %v1051, 0
  %v1186 = vsel %vm1079, %v1053, 0
  %v1188 = vsel %vm1079, %v1056, 0
  %v1190 = vsel %vm1079, %v1058, 0
  %v1192 = vsel %vm1079, %v1061, 0
  %v1194 = vsel %vm1079, %v1063, 0
  %v1196 = vsel %vm1079, %v1066, 0
  %v1198 = vsel %vm1079, %v1068, 0
  %v1200 = vsel %vm1079, %v1071, 0
  %v1202 = vsel %vm1079, %v1073, 0
  %v1204 = vsel %vm1079, %v1076, 0
  %v1206 = vsel %vm1079, %v1078, 0
  %vm1208 = vcmask 1043456
  %v1210 = vsel %vm1208, %v129, 0
  %1212 = vmatprep.subr.mxu0 0.0
  %1213 = vmatpush1.msra.mxu0 %v1210
  %1214 = vmatprep.subr.mxu0 0.0
  %1215 = vmatpush1.msra.mxu0 0.0
  %1216 = vmatprep.subr.mxu0 0.0
  %1217 = vmatpush1.msra.mxu0 0.0
  %1218 = vmatprep.subr.mxu0 0.0
  %1219 = vmatpush1.msra.mxu0 0.0
  %1220 = vmatprep.subr.mxu0 0.0
  %1221 = vmatpush1.msra.mxu0 0.0
  %1222 = vmatprep.subr.mxu0 0.0
  %1223 = vmatpush1.msra.mxu0 0.0
  %1224 = vmatprep.subr.mxu0 0.0
  %1225 = vmatpush1.msra.mxu0 0.0
  %1226 = vmatprep.subr.mxu0 0.0
  %1227 = vmatpush1.msra.mxu0 0.0
  %1228 = vmatprep.subr.mxu0 0.0
  %1229 = vmatpush1.msra.mxu0 0.0
  %1230 = vmatprep.subr.mxu0 0.0
  %1231 = vmatpush1.msra.mxu0 0.0
  %1232 = vmatprep.subr.mxu0 0.0
  %1233 = vmatpush1.msra.mxu0 0.0
  %1234 = vmatprep.subr.mxu0 0.0
  %1235 = vmatpush1.msra.mxu0 0.0
  %1236 = vmatprep.subr.mxu0 0.0
  %1237 = vmatpush1.msra.mxu0 0.0
  %1238 = vmatprep.subr.mxu0 0.0
  %1239 = vmatpush1.msra.mxu0 0.0
  %1240 = vmatprep.subr.mxu0 0.0
  %1241 = vmatpush1.msra.mxu0 0.0
  %1242 = vmatprep.subr.mxu0 0.0
  %1243 = vmatpush1.msra.mxu0 0.0
  %1244 = vmatprep.subr.mxu0 0.0
  %1245 = vmatpush1.msra.mxu0 0.0
  %1246 = vmatprep.subr.mxu0 0.0
  %1247 = vmatpush1.msra.mxu0 0.0
  %1248 = vmatprep.subr.mxu0 0.0
  %1249 = vmatpush1.msra.mxu0 0.0
  %1250 = vmatprep.subr.mxu0 0.0
  %1251 = vmatpush1.msra.mxu0 0.0
  %1252 = vmatprep.subr.mxu0 0.0
  %1253 = vmatpush1.msra.mxu0 0.0
  %1254 = vmatprep.subr.mxu0 0.0
  %1255 = vmatpush1.msra.mxu0 0.0
  %1256 = vmatprep.subr.mxu0 0.0
  %1257 = vmatpush1.msra.mxu0 0.0
  %1258 = vmatprep.subr.mxu0 0.0
  %1259 = vmatpush1.msra.mxu0 0.0
  %1260 = vmatprep.subr.mxu0 0.0
  %1261 = vmatpush1.msra.mxu0 0.0
  %1262 = vmatprep.subr.mxu0 0.0
  %1263 = vmatpush1.msra.mxu0 0.0
  %1264 = vmatprep.subr.mxu0 0.0
  %1265 = vmatpush1.msra.mxu0 0.0
  %1266 = vmatprep.subr.mxu0 0.0
  %1267 = vmatpush1.msra.mxu0 0.0
  %1268 = vmatprep.subr.mxu0 0.0
  %1269 = vmatpush1.msra.mxu0 0.0
  %1270 = vmatprep.subr.mxu0 0.0
  %1271 = vmatpush1.msra.mxu0 0.0
  %1272 = vmatprep.subr.mxu0 0.0
  %1273 = vmatpush1.msra.mxu0 0.0
  %1274 = vmatprep.subr.mxu0 0.0
  %1275 = vmatpush1.msra.mxu0 0.0
  %1276 = vmatprep.mubr.f32.mxu0 0.0
  %1277 = vmatmul.mubr.f32.gmra.mrb[0].mxu0 %v1080
  %v1278 = vpop.f32.mrb[0].mxu0
  %v1279 = vadd.f32 0.0, %v1278
  %v1280 = vpop.f32.mrb[0].mxu0
  %1281 = vmatprep.mubr.f32.mxu0 0.0
  %1282 = vmatmul.mubr.f32.gmra.mrb[0].mxu0 %v1082
  %v1283 = vpop.f32.mrb[0].mxu0
  %v1284 = vadd.f32 0.0, %v1283
  %v1285 = vpop.f32.mrb[0].mxu0
  %1286 = vmatprep.mubr.f32.mxu0 0.0
  %1287 = vmatmul.mubr.f32.gmra.mrb[0].mxu0 %v1084
  %v1288 = vpop.f32.mrb[0].mxu0
  %v1289 = vadd.f32 0.0, %v1288
  %v1290 = vpop.f32.mrb[0].mxu0
  %1291 = vmatprep.mubr.f32.mxu0 0.0
  %1292 = vmatmul.mubr.f32.gmra.mrb[0].mxu0 %v1086
  %v1293 = vpop.f32.mrb[0].mxu0
  %v1294 = vadd.f32 0.0, %v1293
  %v1295 = vpop.f32.mrb[0].mxu0
  %1296 = vmatprep.mubr.f32.mxu0 0.0
  %1297 = vmatmul.mubr.f32.gmra.mrb[0].mxu0 %v1088
  %v1298 = vpop.f32.mrb[0].mxu0
  %v1299 = vadd.f32 0.0, %v1298
  %v1300 = vpop.f32.mrb[0].mxu0
  %1301 = vmatprep.mubr.f32.mxu0 0.0
  %1302 = vmatmul.mubr.f32.gmra.mrb[0].mxu0 %v1090
  %v1303 = vpop.f32.mrb[0].mxu0
  %v1304 = vadd.f32 0.0, %v1303
  %v1305 = vpop.f32.mrb[0].mxu0
  %1306 = vmatprep.mubr.f32.mxu0 0.0
  %1307 = vmatmul.mubr.f32.gmra.mrb[0].mxu0 %v1092
  %v1308 = vpop.f32.mrb[0].mxu0
  %v1309 = vadd.f32 0.0, %v1308
  %v1310 = vpop.f32.mrb[0].mxu0
  %1311 = vmatprep.mubr.f32.mxu0 0.0
  %1312 = vmatmul.mubr.f32.gmra.mrb[0].mxu0 %v1094
  %v1313 = vpop.f32.mrb[0].mxu0
  %v1314 = vadd.f32 0.0, %v1313
  %v1315 = vpop.f32.mrb[0].mxu0
  %1316 = vmatprep.mubr.f32.mxu0 0.0
  %1317 = vmatmul.mubr.f32.gmra.mrb[0].mxu0 %v1096
  %v1318 = vpop.f32.mrb[0].mxu0
  %v1319 = vadd.f32 0.0, %v1318
  %v1320 = vpop.f32.mrb[0].mxu0
  %1321 = vmatprep.mubr.f32.mxu0 0.0
  %1322 = vmatmul.mubr.f32.gmra.mrb[0].mxu0 %v1098
  %v1323 = vpop.f32.mrb[0].mxu0
  %v1324 = vadd.f32 0.0, %v1323
  %v1325 = vpop.f32.mrb[0].mxu0
  %1326 = vmatprep.mubr.f32.mxu0 0.0
  %1327 = vmatmul.mubr.f32.gmra.mrb[0].mxu0 %v1100
  %v1328 = vpop.f32.mrb[0].mxu0
  %v1329 = vadd.f32 0.0, %v1328
  %v1330 = vpop.f32.mrb[0].mxu0
  %1331 = vmatprep.mubr.f32.mxu0 0.0
  %1332 = vmatmul.mubr.f32.gmra.mrb[0].mxu0 %v1102
  %v1333 = vpop.f32.mrb[0].mxu0
  %v1334 = vadd.f32 0.0, %v1333
  %v1335 = vpop.f32.mrb[0].mxu0
  %1336 = vmatprep.mubr.f32.mxu0 0.0
  %1337 = vmatmul.mubr.f32.gmra.mrb[0].mxu0 %v1104
  %v1338 = vpop.f32.mrb[0].mxu0
  %v1339 = vadd.f32 0.0, %v1338
  %v1340 = vpop.f32.mrb[0].mxu0
  %1341 = vmatprep.mubr.f32.mxu0 0.0
  %1342 = vmatmul.mubr.f32.gmra.mrb[0].mxu0 %v1106
  %v1343 = vpop.f32.mrb[0].mxu0
  %v1344 = vadd.f32 0.0, %v1343
  %v1345 = vpop.f32.mrb[0].mxu0
  %1346 = vmatprep.mubr.f32.mxu0 0.0
  %1347 = vmatmul.mubr.f32.gmra.mrb[0].mxu0 %v1108
  %v1348 = vpop.f32.mrb[0].mxu0
  %v1349 = vadd.f32 0.0, %v1348
  %v1350 = vpop.f32.mrb[0].mxu0
  %1351 = vmatprep.mubr.f32.mxu0 0.0
  %1352 = vmatmul.mubr.f32.gmra.mrb[0].mxu0 %v1110
  %v1353 = vpop.f32.mrb[0].mxu0
  %v1354 = vadd.f32 0.0, %v1353
  %v1355 = vpop.f32.mrb[0].mxu0
  %1356 = vmatprep.mubr.f32.mxu0 0.0
  %1357 = vmatmul.mubr.f32.gmra.mrb[0].mxu0 %v1112
  %v1358 = vpop.f32.mrb[0].mxu0
  %v1359 = vadd.f32 0.0, %v1358
  %v1360 = vpop.f32.mrb[0].mxu0
  %1361 = vmatprep.mubr.f32.mxu0 0.0
  %1362 = vmatmul.mubr.f32.gmra.mrb[0].mxu0 %v1114
  %v1363 = vpop.f32.mrb[0].mxu0
  %v1364 = vadd.f32 0.0, %v1363
  %v1365 = vpop.f32.mrb[0].mxu0
  %1366 = vmatprep.mubr.f32.mxu0 0.0
  %1367 = vmatmul.mubr.f32.gmra.mrb[0].mxu0 %v1116
  %v1368 = vpop.f32.mrb[0].mxu0
  %v1369 = vadd.f32 0.0, %v1368
  %v1370 = vpop.f32.mrb[0].mxu0
  %1371 = vmatprep.mubr.f32.mxu0 0.0
  %1372 = vmatmul.mubr.f32.gmra.mrb[0].mxu0 %v1118
  %v1373 = vpop.f32.mrb[0].mxu0
  %v1374 = vadd.f32 0.0, %v1373
  %v1375 = vpop.f32.mrb[0].mxu0
  %1376 = vmatprep.mubr.f32.mxu0 0.0
  %1377 = vmatmul.mubr.f32.gmra.mrb[0].mxu0 %v1120
  %v1378 = vpop.f32.mrb[0].mxu0
  %v1379 = vadd.f32 0.0, %v1378
  %v1380 = vpop.f32.mrb[0].mxu0
  %1381 = vmatprep.mubr.f32.mxu0 0.0
  %1382 = vmatmul.mubr.f32.gmra.mrb[0].mxu0 %v1122
  %v1383 = vpop.f32.mrb[0].mxu0
  %v1384 = vadd.f32 0.0, %v1383
  %v1385 = vpop.f32.mrb[0].mxu0
  %1386 = vmatprep.mubr.f32.mxu0 0.0
  %1387 = vmatmul.mubr.f32.gmra.mrb[0].mxu0 %v1124
  %v1388 = vpop.f32.mrb[0].mxu0
  %v1389 = vadd.f32 0.0, %v1388
  %v1390 = vpop.f32.mrb[0].mxu0
  %1391 = vmatprep.mubr.f32.mxu0 0.0
  %1392 = vmatmul.mubr.f32.gmra.mrb[0].mxu0 %v1126
  %v1393 = vpop.f32.mrb[0].mxu0
  %v1394 = vadd.f32 0.0, %v1393
  %v1395 = vpop.f32.mrb[0].mxu0
  %1396 = vmatprep.mubr.f32.mxu0 0.0
  %1397 = vmatmul.mubr.f32.gmra.mrb[0].mxu0 %v1128
  %v1398 = vpop.f32.mrb[0].mxu0
  %v1399 = vadd.f32 0.0, %v1398
  %v1400 = vpop.f32.mrb[0].mxu0
  %1401 = vmatprep.mubr.f32.mxu0 0.0
  %1402 = vmatmul.mubr.f32.gmra.mrb[0].mxu0 %v1130
  %v1403 = vpop.f32.mrb[0].mxu0
  %v1404 = vadd.f32 0.0, %v1403
  %v1405 = vpop.f32.mrb[0].mxu0
  %1406 = vmatprep.mubr.f32.mxu0 0.0
  %1407 = vmatmul.mubr.f32.gmra.mrb[0].mxu0 %v1132
  %v1408 = vpop.f32.mrb[0].mxu0
  %v1409 = vadd.f32 0.0, %v1408
  %v1410 = vpop.f32.mrb[0].mxu0
  %1411 = vmatprep.mubr.f32.mxu0 0.0
  %1412 = vmatmul.mubr.f32.gmra.mrb[0].mxu0 %v1134
  %v1413 = vpop.f32.mrb[0].mxu0
  %v1414 = vadd.f32 0.0, %v1413
  %v1415 = vpop.f32.mrb[0].mxu0
  %1416 = vmatprep.mubr.f32.mxu0 0.0
  %1417 = vmatmul.mubr.f32.gmra.mrb[0].mxu0 %v1136
  %v1418 = vpop.f32.mrb[0].mxu0
  %v1419 = vadd.f32 0.0, %v1418
  %v1420 = vpop.f32.mrb[0].mxu0
  %1421 = vmatprep.mubr.f32.mxu0 0.0
  %1422 = vmatmul.mubr.f32.gmra.mrb[0].mxu0 %v1138
  %v1423 = vpop.f32.mrb[0].mxu0
  %v1424 = vadd.f32 0.0, %v1423
  %v1425 = vpop.f32.mrb[0].mxu0
  %1426 = vmatprep.mubr.f32.mxu0 0.0
  %1427 = vmatmul.mubr.f32.gmra.mrb[0].mxu0 %v1140
  %v1428 = vpop.f32.mrb[0].mxu0
  %v1429 = vadd.f32 0.0, %v1428
  %v1430 = vpop.f32.mrb[0].mxu0
  %1431 = vmatprep.mubr.f32.mxu0 0.0
  %1432 = vmatmul.mubr.f32.gmra.mrb[0].mxu0 %v1142
  %v1433 = vpop.f32.mrb[0].mxu0
  %v1434 = vadd.f32 0.0, %v1433
  %v1435 = vpop.f32.mrb[0].mxu0
  %1436 = vmatprep.mubr.f32.mxu0 0.0
  %1437 = vmatmul.mubr.f32.gmra.mrb[0].mxu0 %v1144
  %v1438 = vpop.f32.mrb[0].mxu0
  %v1439 = vadd.f32 0.0, %v1438
  %v1440 = vpop.f32.mrb[0].mxu0
  %1441 = vmatprep.mubr.f32.mxu0 0.0
  %1442 = vmatmul.mubr.f32.gmra.mrb[0].mxu0 %v1146
  %v1443 = vpop.f32.mrb[0].mxu0
  %v1444 = vadd.f32 0.0, %v1443
  %v1445 = vpop.f32.mrb[0].mxu0
  %1446 = vmatprep.mubr.f32.mxu0 0.0
  %1447 = vmatmul.mubr.f32.gmra.mrb[0].mxu0 %v1148
  %v1448 = vpop.f32.mrb[0].mxu0
  %v1449 = vadd.f32 0.0, %v1448
  %v1450 = vpop.f32.mrb[0].mxu0
  %1451 = vmatprep.mubr.f32.mxu0 0.0
  %1452 = vmatmul.mubr.f32.gmra.mrb[0].mxu0 %v1150
  %v1453 = vpop.f32.mrb[0].mxu0
  %v1454 = vadd.f32 0.0, %v1453
  %v1455 = vpop.f32.mrb[0].mxu0
  %1456 = vmatprep.mubr.f32.mxu0 0.0
  %1457 = vmatmul.mubr.f32.gmra.mrb[0].mxu0 %v1152
  %v1458 = vpop.f32.mrb[0].mxu0
  %v1459 = vadd.f32 0.0, %v1458
  %v1460 = vpop.f32.mrb[0].mxu0
  %1461 = vmatprep.mubr.f32.mxu0 0.0
  %1462 = vmatmul.mubr.f32.gmra.mrb[0].mxu0 %v1154
  %v1463 = vpop.f32.mrb[0].mxu0
  %v1464 = vadd.f32 0.0, %v1463
  %v1465 = vpop.f32.mrb[0].mxu0
  %1466 = vmatprep.mubr.f32.mxu0 0.0
  %1467 = vmatmul.mubr.f32.gmra.mrb[0].mxu0 %v1156
  %v1468 = vpop.f32.mrb[0].mxu0
  %v1469 = vadd.f32 0.0, %v1468
  %v1470 = vpop.f32.mrb[0].mxu0
  %1471 = vmatprep.mubr.f32.mxu0 0.0
  %1472 = vmatmul.mubr.f32.gmra.mrb[0].mxu0 %v1158
  %v1473 = vpop.f32.mrb[0].mxu0
  %v1474 = vadd.f32 0.0, %v1473
  %v1475 = vpop.f32.mrb[0].mxu0
  %1476 = vmatprep.mubr.f32.mxu0 0.0
  %1477 = vmatmul.mubr.f32.gmra.mrb[0].mxu0 %v1160
  %v1478 = vpop.f32.mrb[0].mxu0
  %v1479 = vadd.f32 0.0, %v1478
  %v1480 = vpop.f32.mrb[0].mxu0
  %1481 = vmatprep.mubr.f32.mxu0 0.0
  %1482 = vmatmul.mubr.f32.gmra.mrb[0].mxu0 %v1162
  %v1483 = vpop.f32.mrb[0].mxu0
  %v1484 = vadd.f32 0.0, %v1483
  %v1485 = vpop.f32.mrb[0].mxu0
  %1486 = vmatprep.mubr.f32.mxu0 0.0
  %1487 = vmatmul.mubr.f32.gmra.mrb[0].mxu0 %v1164
  %v1488 = vpop.f32.mrb[0].mxu0
  %v1489 = vadd.f32 0.0, %v1488
  %v1490 = vpop.f32.mrb[0].mxu0
  %1491 = vmatprep.mubr.f32.mxu0 0.0
  %1492 = vmatmul.mubr.f32.gmra.mrb[0].mxu0 %v1166
  %v1493 = vpop.f32.mrb[0].mxu0
  %v1494 = vadd.f32 0.0, %v1493
  %v1495 = vpop.f32.mrb[0].mxu0
  %1496 = vmatprep.mubr.f32.mxu0 0.0
  %1497 = vmatmul.mubr.f32.gmra.mrb[0].mxu0 %v1168
  %v1498 = vpop.f32.mrb[0].mxu0
  %v1499 = vadd.f32 0.0, %v1498
  %v1500 = vpop.f32.mrb[0].mxu0
  %1501 = vmatprep.mubr.f32.mxu0 0.0
  %1502 = vmatmul.mubr.f32.gmra.mrb[0].mxu0 %v1170
  %v1503 = vpop.f32.mrb[0].mxu0
  %v1504 = vadd.f32 0.0, %v1503
  %v1505 = vpop.f32.mrb[0].mxu0
  %1506 = vmatprep.mubr.f32.mxu0 0.0
  %1507 = vmatmul.mubr.f32.gmra.mrb[0].mxu0 %v1172
  %v1508 = vpop.f32.mrb[0].mxu0
  %v1509 = vadd.f32 0.0, %v1508
  %v1510 = vpop.f32.mrb[0].mxu0
  %1511 = vmatprep.mubr.f32.mxu0 0.0
  %1512 = vmatmul.mubr.f32.gmra.mrb[0].mxu0 %v1174
  %v1513 = vpop.f32.mrb[0].mxu0
  %v1514 = vadd.f32 0.0, %v1513
  %v1515 = vpop.f32.mrb[0].mxu0
  %1516 = vmatprep.mubr.f32.mxu0 0.0
  %1517 = vmatmul.mubr.f32.gmra.mrb[0].mxu0 %v1176
  %v1518 = vpop.f32.mrb[0].mxu0
  %v1519 = vadd.f32 0.0, %v1518
  %v1520 = vpop.f32.mrb[0].mxu0
  %1521 = vmatprep.mubr.f32.mxu0 0.0
  %1522 = vmatmul.mubr.f32.gmra.mrb[0].mxu0 %v1178
  %v1523 = vpop.f32.mrb[0].mxu0
  %v1524 = vadd.f32 0.0, %v1523
  %v1525 = vpop.f32.mrb[0].mxu0
  %1526 = vmatprep.mubr.f32.mxu0 0.0
  %1527 = vmatmul.mubr.f32.gmra.mrb[0].mxu0 %v1180
  %v1528 = vpop.f32.mrb[0].mxu0
  %v1529 = vadd.f32 0.0, %v1528
  %v1530 = vpop.f32.mrb[0].mxu0
  %1531 = vmatprep.mubr.f32.mxu0 0.0
  %1532 = vmatmul.mubr.f32.gmra.mrb[0].mxu0 %v1182
  %v1533 = vpop.f32.mrb[0].mxu0
  %v1534 = vadd.f32 0.0, %v1533
  %v1535 = vpop.f32.mrb[0].mxu0
  %1536 = vmatprep.mubr.f32.mxu0 0.0
  %1537 = vmatmul.mubr.f32.gmra.mrb[0].mxu0 %v1184
  %v1538 = vpop.f32.mrb[0].mxu0
  %v1539 = vadd.f32 0.0, %v1538
  %v1540 = vpop.f32.mrb[0].mxu0
  %1541 = vmatprep.mubr.f32.mxu0 0.0
  %1542 = vmatmul.mubr.f32.gmra.mrb[0].mxu0 %v1186
  %v1543 = vpop.f32.mrb[0].mxu0
  %v1544 = vadd.f32 0.0, %v1543
  %v1545 = vpop.f32.mrb[0].mxu0
  %1546 = vmatprep.mubr.f32.mxu0 0.0
  %1547 = vmatmul.mubr.f32.gmra.mrb[0].mxu0 %v1188
  %v1548 = vpop.f32.mrb[0].mxu0
  %v1549 = vadd.f32 0.0, %v1548
  %v1550 = vpop.f32.mrb[0].mxu0
  %1551 = vmatprep.mubr.f32.mxu0 0.0
  %1552 = vmatmul.mubr.f32.gmra.mrb[0].mxu0 %v1190
  %v1553 = vpop.f32.mrb[0].mxu0
  %v1554 = vadd.f32 0.0, %v1553
  %v1555 = vpop.f32.mrb[0].mxu0
  %1556 = vmatprep.mubr.f32.mxu0 0.0
  %1557 = vmatmul.mubr.f32.gmra.mrb[0].mxu0 %v1192
  %v1558 = vpop.f32.mrb[0].mxu0
  %v1559 = vadd.f32 0.0, %v1558
  %v1560 = vpop.f32.mrb[0].mxu0
  %1561 = vmatprep.mubr.f32.mxu0 0.0
  %1562 = vmatmul.mubr.f32.gmra.mrb[0].mxu0 %v1194
  %v1563 = vpop.f32.mrb[0].mxu0
  %v1564 = vadd.f32 0.0, %v1563
  %v1565 = vpop.f32.mrb[0].mxu0
  %1566 = vmatprep.mubr.f32.mxu0 0.0
  %1567 = vmatmul.mubr.f32.gmra.mrb[0].mxu0 %v1196
  %v1568 = vpop.f32.mrb[0].mxu0
  %v1569 = vadd.f32 0.0, %v1568
  %v1570 = vpop.f32.mrb[0].mxu0
  %1571 = vmatprep.mubr.f32.mxu0 0.0
  %1572 = vmatmul.mubr.f32.gmra.mrb[0].mxu0 %v1198
  %v1573 = vpop.f32.mrb[0].mxu0
  %v1574 = vadd.f32 0.0, %v1573
  %v1575 = vpop.f32.mrb[0].mxu0
  %1576 = vmatprep.mubr.f32.mxu0 0.0
  %1577 = vmatmul.mubr.f32.gmra.mrb[0].mxu0 %v1200
  %v1578 = vpop.f32.mrb[0].mxu0
  %v1579 = vadd.f32 0.0, %v1578
  %v1580 = vpop.f32.mrb[0].mxu0
  %1581 = vmatprep.mubr.f32.mxu0 0.0
  %1582 = vmatmul.mubr.f32.gmra.mrb[0].mxu0 %v1202
  %v1583 = vpop.f32.mrb[0].mxu0
  %v1584 = vadd.f32 0.0, %v1583
  %v1585 = vpop.f32.mrb[0].mxu0
  %1586 = vmatprep.mubr.f32.mxu0 0.0
  %1587 = vmatmul.mubr.f32.gmra.mrb[0].mxu0 %v1204
  %v1588 = vpop.f32.mrb[0].mxu0
  %v1589 = vadd.f32 0.0, %v1588
  %v1590 = vpop.f32.mrb[0].mxu0
  %1591 = vmatprep.mubr.f32.mxu0 0.0
  %1592 = vmatmul.mubr.f32.gmra.mrb[0].mxu0 %v1206
  %v1593 = vpop.f32.mrb[0].mxu0
  %v1594 = vadd.f32 0.0, %v1593
  %v1595 = vpop.f32.mrb[0].mxu0
  %1596 = vdwg.mxu0
  %v1597 = vsel %vm1079, %v714, 0
  %v1599 = vsel %vm1079, %v715, 0
  %v1601 = vsel %vm1079, %v717, 0
  %v1603 = vsel %vm1079, %v718, 0
  %v1605 = vsel %vm1079, %v720, 0
  %v1607 = vsel %vm1079, %v721, 0
  %v1609 = vsel %vm1079, %v723, 0
  %v1611 = vsel %vm1079, %v724, 0
  %v1613 = vsel %vm1079, %v726, 0
  %v1615 = vsel %vm1079, %v727, 0
  %v1617 = vsel %vm1079, %v729, 0
  %v1619 = vsel %vm1079, %v730, 0
  %v1621 = vsel %vm1079, %v732, 0
  %v1623 = vsel %vm1079, %v733, 0
  %v1625 = vsel %vm1079, %v735, 0
  %v1627 = vsel %vm1079, %v736, 0
  %v1629 = vsel %vm1079, %v738, 0
  %v1631 = vsel %vm1079, %v739, 0
  %v1633 = vsel %vm1079, %v741, 0
  %v1635 = vsel %vm1079, %v742, 0
  %v1637 = vsel %vm1079, %v744, 0
  %v1639 = vsel %vm1079, %v745, 0
  %v1641 = vsel %vm1079, %v747, 0
  %v1643 = vsel %vm1079, %v748, 0
  %v1645 = vsel %vm1079, %v750, 0
  %v1647 = vsel %vm1079, %v751, 0
  %v1649 = vsel %vm1079, %v753, 0
  %v1651 = vsel %vm1079, %v754, 0
  %v1653 = vsel %vm1079, %v756, 0
  %v1655 = vsel %vm1079, %v757, 0
  %v1657 = vsel %vm1079, %v759, 0
  %v1659 = vsel %vm1079, %v760, 0
  %v1661 = vsel %vm1079, %v768, 0
  %v1663 = vsel %vm1079, %v769, 0
  %v1665 = vsel %vm1079, %v771, 0
  %v1667 = vsel %vm1079, %v772, 0
  %v1669 = vsel %vm1079, %v774, 0
  %v1671 = vsel %vm1079, %v775, 0
  %v1673 = vsel %vm1079, %v777, 0
  %v1675 = vsel %vm1079, %v778, 0
  %v1677 = vsel %vm1079, %v780, 0
  %v1679 = vsel %vm1079, %v781, 0
  %v1681 = vsel %vm1079, %v783, 0
  %v1683 = vsel %vm1079, %v784, 0
  %v1685 = vsel %vm1079, %v786, 0
  %v1687 = vsel %vm1079, %v787, 0
  %v1689 = vsel %vm1079, %v789, 0
  %v1691 = vsel %vm1079, %v790, 0
  %v1693 = vsel %vm1079, %v792, 0
  %v1695 = vsel %vm1079, %v793, 0
  %v1697 = vsel %vm1079, %v795, 0
  %v1699 = vsel %vm1079, %v796, 0
  %v1701 = vsel %vm1079, %v798, 0
  %v1703 = vsel %vm1079, %v799, 0
  %v1705 = vsel %vm1079, %v801, 0
  %v1707 = vsel %vm1079, %v802, 0
  %v1709 = vsel %vm1079, %v804, 0
  %v1711 = vsel %vm1079, %v805, 0
  %v1713 = vsel %vm1079, %v807, 0
  %v1715 = vsel %vm1079, %v808, 0
  %v1717 = vsel %vm1079, %v810, 0
  %v1719 = vsel %vm1079, %v811, 0
  %v1721 = vsel %vm1079, %v813, 0
  %v1723 = vsel %vm1079, %v814, 0
  %v1726 = vsel %vm1208, %v128, 0
  %1728 = vmatprep.subr.mxu0 0.0
  %1729 = vmatpush1.msra.mxu0 %v1726
  %1730 = vmatprep.subr.mxu0 0.0
  %1731 = vmatpush1.msra.mxu0 0.0
  %1732 = vmatprep.subr.mxu0 0.0
  %1733 = vmatpush1.msra.mxu0 0.0
  %1734 = vmatprep.subr.mxu0 0.0
  %1735 = vmatpush1.msra.mxu0 0.0
  %1736 = vmatprep.subr.mxu0 0.0
  %1737 = vmatpush1.msra.mxu0 0.0
  %1738 = vmatprep.subr.mxu0 0.0
  %1739 = vmatpush1.msra.mxu0 0.0
  %1740 = vmatprep.subr.mxu0 0.0
  %1741 = vmatpush1.msra.mxu0 0.0
  %1742 = vmatprep.subr.mxu0 0.0
  %1743 = vmatpush1.msra.mxu0 0.0
  %1744 = vmatprep.subr.mxu0 0.0
  %1745 = vmatpush1.msra.mxu0 0.0
  %1746 = vmatprep.subr.mxu0 0.0
  %1747 = vmatpush1.msra.mxu0 0.0
  %1748 = vmatprep.subr.mxu0 0.0
  %1749 = vmatpush1.msra.mxu0 0.0
  %1750 = vmatprep.subr.mxu0 0.0
  %1751 = vmatpush1.msra.mxu0 0.0
  %1752 = vmatprep.subr.mxu0 0.0
  %1753 = vmatpush1.msra.mxu0 0.0
  %1754 = vmatprep.subr.mxu0 0.0
  %1755 = vmatpush1.msra.mxu0 0.0
  %1756 = vmatprep.subr.mxu0 0.0
  %1757 = vmatpush1.msra.mxu0 0.0
  %1758 = vmatprep.subr.mxu0 0.0
  %1759 = vmatpush1.msra.mxu0 0.0
  %1760 = vmatprep.subr.mxu0 0.0
  %1761 = vmatpush1.msra.mxu0 0.0
  %1762 = vmatprep.subr.mxu0 0.0
  %1763 = vmatpush1.msra.mxu0 0.0
  %1764 = vmatprep.subr.mxu0 0.0
  %1765 = vmatpush1.msra.mxu0 0.0
  %1766 = vmatprep.subr.mxu0 0.0
  %1767 = vmatpush1.msra.mxu0 0.0
  %1768 = vmatprep.subr.mxu0 0.0
  %1769 = vmatpush1.msra.mxu0 0.0
  %1770 = vmatprep.subr.mxu0 0.0
  %1771 = vmatpush1.msra.mxu0 0.0
  %1772 = vmatprep.subr.mxu0 0.0
  %1773 = vmatpush1.msra.mxu0 0.0
  %1774 = vmatprep.subr.mxu0 0.0
  %1775 = vmatpush1.msra.mxu0 0.0
  %1776 = vmatprep.subr.mxu0 0.0
  %1777 = vmatpush1.msra.mxu0 0.0
  %1778 = vmatprep.subr.mxu0 0.0
  %1779 = vmatpush1.msra.mxu0 0.0
  %1780 = vmatprep.subr.mxu0 0.0
  %1781 = vmatpush1.msra.mxu0 0.0
  %1782 = vmatprep.subr.mxu0 0.0
  %1783 = vmatpush1.msra.mxu0 0.0
  %1784 = vmatprep.subr.mxu0 0.0
  %1785 = vmatpush1.msra.mxu0 0.0
  %1786 = vmatprep.subr.mxu0 0.0
  %1787 = vmatpush1.msra.mxu0 0.0
  %1788 = vmatprep.subr.mxu0 0.0
  %1789 = vmatpush1.msra.mxu0 0.0
  %1790 = vmatprep.subr.mxu0 0.0
  %1791 = vmatpush1.msra.mxu0 0.0
  %1792 = vmatprep.mubr.f32.mxu0 0.0
  %1793 = vmatmul.mubr.f32.gmra.mrb[0].mxu0 %v1597
  %v1794 = vpop.f32.mrb[0].mxu0
  %v1795 = vadd.f32 %v1279, %v1794
  %v1796 = vpop.f32.mrb[0].mxu0
  %1797 = vmatprep.mubr.f32.mxu0 0.0
  %1798 = vmatmul.mubr.f32.gmra.mrb[0].mxu0 %v1599
  %v1799 = vpop.f32.mrb[0].mxu0
  %v1800 = vadd.f32 %v1284, %v1799
  %v1801 = vpop.f32.mrb[0].mxu0
  %1802 = vmatprep.mubr.f32.mxu0 0.0
  %1803 = vmatmul.mubr.f32.gmra.mrb[0].mxu0 %v1601
  %v1804 = vpop.f32.mrb[0].mxu0
  %v1805 = vadd.f32 %v1289, %v1804
  %v1806 = vpop.f32.mrb[0].mxu0
  %1807 = vmatprep.mubr.f32.mxu0 0.0
  %1808 = vmatmul.mubr.f32.gmra.mrb[0].mxu0 %v1603
  %v1809 = vpop.f32.mrb[0].mxu0
  %v1810 = vadd.f32 %v1294, %v1809
  %v1811 = vpop.f32.mrb[0].mxu0
  %1812 = vmatprep.mubr.f32.mxu0 0.0
  %1813 = vmatmul.mubr.f32.gmra.mrb[0].mxu0 %v1605
  %v1814 = vpop.f32.mrb[0].mxu0
  %v1815 = vadd.f32 %v1299, %v1814
  %v1816 = vpop.f32.mrb[0].mxu0
  %1817 = vmatprep.mubr.f32.mxu0 0.0
  %1818 = vmatmul.mubr.f32.gmra.mrb[0].mxu0 %v1607
  %v1819 = vpop.f32.mrb[0].mxu0
  %v1820 = vadd.f32 %v1304, %v1819
  %v1821 = vpop.f32.mrb[0].mxu0
  %1822 = vmatprep.mubr.f32.mxu0 0.0
  %1823 = vmatmul.mubr.f32.gmra.mrb[0].mxu0 %v1609
  %v1824 = vpop.f32.mrb[0].mxu0
  %v1825 = vadd.f32 %v1309, %v1824
  %v1826 = vpop.f32.mrb[0].mxu0
  %1827 = vmatprep.mubr.f32.mxu0 0.0
  %1828 = vmatmul.mubr.f32.gmra.mrb[0].mxu0 %v1611
  %v1829 = vpop.f32.mrb[0].mxu0
  %v1830 = vadd.f32 %v1314, %v1829
  %v1831 = vpop.f32.mrb[0].mxu0
  %1832 = vmatprep.mubr.f32.mxu0 0.0
  %1833 = vmatmul.mubr.f32.gmra.mrb[0].mxu0 %v1613
  %v1834 = vpop.f32.mrb[0].mxu0
  %v1835 = vadd.f32 %v1319, %v1834
  %v1836 = vpop.f32.mrb[0].mxu0
  %1837 = vmatprep.mubr.f32.mxu0 0.0
  %1838 = vmatmul.mubr.f32.gmra.mrb[0].mxu0 %v1615
  %v1839 = vpop.f32.mrb[0].mxu0
  %v1840 = vadd.f32 %v1324, %v1839
  %v1841 = vpop.f32.mrb[0].mxu0
  %1842 = vmatprep.mubr.f32.mxu0 0.0
  %1843 = vmatmul.mubr.f32.gmra.mrb[0].mxu0 %v1617
  %v1844 = vpop.f32.mrb[0].mxu0
  %v1845 = vadd.f32 %v1329, %v1844
  %v1846 = vpop.f32.mrb[0].mxu0
  %1847 = vmatprep.mubr.f32.mxu0 0.0
  %1848 = vmatmul.mubr.f32.gmra.mrb[0].mxu0 %v1619
  %v1849 = vpop.f32.mrb[0].mxu0
  %v1850 = vadd.f32 %v1334, %v1849
  %v1851 = vpop.f32.mrb[0].mxu0
  %1852 = vmatprep.mubr.f32.mxu0 0.0
  %1853 = vmatmul.mubr.f32.gmra.mrb[0].mxu0 %v1621
  %v1854 = vpop.f32.mrb[0].mxu0
  %v1855 = vadd.f32 %v1339, %v1854
  %v1856 = vpop.f32.mrb[0].mxu0
  %1857 = vmatprep.mubr.f32.mxu0 0.0
  %1858 = vmatmul.mubr.f32.gmra.mrb[0].mxu0 %v1623
  %v1859 = vpop.f32.mrb[0].mxu0
  %v1860 = vadd.f32 %v1344, %v1859
  %v1861 = vpop.f32.mrb[0].mxu0
  %1862 = vmatprep.mubr.f32.mxu0 0.0
  %1863 = vmatmul.mubr.f32.gmra.mrb[0].mxu0 %v1625
  %v1864 = vpop.f32.mrb[0].mxu0
  %v1865 = vadd.f32 %v1349, %v1864
  %v1866 = vpop.f32.mrb[0].mxu0
  %1867 = vmatprep.mubr.f32.mxu0 0.0
  %1868 = vmatmul.mubr.f32.gmra.mrb[0].mxu0 %v1627
  %v1869 = vpop.f32.mrb[0].mxu0
  %v1870 = vadd.f32 %v1354, %v1869
  %v1871 = vpop.f32.mrb[0].mxu0
  %1872 = vmatprep.mubr.f32.mxu0 0.0
  %1873 = vmatmul.mubr.f32.gmra.mrb[0].mxu0 %v1629
  %v1874 = vpop.f32.mrb[0].mxu0
  %v1875 = vadd.f32 %v1359, %v1874
  %v1876 = vpop.f32.mrb[0].mxu0
  %1877 = vmatprep.mubr.f32.mxu0 0.0
  %1878 = vmatmul.mubr.f32.gmra.mrb[0].mxu0 %v1631
  %v1879 = vpop.f32.mrb[0].mxu0
  %v1880 = vadd.f32 %v1364, %v1879
  %v1881 = vpop.f32.mrb[0].mxu0
  %1882 = vmatprep.mubr.f32.mxu0 0.0
  %1883 = vmatmul.mubr.f32.gmra.mrb[0].mxu0 %v1633
  %v1884 = vpop.f32.mrb[0].mxu0
  %v1885 = vadd.f32 %v1369, %v1884
  %v1886 = vpop.f32.mrb[0].mxu0
  %1887 = vmatprep.mubr.f32.mxu0 0.0
  %1888 = vmatmul.mubr.f32.gmra.mrb[0].mxu0 %v1635
  %v1889 = vpop.f32.mrb[0].mxu0
  %v1890 = vadd.f32 %v1374, %v1889
  %v1891 = vpop.f32.mrb[0].mxu0
  %1892 = vmatprep.mubr.f32.mxu0 0.0
  %1893 = vmatmul.mubr.f32.gmra.mrb[0].mxu0 %v1637
  %v1894 = vpop.f32.mrb[0].mxu0
  %v1895 = vadd.f32 %v1379, %v1894
  %v1896 = vpop.f32.mrb[0].mxu0
  %1897 = vmatprep.mubr.f32.mxu0 0.0
  %1898 = vmatmul.mubr.f32.gmra.mrb[0].mxu0 %v1639
  %v1899 = vpop.f32.mrb[0].mxu0
  %v1900 = vadd.f32 %v1384, %v1899
  %v1901 = vpop.f32.mrb[0].mxu0
  %1902 = vmatprep.mubr.f32.mxu0 0.0
  %1903 = vmatmul.mubr.f32.gmra.mrb[0].mxu0 %v1641
  %v1904 = vpop.f32.mrb[0].mxu0
  %v1905 = vadd.f32 %v1389, %v1904
  %v1906 = vpop.f32.mrb[0].mxu0
  %1907 = vmatprep.mubr.f32.mxu0 0.0
  %1908 = vmatmul.mubr.f32.gmra.mrb[0].mxu0 %v1643
  %v1909 = vpop.f32.mrb[0].mxu0
  %v1910 = vadd.f32 %v1394, %v1909
  %v1911 = vpop.f32.mrb[0].mxu0
  %1912 = vmatprep.mubr.f32.mxu0 0.0
  %1913 = vmatmul.mubr.f32.gmra.mrb[0].mxu0 %v1645
  %v1914 = vpop.f32.mrb[0].mxu0
  %v1915 = vadd.f32 %v1399, %v1914
  %v1916 = vpop.f32.mrb[0].mxu0
  %1917 = vmatprep.mubr.f32.mxu0 0.0
  %1918 = vmatmul.mubr.f32.gmra.mrb[0].mxu0 %v1647
  %v1919 = vpop.f32.mrb[0].mxu0
  %v1920 = vadd.f32 %v1404, %v1919
  %v1921 = vpop.f32.mrb[0].mxu0
  %1922 = vmatprep.mubr.f32.mxu0 0.0
  %1923 = vmatmul.mubr.f32.gmra.mrb[0].mxu0 %v1649
  %v1924 = vpop.f32.mrb[0].mxu0
  %v1925 = vadd.f32 %v1409, %v1924
  %v1926 = vpop.f32.mrb[0].mxu0
  %1927 = vmatprep.mubr.f32.mxu0 0.0
  %1928 = vmatmul.mubr.f32.gmra.mrb[0].mxu0 %v1651
  %v1929 = vpop.f32.mrb[0].mxu0
  %v1930 = vadd.f32 %v1414, %v1929
  %v1931 = vpop.f32.mrb[0].mxu0
  %1932 = vmatprep.mubr.f32.mxu0 0.0
  %1933 = vmatmul.mubr.f32.gmra.mrb[0].mxu0 %v1653
  %v1934 = vpop.f32.mrb[0].mxu0
  %v1935 = vadd.f32 %v1419, %v1934
  %v1936 = vpop.f32.mrb[0].mxu0
  %1937 = vmatprep.mubr.f32.mxu0 0.0
  %1938 = vmatmul.mubr.f32.gmra.mrb[0].mxu0 %v1655
  %v1939 = vpop.f32.mrb[0].mxu0
  %v1940 = vadd.f32 %v1424, %v1939
  %v1941 = vpop.f32.mrb[0].mxu0
  %1942 = vmatprep.mubr.f32.mxu0 0.0
  %1943 = vmatmul.mubr.f32.gmra.mrb[0].mxu0 %v1657
  %v1944 = vpop.f32.mrb[0].mxu0
  %v1945 = vadd.f32 %v1429, %v1944
  %v1946 = vpop.f32.mrb[0].mxu0
  %1947 = vmatprep.mubr.f32.mxu0 0.0
  %1948 = vmatmul.mubr.f32.gmra.mrb[0].mxu0 %v1659
  %v1949 = vpop.f32.mrb[0].mxu0
  %v1950 = vadd.f32 %v1434, %v1949
  %v1951 = vpop.f32.mrb[0].mxu0
  %1952 = vmatprep.mubr.f32.mxu0 0.0
  %1953 = vmatmul.mubr.f32.gmra.mrb[0].mxu0 %v1661
  %v1954 = vpop.f32.mrb[0].mxu0
  %v1955 = vadd.f32 %v1439, %v1954
  %v1956 = vpop.f32.mrb[0].mxu0
  %1957 = vmatprep.mubr.f32.mxu0 0.0
  %1958 = vmatmul.mubr.f32.gmra.mrb[0].mxu0 %v1663
  %v1959 = vpop.f32.mrb[0].mxu0
  %v1960 = vadd.f32 %v1444, %v1959
  %v1961 = vpop.f32.mrb[0].mxu0
  %1962 = vmatprep.mubr.f32.mxu0 0.0
  %1963 = vmatmul.mubr.f32.gmra.mrb[0].mxu0 %v1665
  %v1964 = vpop.f32.mrb[0].mxu0
  %v1965 = vadd.f32 %v1449, %v1964
  %v1966 = vpop.f32.mrb[0].mxu0
  %1967 = vmatprep.mubr.f32.mxu0 0.0
  %1968 = vmatmul.mubr.f32.gmra.mrb[0].mxu0 %v1667
  %v1969 = vpop.f32.mrb[0].mxu0
  %v1970 = vadd.f32 %v1454, %v1969
  %v1971 = vpop.f32.mrb[0].mxu0
  %1972 = vmatprep.mubr.f32.mxu0 0.0
  %1973 = vmatmul.mubr.f32.gmra.mrb[0].mxu0 %v1669
  %v1974 = vpop.f32.mrb[0].mxu0
  %v1975 = vadd.f32 %v1459, %v1974
  %v1976 = vpop.f32.mrb[0].mxu0
  %1977 = vmatprep.mubr.f32.mxu0 0.0
  %1978 = vmatmul.mubr.f32.gmra.mrb[0].mxu0 %v1671
  %v1979 = vpop.f32.mrb[0].mxu0
  %v1980 = vadd.f32 %v1464, %v1979
  %v1981 = vpop.f32.mrb[0].mxu0
  %1982 = vmatprep.mubr.f32.mxu0 0.0
  %1983 = vmatmul.mubr.f32.gmra.mrb[0].mxu0 %v1673
  %v1984 = vpop.f32.mrb[0].mxu0
  %v1985 = vadd.f32 %v1469, %v1984
  %v1986 = vpop.f32.mrb[0].mxu0
  %1987 = vmatprep.mubr.f32.mxu0 0.0
  %1988 = vmatmul.mubr.f32.gmra.mrb[0].mxu0 %v1675
  %v1989 = vpop.f32.mrb[0].mxu0
  %v1990 = vadd.f32 %v1474, %v1989
  %v1991 = vpop.f32.mrb[0].mxu0
  %1992 = vmatprep.mubr.f32.mxu0 0.0
  %1993 = vmatmul.mubr.f32.gmra.mrb[0].mxu0 %v1677
  %v1994 = vpop.f32.mrb[0].mxu0
  %v1995 = vadd.f32 %v1479, %v1994
  %v1996 = vpop.f32.mrb[0].mxu0
  %1997 = vmatprep.mubr.f32.mxu0 0.0
  %1998 = vmatmul.mubr.f32.gmra.mrb[0].mxu0 %v1679
  %v1999 = vpop.f32.mrb[0].mxu0
  %v2000 = vadd.f32 %v1484, %v1999
  %v2001 = vpop.f32.mrb[0].mxu0
  %2002 = vmatprep.mubr.f32.mxu0 0.0
  %2003 = vmatmul.mubr.f32.gmra.mrb[0].mxu0 %v1681
  %v2004 = vpop.f32.mrb[0].mxu0
  %v2005 = vadd.f32 %v1489, %v2004
  %v2006 = vpop.f32.mrb[0].mxu0
  %2007 = vmatprep.mubr.f32.mxu0 0.0
  %2008 = vmatmul.mubr.f32.gmra.mrb[0].mxu0 %v1683
  %v2009 = vpop.f32.mrb[0].mxu0
  %v2010 = vadd.f32 %v1494, %v2009
  %v2011 = vpop.f32.mrb[0].mxu0
  %2012 = vmatprep.mubr.f32.mxu0 0.0
  %2013 = vmatmul.mubr.f32.gmra.mrb[0].mxu0 %v1685
  %v2014 = vpop.f32.mrb[0].mxu0
  %v2015 = vadd.f32 %v1499, %v2014
  %v2016 = vpop.f32.mrb[0].mxu0
  %2017 = vmatprep.mubr.f32.mxu0 0.0
  %2018 = vmatmul.mubr.f32.gmra.mrb[0].mxu0 %v1687
  %v2019 = vpop.f32.mrb[0].mxu0
  %v2020 = vadd.f32 %v1504, %v2019
  %v2021 = vpop.f32.mrb[0].mxu0
  %2022 = vmatprep.mubr.f32.mxu0 0.0
  %2023 = vmatmul.mubr.f32.gmra.mrb[0].mxu0 %v1689
  %v2024 = vpop.f32.mrb[0].mxu0
  %v2025 = vadd.f32 %v1509, %v2024
  %v2026 = vpop.f32.mrb[0].mxu0
  %2027 = vmatprep.mubr.f32.mxu0 0.0
  %2028 = vmatmul.mubr.f32.gmra.mrb[0].mxu0 %v1691
  %v2029 = vpop.f32.mrb[0].mxu0
  %v2030 = vadd.f32 %v1514, %v2029
  %v2031 = vpop.f32.mrb[0].mxu0
  %2032 = vmatprep.mubr.f32.mxu0 0.0
  %2033 = vmatmul.mubr.f32.gmra.mrb[0].mxu0 %v1693
  %v2034 = vpop.f32.mrb[0].mxu0
  %v2035 = vadd.f32 %v1519, %v2034
  %v2036 = vpop.f32.mrb[0].mxu0
  %2037 = vmatprep.mubr.f32.mxu0 0.0
  %2038 = vmatmul.mubr.f32.gmra.mrb[0].mxu0 %v1695
  %v2039 = vpop.f32.mrb[0].mxu0
  %v2040 = vadd.f32 %v1524, %v2039
  %v2041 = vpop.f32.mrb[0].mxu0
  %2042 = vmatprep.mubr.f32.mxu0 0.0
  %2043 = vmatmul.mubr.f32.gmra.mrb[0].mxu0 %v1697
  %v2044 = vpop.f32.mrb[0].mxu0
  %v2045 = vadd.f32 %v1529, %v2044
  %v2046 = vpop.f32.mrb[0].mxu0
  %2047 = vmatprep.mubr.f32.mxu0 0.0
  %2048 = vmatmul.mubr.f32.gmra.mrb[0].mxu0 %v1699
  %v2049 = vpop.f32.mrb[0].mxu0
  %v2050 = vadd.f32 %v1534, %v2049
  %v2051 = vpop.f32.mrb[0].mxu0
  %2052 = vmatprep.mubr.f32.mxu0 0.0
  %2053 = vmatmul.mubr.f32.gmra.mrb[0].mxu0 %v1701
  %v2054 = vpop.f32.mrb[0].mxu0
  %v2055 = vadd.f32 %v1539, %v2054
  %v2056 = vpop.f32.mrb[0].mxu0
  %2057 = vmatprep.mubr.f32.mxu0 0.0
  %2058 = vmatmul.mubr.f32.gmra.mrb[0].mxu0 %v1703
  %v2059 = vpop.f32.mrb[0].mxu0
  %v2060 = vadd.f32 %v1544, %v2059
  %v2061 = vpop.f32.mrb[0].mxu0
  %2062 = vmatprep.mubr.f32.mxu0 0.0
  %2063 = vmatmul.mubr.f32.gmra.mrb[0].mxu0 %v1705
  %v2064 = vpop.f32.mrb[0].mxu0
  %v2065 = vadd.f32 %v1549, %v2064
  %v2066 = vpop.f32.mrb[0].mxu0
  %2067 = vmatprep.mubr.f32.mxu0 0.0
  %2068 = vmatmul.mubr.f32.gmra.mrb[0].mxu0 %v1707
  %v2069 = vpop.f32.mrb[0].mxu0
  %v2070 = vadd.f32 %v1554, %v2069
  %v2071 = vpop.f32.mrb[0].mxu0
  %2072 = vmatprep.mubr.f32.mxu0 0.0
  %2073 = vmatmul.mubr.f32.gmra.mrb[0].mxu0 %v1709
  %v2074 = vpop.f32.mrb[0].mxu0
  %v2075 = vadd.f32 %v1559, %v2074
  %v2076 = vpop.f32.mrb[0].mxu0
  %2077 = vmatprep.mubr.f32.mxu0 0.0
  %2078 = vmatmul.mubr.f32.gmra.mrb[0].mxu0 %v1711
  %v2079 = vpop.f32.mrb[0].mxu0
  %v2080 = vadd.f32 %v1564, %v2079
  %v2081 = vpop.f32.mrb[0].mxu0
  %2082 = vmatprep.mubr.f32.mxu0 0.0
  %2083 = vmatmul.mubr.f32.gmra.mrb[0].mxu0 %v1713
  %v2084 = vpop.f32.mrb[0].mxu0
  %v2085 = vadd.f32 %v1569, %v2084
  %v2086 = vpop.f32.mrb[0].mxu0
  %2087 = vmatprep.mubr.f32.mxu0 0.0
  %2088 = vmatmul.mubr.f32.gmra.mrb[0].mxu0 %v1715
  %v2089 = vpop.f32.mrb[0].mxu0
  %v2090 = vadd.f32 %v1574, %v2089
  %v2091 = vpop.f32.mrb[0].mxu0
  %2092 = vmatprep.mubr.f32.mxu0 0.0
  %2093 = vmatmul.mubr.f32.gmra.mrb[0].mxu0 %v1717
  %v2094 = vpop.f32.mrb[0].mxu0
  %v2095 = vadd.f32 %v1579, %v2094
  %v2096 = vpop.f32.mrb[0].mxu0
  %2097 = vmatprep.mubr.f32.mxu0 0.0
  %2098 = vmatmul.mubr.f32.gmra.mrb[0].mxu0 %v1719
  %v2099 = vpop.f32.mrb[0].mxu0
  %v2100 = vadd.f32 %v1584, %v2099
  %v2101 = vpop.f32.mrb[0].mxu0
  %2102 = vmatprep.mubr.f32.mxu0 0.0
  %2103 = vmatmul.mubr.f32.gmra.mrb[0].mxu0 %v1721
  %v2104 = vpop.f32.mrb[0].mxu0
  %v2105 = vadd.f32 %v1589, %v2104
  %v2106 = vpop.f32.mrb[0].mxu0
  %2107 = vmatprep.mubr.f32.mxu0 0.0
  %2108 = vmatmul.mubr.f32.gmra.mrb[0].mxu0 %v1723
  %v2109 = vpop.f32.mrb[0].mxu0
  %v2110 = vadd.f32 %v1594, %v2109
  %v2111 = vpop.f32.mrb[0].mxu0
  %2112 = vdwg.mxu0
  %vm2113 = vcmask 1045504
  %v2114 = vrot.slane %v714, 2
  %v2115 = vrot.slane %v715, 2
  %v2116 = vsel %vm2113, %v2114, %v2115
  %v2117 = vrot.slane %v716, 2
  %v2118 = vsel %vm2113, %v2115, %v2117
  %v2119 = vrot.slane %v717, 2
  %v2120 = vrot.slane %v718, 2
  %v2121 = vsel %vm2113, %v2119, %v2120
  %v2122 = vrot.slane %v719, 2
  %v2123 = vsel %vm2113, %v2120, %v2122
  %v2124 = vrot.slane %v720, 2
  %v2125 = vrot.slane %v721, 2
  %v2126 = vsel %vm2113, %v2124, %v2125
  %v2127 = vrot.slane %v722, 2
  %v2128 = vsel %vm2113, %v2125, %v2127
  %v2129 = vrot.slane %v723, 2
  %v2130 = vrot.slane %v724, 2
  %v2131 = vsel %vm2113, %v2129, %v2130
  %v2132 = vrot.slane %v725, 2
  %v2133 = vsel %vm2113, %v2130, %v2132
  %v2134 = vrot.slane %v726, 2
  %v2135 = vrot.slane %v727, 2
  %v2136 = vsel %vm2113, %v2134, %v2135
  %v2137 = vrot.slane %v728, 2
  %v2138 = vsel %vm2113, %v2135, %v2137
  %v2139 = vrot.slane %v729, 2
  %v2140 = vrot.slane %v730, 2
  %v2141 = vsel %vm2113, %v2139, %v2140
  %v2142 = vrot.slane %v731, 2
  %v2143 = vsel %vm2113, %v2140, %v2142
  %v2144 = vrot.slane %v732, 2
  %v2145 = vrot.slane %v733, 2
  %v2146 = vsel %vm2113, %v2144, %v2145
  %v2147 = vrot.slane %v734, 2
  %v2148 = vsel %vm2113, %v2145, %v2147
  %v2149 = vrot.slane %v735, 2
  %v2150 = vrot.slane %v736, 2
  %v2151 = vsel %vm2113, %v2149, %v2150
  %v2152 = vrot.slane %v737, 2
  %v2153 = vsel %vm2113, %v2150, %v2152
  %v2154 = vrot.slane %v738, 2
  %v2155 = vrot.slane %v739, 2
  %v2156 = vsel %vm2113, %v2154, %v2155
  %v2157 = vrot.slane %v740, 2
  %v2158 = vsel %vm2113, %v2155, %v2157
  %v2159 = vrot.slane %v741, 2
  %v2160 = vrot.slane %v742, 2
  %v2161 = vsel %vm2113, %v2159, %v2160
  %v2162 = vrot.slane %v743, 2
  %v2163 = vsel %vm2113, %v2160, %v2162
  %v2164 = vrot.slane %v744, 2
  %v2165 = vrot.slane %v745, 2
  %v2166 = vsel %vm2113, %v2164, %v2165
  %v2167 = vrot.slane %v746, 2
  %v2168 = vsel %vm2113, %v2165, %v2167
  %v2169 = vrot.slane %v747, 2
  %v2170 = vrot.slane %v748, 2
  %v2171 = vsel %vm2113, %v2169, %v2170
  %v2172 = vrot.slane %v749, 2
  %v2173 = vsel %vm2113, %v2170, %v2172
  %v2174 = vrot.slane %v750, 2
  %v2175 = vrot.slane %v751, 2
  %v2176 = vsel %vm2113, %v2174, %v2175
  %v2177 = vrot.slane %v752, 2
  %v2178 = vsel %vm2113, %v2175, %v2177
  %v2179 = vrot.slane %v753, 2
  %v2180 = vrot.slane %v754, 2
  %v2181 = vsel %vm2113, %v2179, %v2180
  %v2182 = vrot.slane %v755, 2
  %v2183 = vsel %vm2113, %v2180, %v2182
  %v2184 = vrot.slane %v756, 2
  %v2185 = vrot.slane %v757, 2
  %v2186 = vsel %vm2113, %v2184, %v2185
  %v2187 = vrot.slane %v758, 2
  %v2188 = vsel %vm2113, %v2185, %v2187
  %v2189 = vrot.slane %v759, 2
  %v2190 = vrot.slane %v760, 2
  %v2191 = vsel %vm2113, %v2189, %v2190
  %v2192 = vrot.slane %v761, 2
  %v2193 = vsel %vm2113, %v2190, %v2192
  %v2194 = vrot.slane %v768, 2
  %v2195 = vrot.slane %v769, 2
  %v2196 = vsel %vm2113, %v2194, %v2195
  %v2197 = vrot.slane %v770, 2
  %v2198 = vsel %vm2113, %v2195, %v2197
  %v2199 = vrot.slane %v771, 2
  %v2200 = vrot.slane %v772, 2
  %v2201 = vsel %vm2113, %v2199, %v2200
  %v2202 = vrot.slane %v773, 2
  %v2203 = vsel %vm2113, %v2200, %v2202
  %v2204 = vrot.slane %v774, 2
  %v2205 = vrot.slane %v775, 2
  %v2206 = vsel %vm2113, %v2204, %v2205
  %v2207 = vrot.slane %v776, 2
  %v2208 = vsel %vm2113, %v2205, %v2207
  %v2209 = vrot.slane %v777, 2
  %v2210 = vrot.slane %v778, 2
  %v2211 = vsel %vm2113, %v2209, %v2210
  %v2212 = vrot.slane %v779, 2
  %v2213 = vsel %vm2113, %v2210, %v2212
  %v2214 = vrot.slane %v780, 2
  %v2215 = vrot.slane %v781, 2
  %v2216 = vsel %vm2113, %v2214, %v2215
  %v2217 = vrot.slane %v782, 2
  %v2218 = vsel %vm2113, %v2215, %v2217
  %v2219 = vrot.slane %v783, 2
  %v2220 = vrot.slane %v784, 2
  %v2221 = vsel %vm2113, %v2219, %v2220
  %v2222 = vrot.slane %v785, 2
  %v2223 = vsel %vm2113, %v2220, %v2222
  %v2224 = vrot.slane %v786, 2
  %v2225 = vrot.slane %v787, 2
  %v2226 = vsel %vm2113, %v2224, %v2225
  %v2227 = vrot.slane %v788, 2
  %v2228 = vsel %vm2113, %v2225, %v2227
  %v2229 = vrot.slane %v789, 2
  %v2230 = vrot.slane %v790, 2
  %v2231 = vsel %vm2113, %v2229, %v2230
  %v2232 = vrot.slane %v791, 2
  %v2233 = vsel %vm2113, %v2230, %v2232
  %v2234 = vrot.slane %v792, 2
  %v2235 = vrot.slane %v793, 2
  %v2236 = vsel %vm2113, %v2234, %v2235
  %v2237 = vrot.slane %v794, 2
  %v2238 = vsel %vm2113, %v2235, %v2237
  %v2239 = vrot.slane %v795, 2
  %v2240 = vrot.slane %v796, 2
  %v2241 = vsel %vm2113, %v2239, %v2240
  %v2242 = vrot.slane %v797, 2
  %v2243 = vsel %vm2113, %v2240, %v2242
  %v2244 = vrot.slane %v798, 2
  %v2245 = vrot.slane %v799, 2
  %v2246 = vsel %vm2113, %v2244, %v2245
  %v2247 = vrot.slane %v800, 2
  %v2248 = vsel %vm2113, %v2245, %v2247
  %v2249 = vrot.slane %v801, 2
  %v2250 = vrot.slane %v802, 2
  %v2251 = vsel %vm2113, %v2249, %v2250
  %v2252 = vrot.slane %v803, 2
  %v2253 = vsel %vm2113, %v2250, %v2252
  %v2254 = vrot.slane %v804, 2
  %v2255 = vrot.slane %v805, 2
  %v2256 = vsel %vm2113, %v2254, %v2255
  %v2257 = vrot.slane %v806, 2
  %v2258 = vsel %vm2113, %v2255, %v2257
  %v2259 = vrot.slane %v807, 2
  %v2260 = vrot.slane %v808, 2
  %v2261 = vsel %vm2113, %v2259, %v2260
  %v2262 = vrot.slane %v809, 2
  %v2263 = vsel %vm2113, %v2260, %v2262
  %v2264 = vrot.slane %v810, 2
  %v2265 = vrot.slane %v811, 2
  %v2266 = vsel %vm2113, %v2264, %v2265
  %v2267 = vrot.slane %v812, 2
  %v2268 = vsel %vm2113, %v2265, %v2267
  %v2269 = vrot.slane %v813, 2
  %v2270 = vrot.slane %v814, 2
  %v2271 = vsel %vm2113, %v2269, %v2270
  %v2272 = vrot.slane %v815, 2
  %v2273 = vsel %vm2113, %v2270, %v2272
  %v2274 = vsel %vm1079, %v2116, 0
  %v2276 = vsel %vm1079, %v2118, 0
  %v2278 = vsel %vm1079, %v2121, 0
  %v2280 = vsel %vm1079, %v2123, 0
  %v2282 = vsel %vm1079, %v2126, 0
  %v2284 = vsel %vm1079, %v2128, 0
  %v2286 = vsel %vm1079, %v2131, 0
  %v2288 = vsel %vm1079, %v2133, 0
  %v2290 = vsel %vm1079, %v2136, 0
  %v2292 = vsel %vm1079, %v2138, 0
  %v2294 = vsel %vm1079, %v2141, 0
  %v2296 = vsel %vm1079, %v2143, 0
  %v2298 = vsel %vm1079, %v2146, 0
  %v2300 = vsel %vm1079, %v2148, 0
  %v2302 = vsel %vm1079, %v2151, 0
  %v2304 = vsel %vm1079, %v2153, 0
  %v2306 = vsel %vm1079, %v2156, 0
  %v2308 = vsel %vm1079, %v2158, 0
  %v2310 = vsel %vm1079, %v2161, 0
  %v2312 = vsel %vm1079, %v2163, 0
  %v2314 = vsel %vm1079, %v2166, 0
  %v2316 = vsel %vm1079, %v2168, 0
  %v2318 = vsel %vm1079, %v2171, 0
  %v2320 = vsel %vm1079, %v2173, 0
  %v2322 = vsel %vm1079, %v2176, 0
  %v2324 = vsel %vm1079, %v2178, 0
  %v2326 = vsel %vm1079, %v2181, 0
  %v2328 = vsel %vm1079, %v2183, 0
  %v2330 = vsel %vm1079, %v2186, 0
  %v2332 = vsel %vm1079, %v2188, 0
  %v2334 = vsel %vm1079, %v2191, 0
  %v2336 = vsel %vm1079, %v2193, 0
  %v2338 = vsel %vm1079, %v2196, 0
  %v2340 = vsel %vm1079, %v2198, 0
  %v2342 = vsel %vm1079, %v2201, 0
  %v2344 = vsel %vm1079, %v2203, 0
  %v2346 = vsel %vm1079, %v2206, 0
  %v2348 = vsel %vm1079, %v2208, 0
  %v2350 = vsel %vm1079, %v2211, 0
  %v2352 = vsel %vm1079, %v2213, 0
  %v2354 = vsel %vm1079, %v2216, 0
  %v2356 = vsel %vm1079, %v2218, 0
  %v2358 = vsel %vm1079, %v2221, 0
  %v2360 = vsel %vm1079, %v2223, 0
  %v2362 = vsel %vm1079, %v2226, 0
  %v2364 = vsel %vm1079, %v2228, 0
  %v2366 = vsel %vm1079, %v2231, 0
  %v2368 = vsel %vm1079, %v2233, 0
  %v2370 = vsel %vm1079, %v2236, 0
  %v2372 = vsel %vm1079, %v2238, 0
  %v2374 = vsel %vm1079, %v2241, 0
  %v2376 = vsel %vm1079, %v2243, 0
  %v2378 = vsel %vm1079, %v2246, 0
  %v2380 = vsel %vm1079, %v2248, 0
  %v2382 = vsel %vm1079, %v2251, 0
  %v2384 = vsel %vm1079, %v2253, 0
  %v2386 = vsel %vm1079, %v2256, 0
  %v2388 = vsel %vm1079, %v2258, 0
  %v2390 = vsel %vm1079, %v2261, 0
  %v2392 = vsel %vm1079, %v2263, 0
  %v2394 = vsel %vm1079, %v2266, 0
  %v2396 = vsel %vm1079, %v2268, 0
  %v2398 = vsel %vm1079, %v2271, 0
  %v2400 = vsel %vm1079, %v2273, 0
  %v2403 = vsel %vm1208, %v130, 0
  %2405 = vmatprep.subr.mxu0 0.0
  %2406 = vmatpush1.msra.mxu0 %v2403
  %2407 = vmatprep.subr.mxu0 0.0
  %2408 = vmatpush1.msra.mxu0 0.0
  %2409 = vmatprep.subr.mxu0 0.0
  %2410 = vmatpush1.msra.mxu0 0.0
  %2411 = vmatprep.subr.mxu0 0.0
  %2412 = vmatpush1.msra.mxu0 0.0
  %2413 = vmatprep.subr.mxu0 0.0
  %2414 = vmatpush1.msra.mxu0 0.0
  %2415 = vmatprep.subr.mxu0 0.0
  %2416 = vmatpush1.msra.mxu0 0.0
  %2417 = vmatprep.subr.mxu0 0.0
  %2418 = vmatpush1.msra.mxu0 0.0
  %2419 = vmatprep.subr.mxu0 0.0
  %2420 = vmatpush1.msra.mxu0 0.0
  %2421 = vmatprep.subr.mxu0 0.0
  %2422 = vmatpush1.msra.mxu0 0.0
  %2423 = vmatprep.subr.mxu0 0.0
  %2424 = vmatpush1.msra.mxu0 0.0
  %2425 = vmatprep.subr.mxu0 0.0
  %2426 = vmatpush1.msra.mxu0 0.0
  %2427 = vmatprep.subr.mxu0 0.0
  %2428 = vmatpush1.msra.mxu0 0.0
  %2429 = vmatprep.subr.mxu0 0.0
  %2430 = vmatpush1.msra.mxu0 0.0
  %2431 = vmatprep.subr.mxu0 0.0
  %2432 = vmatpush1.msra.mxu0 0.0
  %2433 = vmatprep.subr.mxu0 0.0
  %2434 = vmatpush1.msra.mxu0 0.0
  %2435 = vmatprep.subr.mxu0 0.0
  %2436 = vmatpush1.msra.mxu0 0.0
  %2437 = vmatprep.subr.mxu0 0.0
  %2438 = vmatpush1.msra.mxu0 0.0
  %2439 = vmatprep.subr.mxu0 0.0
  %2440 = vmatpush1.msra.mxu0 0.0
  %2441 = vmatprep.subr.mxu0 0.0
  %2442 = vmatpush1.msra.mxu0 0.0
  %2443 = vmatprep.subr.mxu0 0.0
  %2444 = vmatpush1.msra.mxu0 0.0
  %2445 = vmatprep.subr.mxu0 0.0
  %2446 = vmatpush1.msra.mxu0 0.0
  %2447 = vmatprep.subr.mxu0 0.0
  %2448 = vmatpush1.msra.mxu0 0.0
  %2449 = vmatprep.subr.mxu0 0.0
  %2450 = vmatpush1.msra.mxu0 0.0
  %2451 = vmatprep.subr.mxu0 0.0
  %2452 = vmatpush1.msra.mxu0 0.0
  %2453 = vmatprep.subr.mxu0 0.0
  %2454 = vmatpush1.msra.mxu0 0.0
  %2455 = vmatprep.subr.mxu0 0.0
  %2456 = vmatpush1.msra.mxu0 0.0
  %2457 = vmatprep.subr.mxu0 0.0
  %2458 = vmatpush1.msra.mxu0 0.0
  %2459 = vmatprep.subr.mxu0 0.0
  %2460 = vmatpush1.msra.mxu0 0.0
  %2461 = vmatprep.subr.mxu0 0.0
  %2462 = vmatpush1.msra.mxu0 0.0
  %2463 = vmatprep.subr.mxu0 0.0
  %2464 = vmatpush1.msra.mxu0 0.0
  %2465 = vmatprep.subr.mxu0 0.0
  %2466 = vmatpush1.msra.mxu0 0.0
  %2467 = vmatprep.subr.mxu0 0.0
  %2468 = vmatpush1.msra.mxu0 0.0
  %2469 = vmatprep.mubr.f32.mxu0 0.0
  %2470 = vmatmul.mubr.f32.gmra.mrb[0].mxu0 %v2274
  %v2471 = vpop.f32.mrb[0].mxu0
  %v2472 = vadd.f32 0.0, %v2471
  %v2473 = vpop.f32.mrb[0].mxu0
  %2474 = vmatprep.mubr.f32.mxu0 0.0
  %2475 = vmatmul.mubr.f32.gmra.mrb[0].mxu0 %v2276
  %v2476 = vpop.f32.mrb[0].mxu0
  %v2477 = vadd.f32 0.0, %v2476
  %v2478 = vpop.f32.mrb[0].mxu0
  %2479 = vmatprep.mubr.f32.mxu0 0.0
  %2480 = vmatmul.mubr.f32.gmra.mrb[0].mxu0 %v2278
  %v2481 = vpop.f32.mrb[0].mxu0
  %v2482 = vadd.f32 0.0, %v2481
  %v2483 = vpop.f32.mrb[0].mxu0
  %2484 = vmatprep.mubr.f32.mxu0 0.0
  %2485 = vmatmul.mubr.f32.gmra.mrb[0].mxu0 %v2280
  %v2486 = vpop.f32.mrb[0].mxu0
  %v2487 = vadd.f32 0.0, %v2486
  %v2488 = vpop.f32.mrb[0].mxu0
  %2489 = vmatprep.mubr.f32.mxu0 0.0
  %2490 = vmatmul.mubr.f32.gmra.mrb[0].mxu0 %v2282
  %v2491 = vpop.f32.mrb[0].mxu0
  %v2492 = vadd.f32 0.0, %v2491
  %v2493 = vpop.f32.mrb[0].mxu0
  %2494 = vmatprep.mubr.f32.mxu0 0.0
  %2495 = vmatmul.mubr.f32.gmra.mrb[0].mxu0 %v2284
  %v2496 = vpop.f32.mrb[0].mxu0
  %v2497 = vadd.f32 0.0, %v2496
  %v2498 = vpop.f32.mrb[0].mxu0
  %2499 = vmatprep.mubr.f32.mxu0 0.0
  %2500 = vmatmul.mubr.f32.gmra.mrb[0].mxu0 %v2286
  %v2501 = vpop.f32.mrb[0].mxu0
  %v2502 = vadd.f32 0.0, %v2501
  %v2503 = vpop.f32.mrb[0].mxu0
  %2504 = vmatprep.mubr.f32.mxu0 0.0
  %2505 = vmatmul.mubr.f32.gmra.mrb[0].mxu0 %v2288
  %v2506 = vpop.f32.mrb[0].mxu0
  %v2507 = vadd.f32 0.0, %v2506
  %v2508 = vpop.f32.mrb[0].mxu0
  %2509 = vmatprep.mubr.f32.mxu0 0.0
  %2510 = vmatmul.mubr.f32.gmra.mrb[0].mxu0 %v2290
  %v2511 = vpop.f32.mrb[0].mxu0
  %v2512 = vadd.f32 0.0, %v2511
  %v2513 = vpop.f32.mrb[0].mxu0
  %2514 = vmatprep.mubr.f32.mxu0 0.0
  %2515 = vmatmul.mubr.f32.gmra.mrb[0].mxu0 %v2292
  %v2516 = vpop.f32.mrb[0].mxu0
  %v2517 = vadd.f32 0.0, %v2516
  %v2518 = vpop.f32.mrb[0].mxu0
  %2519 = vmatprep.mubr.f32.mxu0 0.0
  %2520 = vmatmul.mubr.f32.gmra.mrb[0].mxu0 %v2294
  %v2521 = vpop.f32.mrb[0].mxu0
  %v2522 = vadd.f32 0.0, %v2521
  %v2523 = vpop.f32.mrb[0].mxu0
  %2524 = vmatprep.mubr.f32.mxu0 0.0
  %2525 = vmatmul.mubr.f32.gmra.mrb[0].mxu0 %v2296
  %v2526 = vpop.f32.mrb[0].mxu0
  %v2527 = vadd.f32 0.0, %v2526
  %v2528 = vpop.f32.mrb[0].mxu0
  %2529 = vmatprep.mubr.f32.mxu0 0.0
  %2530 = vmatmul.mubr.f32.gmra.mrb[0].mxu0 %v2298
  %v2531 = vpop.f32.mrb[0].mxu0
  %v2532 = vadd.f32 0.0, %v2531
  %v2533 = vpop.f32.mrb[0].mxu0
  %2534 = vmatprep.mubr.f32.mxu0 0.0
  %2535 = vmatmul.mubr.f32.gmra.mrb[0].mxu0 %v2300
  %v2536 = vpop.f32.mrb[0].mxu0
  %v2537 = vadd.f32 0.0, %v2536
  %v2538 = vpop.f32.mrb[0].mxu0
  %2539 = vmatprep.mubr.f32.mxu0 0.0
  %2540 = vmatmul.mubr.f32.gmra.mrb[0].mxu0 %v2302
  %v2541 = vpop.f32.mrb[0].mxu0
  %v2542 = vadd.f32 0.0, %v2541
  %v2543 = vpop.f32.mrb[0].mxu0
  %2544 = vmatprep.mubr.f32.mxu0 0.0
  %2545 = vmatmul.mubr.f32.gmra.mrb[0].mxu0 %v2304
  %v2546 = vpop.f32.mrb[0].mxu0
  %v2547 = vadd.f32 0.0, %v2546
  %v2548 = vpop.f32.mrb[0].mxu0
  %2549 = vmatprep.mubr.f32.mxu0 0.0
  %2550 = vmatmul.mubr.f32.gmra.mrb[0].mxu0 %v2306
  %v2551 = vpop.f32.mrb[0].mxu0
  %v2552 = vadd.f32 0.0, %v2551
  %v2553 = vpop.f32.mrb[0].mxu0
  %2554 = vmatprep.mubr.f32.mxu0 0.0
  %2555 = vmatmul.mubr.f32.gmra.mrb[0].mxu0 %v2308
  %v2556 = vpop.f32.mrb[0].mxu0
  %v2557 = vadd.f32 0.0, %v2556
  %v2558 = vpop.f32.mrb[0].mxu0
  %2559 = vmatprep.mubr.f32.mxu0 0.0
  %2560 = vmatmul.mubr.f32.gmra.mrb[0].mxu0 %v2310
  %v2561 = vpop.f32.mrb[0].mxu0
  %v2562 = vadd.f32 0.0, %v2561
  %v2563 = vpop.f32.mrb[0].mxu0
  %2564 = vmatprep.mubr.f32.mxu0 0.0
  %2565 = vmatmul.mubr.f32.gmra.mrb[0].mxu0 %v2312
  %v2566 = vpop.f32.mrb[0].mxu0
  %v2567 = vadd.f32 0.0, %v2566
  %v2568 = vpop.f32.mrb[0].mxu0
  %2569 = vmatprep.mubr.f32.mxu0 0.0
  %2570 = vmatmul.mubr.f32.gmra.mrb[0].mxu0 %v2314
  %v2571 = vpop.f32.mrb[0].mxu0
  %v2572 = vadd.f32 0.0, %v2571
  %v2573 = vpop.f32.mrb[0].mxu0
  %2574 = vmatprep.mubr.f32.mxu0 0.0
  %2575 = vmatmul.mubr.f32.gmra.mrb[0].mxu0 %v2316
  %v2576 = vpop.f32.mrb[0].mxu0
  %v2577 = vadd.f32 0.0, %v2576
  %v2578 = vpop.f32.mrb[0].mxu0
  %2579 = vmatprep.mubr.f32.mxu0 0.0
  %2580 = vmatmul.mubr.f32.gmra.mrb[0].mxu0 %v2318
  %v2581 = vpop.f32.mrb[0].mxu0
  %v2582 = vadd.f32 0.0, %v2581
  %v2583 = vpop.f32.mrb[0].mxu0
  %2584 = vmatprep.mubr.f32.mxu0 0.0
  %2585 = vmatmul.mubr.f32.gmra.mrb[0].mxu0 %v2320
  %v2586 = vpop.f32.mrb[0].mxu0
  %v2587 = vadd.f32 0.0, %v2586
  %v2588 = vpop.f32.mrb[0].mxu0
  %2589 = vmatprep.mubr.f32.mxu0 0.0
  %2590 = vmatmul.mubr.f32.gmra.mrb[0].mxu0 %v2322
  %v2591 = vpop.f32.mrb[0].mxu0
  %v2592 = vadd.f32 0.0, %v2591
  %v2593 = vpop.f32.mrb[0].mxu0
  %2594 = vmatprep.mubr.f32.mxu0 0.0
  %2595 = vmatmul.mubr.f32.gmra.mrb[0].mxu0 %v2324
  %v2596 = vpop.f32.mrb[0].mxu0
  %v2597 = vadd.f32 0.0, %v2596
  %v2598 = vpop.f32.mrb[0].mxu0
  %2599 = vmatprep.mubr.f32.mxu0 0.0
  %2600 = vmatmul.mubr.f32.gmra.mrb[0].mxu0 %v2326
  %v2601 = vpop.f32.mrb[0].mxu0
  %v2602 = vadd.f32 0.0, %v2601
  %v2603 = vpop.f32.mrb[0].mxu0
  %2604 = vmatprep.mubr.f32.mxu0 0.0
  %2605 = vmatmul.mubr.f32.gmra.mrb[0].mxu0 %v2328
  %v2606 = vpop.f32.mrb[0].mxu0
  %v2607 = vadd.f32 0.0, %v2606
  %v2608 = vpop.f32.mrb[0].mxu0
  %2609 = vmatprep.mubr.f32.mxu0 0.0
  %2610 = vmatmul.mubr.f32.gmra.mrb[0].mxu0 %v2330
  %v2611 = vpop.f32.mrb[0].mxu0
  %v2612 = vadd.f32 0.0, %v2611
  %v2613 = vpop.f32.mrb[0].mxu0
  %2614 = vmatprep.mubr.f32.mxu0 0.0
  %2615 = vmatmul.mubr.f32.gmra.mrb[0].mxu0 %v2332
  %v2616 = vpop.f32.mrb[0].mxu0
  %v2617 = vadd.f32 0.0, %v2616
  %v2618 = vpop.f32.mrb[0].mxu0
  %2619 = vmatprep.mubr.f32.mxu0 0.0
  %2620 = vmatmul.mubr.f32.gmra.mrb[0].mxu0 %v2334
  %v2621 = vpop.f32.mrb[0].mxu0
  %v2622 = vadd.f32 0.0, %v2621
  %v2623 = vpop.f32.mrb[0].mxu0
  %2624 = vmatprep.mubr.f32.mxu0 0.0
  %2625 = vmatmul.mubr.f32.gmra.mrb[0].mxu0 %v2336
  %v2626 = vpop.f32.mrb[0].mxu0
  %v2627 = vadd.f32 0.0, %v2626
  %v2628 = vpop.f32.mrb[0].mxu0
  %2629 = vmatprep.mubr.f32.mxu0 0.0
  %2630 = vmatmul.mubr.f32.gmra.mrb[0].mxu0 %v2338
  %v2631 = vpop.f32.mrb[0].mxu0
  %v2632 = vadd.f32 0.0, %v2631
  %v2633 = vpop.f32.mrb[0].mxu0
  %2634 = vmatprep.mubr.f32.mxu0 0.0
  %2635 = vmatmul.mubr.f32.gmra.mrb[0].mxu0 %v2340
  %v2636 = vpop.f32.mrb[0].mxu0
  %v2637 = vadd.f32 0.0, %v2636
  %v2638 = vpop.f32.mrb[0].mxu0
  %2639 = vmatprep.mubr.f32.mxu0 0.0
  %2640 = vmatmul.mubr.f32.gmra.mrb[0].mxu0 %v2342
  %v2641 = vpop.f32.mrb[0].mxu0
  %v2642 = vadd.f32 0.0, %v2641
  %v2643 = vpop.f32.mrb[0].mxu0
  %2644 = vmatprep.mubr.f32.mxu0 0.0
  %2645 = vmatmul.mubr.f32.gmra.mrb[0].mxu0 %v2344
  %v2646 = vpop.f32.mrb[0].mxu0
  %v2647 = vadd.f32 0.0, %v2646
  %v2648 = vpop.f32.mrb[0].mxu0
  %2649 = vmatprep.mubr.f32.mxu0 0.0
  %2650 = vmatmul.mubr.f32.gmra.mrb[0].mxu0 %v2346
  %v2651 = vpop.f32.mrb[0].mxu0
  %v2652 = vadd.f32 0.0, %v2651
  %v2653 = vpop.f32.mrb[0].mxu0
  %2654 = vmatprep.mubr.f32.mxu0 0.0
  %2655 = vmatmul.mubr.f32.gmra.mrb[0].mxu0 %v2348
  %v2656 = vpop.f32.mrb[0].mxu0
  %v2657 = vadd.f32 0.0, %v2656
  %v2658 = vpop.f32.mrb[0].mxu0
  %2659 = vmatprep.mubr.f32.mxu0 0.0
  %2660 = vmatmul.mubr.f32.gmra.mrb[0].mxu0 %v2350
  %v2661 = vpop.f32.mrb[0].mxu0
  %v2662 = vadd.f32 0.0, %v2661
  %v2663 = vpop.f32.mrb[0].mxu0
  %2664 = vmatprep.mubr.f32.mxu0 0.0
  %2665 = vmatmul.mubr.f32.gmra.mrb[0].mxu0 %v2352
  %v2666 = vpop.f32.mrb[0].mxu0
  %v2667 = vadd.f32 0.0, %v2666
  %v2668 = vpop.f32.mrb[0].mxu0
  %2669 = vmatprep.mubr.f32.mxu0 0.0
  %2670 = vmatmul.mubr.f32.gmra.mrb[0].mxu0 %v2354
  %v2671 = vpop.f32.mrb[0].mxu0
  %v2672 = vadd.f32 0.0, %v2671
  %v2673 = vpop.f32.mrb[0].mxu0
  %2674 = vmatprep.mubr.f32.mxu0 0.0
  %2675 = vmatmul.mubr.f32.gmra.mrb[0].mxu0 %v2356
  %v2676 = vpop.f32.mrb[0].mxu0
  %v2677 = vadd.f32 0.0, %v2676
  %v2678 = vpop.f32.mrb[0].mxu0
  %2679 = vmatprep.mubr.f32.mxu0 0.0
  %2680 = vmatmul.mubr.f32.gmra.mrb[0].mxu0 %v2358
  %v2681 = vpop.f32.mrb[0].mxu0
  %v2682 = vadd.f32 0.0, %v2681
  %v2683 = vpop.f32.mrb[0].mxu0
  %2684 = vmatprep.mubr.f32.mxu0 0.0
  %2685 = vmatmul.mubr.f32.gmra.mrb[0].mxu0 %v2360
  %v2686 = vpop.f32.mrb[0].mxu0
  %v2687 = vadd.f32 0.0, %v2686
  %v2688 = vpop.f32.mrb[0].mxu0
  %2689 = vmatprep.mubr.f32.mxu0 0.0
  %2690 = vmatmul.mubr.f32.gmra.mrb[0].mxu0 %v2362
  %v2691 = vpop.f32.mrb[0].mxu0
  %v2692 = vadd.f32 0.0, %v2691
  %v2693 = vpop.f32.mrb[0].mxu0
  %2694 = vmatprep.mubr.f32.mxu0 0.0
  %2695 = vmatmul.mubr.f32.gmra.mrb[0].mxu0 %v2364
  %v2696 = vpop.f32.mrb[0].mxu0
  %v2697 = vadd.f32 0.0, %v2696
  %v2698 = vpop.f32.mrb[0].mxu0
  %2699 = vmatprep.mubr.f32.mxu0 0.0
  %2700 = vmatmul.mubr.f32.gmra.mrb[0].mxu0 %v2366
  %v2701 = vpop.f32.mrb[0].mxu0
  %v2702 = vadd.f32 0.0, %v2701
  %v2703 = vpop.f32.mrb[0].mxu0
  %2704 = vmatprep.mubr.f32.mxu0 0.0
  %2705 = vmatmul.mubr.f32.gmra.mrb[0].mxu0 %v2368
  %v2706 = vpop.f32.mrb[0].mxu0
  %v2707 = vadd.f32 0.0, %v2706
  %v2708 = vpop.f32.mrb[0].mxu0
  %2709 = vmatprep.mubr.f32.mxu0 0.0
  %2710 = vmatmul.mubr.f32.gmra.mrb[0].mxu0 %v2370
  %v2711 = vpop.f32.mrb[0].mxu0
  %v2712 = vadd.f32 0.0, %v2711
  %v2713 = vpop.f32.mrb[0].mxu0
  %2714 = vmatprep.mubr.f32.mxu0 0.0
  %2715 = vmatmul.mubr.f32.gmra.mrb[0].mxu0 %v2372
  %v2716 = vpop.f32.mrb[0].mxu0
  %v2717 = vadd.f32 0.0, %v2716
  %v2718 = vpop.f32.mrb[0].mxu0
  %2719 = vmatprep.mubr.f32.mxu0 0.0
  %2720 = vmatmul.mubr.f32.gmra.mrb[0].mxu0 %v2374
  %v2721 = vpop.f32.mrb[0].mxu0
  %v2722 = vadd.f32 0.0, %v2721
  %v2723 = vpop.f32.mrb[0].mxu0
  %2724 = vmatprep.mubr.f32.mxu0 0.0
  %2725 = vmatmul.mubr.f32.gmra.mrb[0].mxu0 %v2376
  %v2726 = vpop.f32.mrb[0].mxu0
  %v2727 = vadd.f32 0.0, %v2726
  %v2728 = vpop.f32.mrb[0].mxu0
  %2729 = vmatprep.mubr.f32.mxu0 0.0
  %2730 = vmatmul.mubr.f32.gmra.mrb[0].mxu0 %v2378
  %v2731 = vpop.f32.mrb[0].mxu0
  %v2732 = vadd.f32 0.0, %v2731
  %v2733 = vpop.f32.mrb[0].mxu0
  %2734 = vmatprep.mubr.f32.mxu0 0.0
  %2735 = vmatmul.mubr.f32.gmra.mrb[0].mxu0 %v2380
  %v2736 = vpop.f32.mrb[0].mxu0
  %v2737 = vadd.f32 0.0, %v2736
  %v2738 = vpop.f32.mrb[0].mxu0
  %2739 = vmatprep.mubr.f32.mxu0 0.0
  %2740 = vmatmul.mubr.f32.gmra.mrb[0].mxu0 %v2382
  %v2741 = vpop.f32.mrb[0].mxu0
  %v2742 = vadd.f32 0.0, %v2741
  %v2743 = vpop.f32.mrb[0].mxu0
  %2744 = vmatprep.mubr.f32.mxu0 0.0
  %2745 = vmatmul.mubr.f32.gmra.mrb[0].mxu0 %v2384
  %v2746 = vpop.f32.mrb[0].mxu0
  %v2747 = vadd.f32 0.0, %v2746
  %v2748 = vpop.f32.mrb[0].mxu0
  %2749 = vmatprep.mubr.f32.mxu0 0.0
  %2750 = vmatmul.mubr.f32.gmra.mrb[0].mxu0 %v2386
  %v2751 = vpop.f32.mrb[0].mxu0
  %v2752 = vadd.f32 0.0, %v2751
  %v2753 = vpop.f32.mrb[0].mxu0
  %2754 = vmatprep.mubr.f32.mxu0 0.0
  %2755 = vmatmul.mubr.f32.gmra.mrb[0].mxu0 %v2388
  %v2756 = vpop.f32.mrb[0].mxu0
  %v2757 = vadd.f32 0.0, %v2756
  %v2758 = vpop.f32.mrb[0].mxu0
  %2759 = vmatprep.mubr.f32.mxu0 0.0
  %2760 = vmatmul.mubr.f32.gmra.mrb[0].mxu0 %v2390
  %v2761 = vpop.f32.mrb[0].mxu0
  %v2762 = vadd.f32 0.0, %v2761
  %v2763 = vpop.f32.mrb[0].mxu0
  %2764 = vmatprep.mubr.f32.mxu0 0.0
  %2765 = vmatmul.mubr.f32.gmra.mrb[0].mxu0 %v2392
  %v2766 = vpop.f32.mrb[0].mxu0
  %v2767 = vadd.f32 0.0, %v2766
  %v2768 = vpop.f32.mrb[0].mxu0
  %2769 = vmatprep.mubr.f32.mxu0 0.0
  %2770 = vmatmul.mubr.f32.gmra.mrb[0].mxu0 %v2394
  %v2771 = vpop.f32.mrb[0].mxu0
  %v2772 = vadd.f32 0.0, %v2771
  %v2773 = vpop.f32.mrb[0].mxu0
  %2774 = vmatprep.mubr.f32.mxu0 0.0
  %2775 = vmatmul.mubr.f32.gmra.mrb[0].mxu0 %v2396
  %v2776 = vpop.f32.mrb[0].mxu0
  %v2777 = vadd.f32 0.0, %v2776
  %v2778 = vpop.f32.mrb[0].mxu0
  %2779 = vmatprep.mubr.f32.mxu0 0.0
  %2780 = vmatmul.mubr.f32.gmra.mrb[0].mxu0 %v2398
  %v2781 = vpop.f32.mrb[0].mxu0
  %v2782 = vadd.f32 0.0, %v2781
  %v2783 = vpop.f32.mrb[0].mxu0
  %2784 = vmatprep.mubr.f32.mxu0 0.0
  %2785 = vmatmul.mubr.f32.gmra.mrb[0].mxu0 %v2400
  %v2786 = vpop.f32.mrb[0].mxu0
  %v2787 = vadd.f32 0.0, %v2786
  %v2788 = vpop.f32.mrb[0].mxu0
  %2789 = vdwg.mxu0
  %v2790 = vadd.f32 %v1795, %v2472
  %v2791 = vadd.f32 %v1800, %v2477
  %v2792 = vadd.f32 %v1805, %v2482
  %v2793 = vadd.f32 %v1810, %v2487
  %v2794 = vadd.f32 %v1815, %v2492
  %v2795 = vadd.f32 %v1820, %v2497
  %v2796 = vadd.f32 %v1825, %v2502
  %v2797 = vadd.f32 %v1830, %v2507
  %v2798 = vadd.f32 %v1835, %v2512
  %v2799 = vadd.f32 %v1840, %v2517
  %v2800 = vadd.f32 %v1845, %v2522
  %v2801 = vadd.f32 %v1850, %v2527
  %v2802 = vadd.f32 %v1855, %v2532
  %v2803 = vadd.f32 %v1860, %v2537
  %v2804 = vadd.f32 %v1865, %v2542
  %v2805 = vadd.f32 %v1870, %v2547
  %v2806 = vadd.f32 %v1875, %v2552
  %v2807 = vadd.f32 %v1880, %v2557
  %v2808 = vadd.f32 %v1885, %v2562
  %v2809 = vadd.f32 %v1890, %v2567
  %v2810 = vadd.f32 %v1895, %v2572
  %v2811 = vadd.f32 %v1900, %v2577
  %v2812 = vadd.f32 %v1905, %v2582
  %v2813 = vadd.f32 %v1910, %v2587
  %v2814 = vadd.f32 %v1915, %v2592
  %v2815 = vadd.f32 %v1920, %v2597
  %v2816 = vadd.f32 %v1925, %v2602
  %v2817 = vadd.f32 %v1930, %v2607
  %v2818 = vadd.f32 %v1935, %v2612
  %v2819 = vadd.f32 %v1940, %v2617
  %v2820 = vadd.f32 %v1945, %v2622
  %v2821 = vadd.f32 %v1950, %v2627
  %v2822 = vadd.f32 %v1955, %v2632
  %v2823 = vadd.f32 %v1960, %v2637
  %v2824 = vadd.f32 %v1965, %v2642
  %v2825 = vadd.f32 %v1970, %v2647
  %v2826 = vadd.f32 %v1975, %v2652
  %v2827 = vadd.f32 %v1980, %v2657
  %v2828 = vadd.f32 %v1985, %v2662
  %v2829 = vadd.f32 %v1990, %v2667
  %v2830 = vadd.f32 %v1995, %v2672
  %v2831 = vadd.f32 %v2000, %v2677
  %v2832 = vadd.f32 %v2005, %v2682
  %v2833 = vadd.f32 %v2010, %v2687
  %v2834 = vadd.f32 %v2015, %v2692
  %v2835 = vadd.f32 %v2020, %v2697
  %v2836 = vadd.f32 %v2025, %v2702
  %v2837 = vadd.f32 %v2030, %v2707
  %v2838 = vadd.f32 %v2035, %v2712
  %v2839 = vadd.f32 %v2040, %v2717
  %v2840 = vadd.f32 %v2045, %v2722
  %v2841 = vadd.f32 %v2050, %v2727
  %v2842 = vadd.f32 %v2055, %v2732
  %v2843 = vadd.f32 %v2060, %v2737
  %v2844 = vadd.f32 %v2065, %v2742
  %v2845 = vadd.f32 %v2070, %v2747
  %v2846 = vadd.f32 %v2075, %v2752
  %v2847 = vadd.f32 %v2080, %v2757
  %v2848 = vadd.f32 %v2085, %v2762
  %v2849 = vadd.f32 %v2090, %v2767
  %v2850 = vadd.f32 %v2095, %v2772
  %v2851 = vadd.f32 %v2100, %v2777
  %v2852 = vadd.f32 %v2105, %v2782
  %v2853 = vadd.f32 %v2110, %v2787
  %v2855 = vsel %vm1079, %v762, 0
  %v2858 = vsel %vm1079, %v763, 0
  %v2861 = vsel %vm1079, %v816, 0
  %v2864 = vsel %vm1079, %v817, 0
  %v2867 = vsel %vm1208, %v131, 0
  %2869 = vmatprep.subr.mxu0 0.0
  %2870 = vmatpush1.msra.mxu0 %v2867
  %2871 = vmatprep.subr.mxu0 0.0
  %2872 = vmatpush1.msra.mxu0 0.0
  %2873 = vmatprep.subr.mxu0 0.0
  %2874 = vmatpush1.msra.mxu0 0.0
  %2875 = vmatprep.subr.mxu0 0.0
  %2876 = vmatpush1.msra.mxu0 0.0
  %2877 = vmatprep.subr.mxu0 0.0
  %2878 = vmatpush1.msra.mxu0 0.0
  %2879 = vmatprep.subr.mxu0 0.0
  %2880 = vmatpush1.msra.mxu0 0.0
  %2881 = vmatprep.subr.mxu0 0.0
  %2882 = vmatpush1.msra.mxu0 0.0
  %2883 = vmatprep.subr.mxu0 0.0
  %2884 = vmatpush1.msra.mxu0 0.0
  %2885 = vmatprep.subr.mxu0 0.0
  %2886 = vmatpush1.msra.mxu0 0.0
  %2887 = vmatprep.subr.mxu0 0.0
  %2888 = vmatpush1.msra.mxu0 0.0
  %2889 = vmatprep.subr.mxu0 0.0
  %2890 = vmatpush1.msra.mxu0 0.0
  %2891 = vmatprep.subr.mxu0 0.0
  %2892 = vmatpush1.msra.mxu0 0.0
  %2893 = vmatprep.subr.mxu0 0.0
  %2894 = vmatpush1.msra.mxu0 0.0
  %2895 = vmatprep.subr.mxu0 0.0
  %2896 = vmatpush1.msra.mxu0 0.0
  %2897 = vmatprep.subr.mxu0 0.0
  %2898 = vmatpush1.msra.mxu0 0.0
  %2899 = vmatprep.subr.mxu0 0.0
  %2900 = vmatpush1.msra.mxu0 0.0
  %2901 = vmatprep.subr.mxu0 0.0
  %2902 = vmatpush1.msra.mxu0 0.0
  %2903 = vmatprep.subr.mxu0 0.0
  %2904 = vmatpush1.msra.mxu0 0.0
  %2905 = vmatprep.subr.mxu0 0.0
  %2906 = vmatpush1.msra.mxu0 0.0
  %2907 = vmatprep.subr.mxu0 0.0
  %2908 = vmatpush1.msra.mxu0 0.0
  %2909 = vmatprep.subr.mxu0 0.0
  %2910 = vmatpush1.msra.mxu0 0.0
  %2911 = vmatprep.subr.mxu0 0.0
  %2912 = vmatpush1.msra.mxu0 0.0
  %2913 = vmatprep.subr.mxu0 0.0
  %2914 = vmatpush1.msra.mxu0 0.0
  %2915 = vmatprep.subr.mxu0 0.0
  %2916 = vmatpush1.msra.mxu0 0.0
  %2917 = vmatprep.subr.mxu0 0.0
  %2918 = vmatpush1.msra.mxu0 0.0
  %2919 = vmatprep.subr.mxu0 0.0
  %2920 = vmatpush1.msra.mxu0 0.0
  %2921 = vmatprep.subr.mxu0 0.0
  %2922 = vmatpush1.msra.mxu0 0.0
  %2923 = vmatprep.subr.mxu0 0.0
  %2924 = vmatpush1.msra.mxu0 0.0
  %2925 = vmatprep.subr.mxu0 0.0
  %2926 = vmatpush1.msra.mxu0 0.0
  %2927 = vmatprep.subr.mxu0 0.0
  %2928 = vmatpush1.msra.mxu0 0.0
  %2929 = vmatprep.subr.mxu0 0.0
  %2930 = vmatpush1.msra.mxu0 0.0
  %2931 = vmatprep.subr.mxu0 0.0
  %2932 = vmatpush1.msra.mxu0 0.0
  %2933 = vmatprep.mubr.f32.mxu0 0.0
  %2934 = vmatmul.mubr.f32.gmra.mrb[0].mxu0 %v1601
  %v2935 = vpop.f32.mrb[0].mxu0
  %v2936 = vadd.f32 0.0, %v2935
  %v2937 = vpop.f32.mrb[0].mxu0
  %2938 = vmatprep.mubr.f32.mxu0 0.0
  %2939 = vmatmul.mubr.f32.gmra.mrb[0].mxu0 %v1603
  %v2940 = vpop.f32.mrb[0].mxu0
  %v2941 = vadd.f32 0.0, %v2940
  %v2942 = vpop.f32.mrb[0].mxu0
  %2943 = vmatprep.mubr.f32.mxu0 0.0
  %2944 = vmatmul.mubr.f32.gmra.mrb[0].mxu0 %v1605
  %v2945 = vpop.f32.mrb[0].mxu0
  %v2946 = vadd.f32 0.0, %v2945
  %v2947 = vpop.f32.mrb[0].mxu0
  %2948 = vmatprep.mubr.f32.mxu0 0.0
  %2949 = vmatmul.mubr.f32.gmra.mrb[0].mxu0 %v1607
  %v2950 = vpop.f32.mrb[0].mxu0
  %v2951 = vadd.f32 0.0, %v2950
  %v2952 = vpop.f32.mrb[0].mxu0
  %2953 = vmatprep.mubr.f32.mxu0 0.0
  %2954 = vmatmul.mubr.f32.gmra.mrb[0].mxu0 %v1609
  %v2955 = vpop.f32.mrb[0].mxu0
  %v2956 = vadd.f32 0.0, %v2955
  %v2957 = vpop.f32.mrb[0].mxu0
  %2958 = vmatprep.mubr.f32.mxu0 0.0
  %2959 = vmatmul.mubr.f32.gmra.mrb[0].mxu0 %v1611
  %v2960 = vpop.f32.mrb[0].mxu0
  %v2961 = vadd.f32 0.0, %v2960
  %v2962 = vpop.f32.mrb[0].mxu0
  %2963 = vmatprep.mubr.f32.mxu0 0.0
  %2964 = vmatmul.mubr.f32.gmra.mrb[0].mxu0 %v1613
  %v2965 = vpop.f32.mrb[0].mxu0
  %v2966 = vadd.f32 0.0, %v2965
  %v2967 = vpop.f32.mrb[0].mxu0
  %2968 = vmatprep.mubr.f32.mxu0 0.0
  %2969 = vmatmul.mubr.f32.gmra.mrb[0].mxu0 %v1615
  %v2970 = vpop.f32.mrb[0].mxu0
  %v2971 = vadd.f32 0.0, %v2970
  %v2972 = vpop.f32.mrb[0].mxu0
  %2973 = vmatprep.mubr.f32.mxu0 0.0
  %2974 = vmatmul.mubr.f32.gmra.mrb[0].mxu0 %v1617
  %v2975 = vpop.f32.mrb[0].mxu0
  %v2976 = vadd.f32 0.0, %v2975
  %v2977 = vpop.f32.mrb[0].mxu0
  %2978 = vmatprep.mubr.f32.mxu0 0.0
  %2979 = vmatmul.mubr.f32.gmra.mrb[0].mxu0 %v1619
  %v2980 = vpop.f32.mrb[0].mxu0
  %v2981 = vadd.f32 0.0, %v2980
  %v2982 = vpop.f32.mrb[0].mxu0
  %2983 = vmatprep.mubr.f32.mxu0 0.0
  %2984 = vmatmul.mubr.f32.gmra.mrb[0].mxu0 %v1621
  %v2985 = vpop.f32.mrb[0].mxu0
  %v2986 = vadd.f32 0.0, %v2985
  %v2987 = vpop.f32.mrb[0].mxu0
  %2988 = vmatprep.mubr.f32.mxu0 0.0
  %2989 = vmatmul.mubr.f32.gmra.mrb[0].mxu0 %v1623
  %v2990 = vpop.f32.mrb[0].mxu0
  %v2991 = vadd.f32 0.0, %v2990
  %v2992 = vpop.f32.mrb[0].mxu0
  %2993 = vmatprep.mubr.f32.mxu0 0.0
  %2994 = vmatmul.mubr.f32.gmra.mrb[0].mxu0 %v1625
  %v2995 = vpop.f32.mrb[0].mxu0
  %v2996 = vadd.f32 0.0, %v2995
  %v2997 = vpop.f32.mrb[0].mxu0
  %2998 = vmatprep.mubr.f32.mxu0 0.0
  %2999 = vmatmul.mubr.f32.gmra.mrb[0].mxu0 %v1627
  %v3000 = vpop.f32.mrb[0].mxu0
  %v3001 = vadd.f32 0.0, %v3000
  %v3002 = vpop.f32.mrb[0].mxu0
  %3003 = vmatprep.mubr.f32.mxu0 0.0
  %3004 = vmatmul.mubr.f32.gmra.mrb[0].mxu0 %v1629
  %v3005 = vpop.f32.mrb[0].mxu0
  %v3006 = vadd.f32 0.0, %v3005
  %v3007 = vpop.f32.mrb[0].mxu0
  %3008 = vmatprep.mubr.f32.mxu0 0.0
  %3009 = vmatmul.mubr.f32.gmra.mrb[0].mxu0 %v1631
  %v3010 = vpop.f32.mrb[0].mxu0
  %v3011 = vadd.f32 0.0, %v3010
  %v3012 = vpop.f32.mrb[0].mxu0
  %3013 = vmatprep.mubr.f32.mxu0 0.0
  %3014 = vmatmul.mubr.f32.gmra.mrb[0].mxu0 %v1633
  %v3015 = vpop.f32.mrb[0].mxu0
  %v3016 = vadd.f32 0.0, %v3015
  %v3017 = vpop.f32.mrb[0].mxu0
  %3018 = vmatprep.mubr.f32.mxu0 0.0
  %3019 = vmatmul.mubr.f32.gmra.mrb[0].mxu0 %v1635
  %v3020 = vpop.f32.mrb[0].mxu0
  %v3021 = vadd.f32 0.0, %v3020
  %v3022 = vpop.f32.mrb[0].mxu0
  %3023 = vmatprep.mubr.f32.mxu0 0.0
  %3024 = vmatmul.mubr.f32.gmra.mrb[0].mxu0 %v1637
  %v3025 = vpop.f32.mrb[0].mxu0
  %v3026 = vadd.f32 0.0, %v3025
  %v3027 = vpop.f32.mrb[0].mxu0
  %3028 = vmatprep.mubr.f32.mxu0 0.0
  %3029 = vmatmul.mubr.f32.gmra.mrb[0].mxu0 %v1639
  %v3030 = vpop.f32.mrb[0].mxu0
  %v3031 = vadd.f32 0.0, %v3030
  %v3032 = vpop.f32.mrb[0].mxu0
  %3033 = vmatprep.mubr.f32.mxu0 0.0
  %3034 = vmatmul.mubr.f32.gmra.mrb[0].mxu0 %v1641
  %v3035 = vpop.f32.mrb[0].mxu0
  %v3036 = vadd.f32 0.0, %v3035
  %v3037 = vpop.f32.mrb[0].mxu0
  %3038 = vmatprep.mubr.f32.mxu0 0.0
  %3039 = vmatmul.mubr.f32.gmra.mrb[0].mxu0 %v1643
  %v3040 = vpop.f32.mrb[0].mxu0
  %v3041 = vadd.f32 0.0, %v3040
  %v3042 = vpop.f32.mrb[0].mxu0
  %3043 = vmatprep.mubr.f32.mxu0 0.0
  %3044 = vmatmul.mubr.f32.gmra.mrb[0].mxu0 %v1645
  %v3045 = vpop.f32.mrb[0].mxu0
  %v3046 = vadd.f32 0.0, %v3045
  %v3047 = vpop.f32.mrb[0].mxu0
  %3048 = vmatprep.mubr.f32.mxu0 0.0
  %3049 = vmatmul.mubr.f32.gmra.mrb[0].mxu0 %v1647
  %v3050 = vpop.f32.mrb[0].mxu0
  %v3051 = vadd.f32 0.0, %v3050
  %v3052 = vpop.f32.mrb[0].mxu0
  %3053 = vmatprep.mubr.f32.mxu0 0.0
  %3054 = vmatmul.mubr.f32.gmra.mrb[0].mxu0 %v1649
  %v3055 = vpop.f32.mrb[0].mxu0
  %v3056 = vadd.f32 0.0, %v3055
  %v3057 = vpop.f32.mrb[0].mxu0
  %3058 = vmatprep.mubr.f32.mxu0 0.0
  %3059 = vmatmul.mubr.f32.gmra.mrb[0].mxu0 %v1651
  %v3060 = vpop.f32.mrb[0].mxu0
  %v3061 = vadd.f32 0.0, %v3060
  %v3062 = vpop.f32.mrb[0].mxu0
  %3063 = vmatprep.mubr.f32.mxu0 0.0
  %3064 = vmatmul.mubr.f32.gmra.mrb[0].mxu0 %v1653
  %v3065 = vpop.f32.mrb[0].mxu0
  %v3066 = vadd.f32 0.0, %v3065
  %v3067 = vpop.f32.mrb[0].mxu0
  %3068 = vmatprep.mubr.f32.mxu0 0.0
  %3069 = vmatmul.mubr.f32.gmra.mrb[0].mxu0 %v1655
  %v3070 = vpop.f32.mrb[0].mxu0
  %v3071 = vadd.f32 0.0, %v3070
  %v3072 = vpop.f32.mrb[0].mxu0
  %3073 = vmatprep.mubr.f32.mxu0 0.0
  %3074 = vmatmul.mubr.f32.gmra.mrb[0].mxu0 %v1657
  %v3075 = vpop.f32.mrb[0].mxu0
  %v3076 = vadd.f32 0.0, %v3075
  %v3077 = vpop.f32.mrb[0].mxu0
  %3078 = vmatprep.mubr.f32.mxu0 0.0
  %3079 = vmatmul.mubr.f32.gmra.mrb[0].mxu0 %v1659
  %v3080 = vpop.f32.mrb[0].mxu0
  %v3081 = vadd.f32 0.0, %v3080
  %v3082 = vpop.f32.mrb[0].mxu0
  %3083 = vmatprep.mubr.f32.mxu0 0.0
  %3084 = vmatmul.mubr.f32.gmra.mrb[0].mxu0 %v2855
  %v3085 = vpop.f32.mrb[0].mxu0
  %v3086 = vadd.f32 0.0, %v3085
  %v3087 = vpop.f32.mrb[0].mxu0
  %3088 = vmatprep.mubr.f32.mxu0 0.0
  %3089 = vmatmul.mubr.f32.gmra.mrb[0].mxu0 %v2858
  %v3090 = vpop.f32.mrb[0].mxu0
  %v3091 = vadd.f32 0.0, %v3090
  %v3092 = vpop.f32.mrb[0].mxu0
  %3093 = vmatprep.mubr.f32.mxu0 0.0
  %3094 = vmatmul.mubr.f32.gmra.mrb[0].mxu0 %v1665
  %v3095 = vpop.f32.mrb[0].mxu0
  %v3096 = vadd.f32 0.0, %v3095
  %v3097 = vpop.f32.mrb[0].mxu0
  %3098 = vmatprep.mubr.f32.mxu0 0.0
  %3099 = vmatmul.mubr.f32.gmra.mrb[0].mxu0 %v1667
  %v3100 = vpop.f32.mrb[0].mxu0
  %v3101 = vadd.f32 0.0, %v3100
  %v3102 = vpop.f32.mrb[0].mxu0
  %3103 = vmatprep.mubr.f32.mxu0 0.0
  %3104 = vmatmul.mubr.f32.gmra.mrb[0].mxu0 %v1669
  %v3105 = vpop.f32.mrb[0].mxu0
  %v3106 = vadd.f32 0.0, %v3105
  %v3107 = vpop.f32.mrb[0].mxu0
  %3108 = vmatprep.mubr.f32.mxu0 0.0
  %3109 = vmatmul.mubr.f32.gmra.mrb[0].mxu0 %v1671
  %v3110 = vpop.f32.mrb[0].mxu0
  %v3111 = vadd.f32 0.0, %v3110
  %v3112 = vpop.f32.mrb[0].mxu0
  %3113 = vmatprep.mubr.f32.mxu0 0.0
  %3114 = vmatmul.mubr.f32.gmra.mrb[0].mxu0 %v1673
  %v3115 = vpop.f32.mrb[0].mxu0
  %v3116 = vadd.f32 0.0, %v3115
  %v3117 = vpop.f32.mrb[0].mxu0
  %3118 = vmatprep.mubr.f32.mxu0 0.0
  %3119 = vmatmul.mubr.f32.gmra.mrb[0].mxu0 %v1675
  %v3120 = vpop.f32.mrb[0].mxu0
  %v3121 = vadd.f32 0.0, %v3120
  %v3122 = vpop.f32.mrb[0].mxu0
  %3123 = vmatprep.mubr.f32.mxu0 0.0
  %3124 = vmatmul.mubr.f32.gmra.mrb[0].mxu0 %v1677
  %v3125 = vpop.f32.mrb[0].mxu0
  %v3126 = vadd.f32 0.0, %v3125
  %v3127 = vpop.f32.mrb[0].mxu0
  %3128 = vmatprep.mubr.f32.mxu0 0.0
  %3129 = vmatmul.mubr.f32.gmra.mrb[0].mxu0 %v1679
  %v3130 = vpop.f32.mrb[0].mxu0
  %v3131 = vadd.f32 0.0, %v3130
  %v3132 = vpop.f32.mrb[0].mxu0
  %3133 = vmatprep.mubr.f32.mxu0 0.0
  %3134 = vmatmul.mubr.f32.gmra.mrb[0].mxu0 %v1681
  %v3135 = vpop.f32.mrb[0].mxu0
  %v3136 = vadd.f32 0.0, %v3135
  %v3137 = vpop.f32.mrb[0].mxu0
  %3138 = vmatprep.mubr.f32.mxu0 0.0
  %3139 = vmatmul.mubr.f32.gmra.mrb[0].mxu0 %v1683
  %v3140 = vpop.f32.mrb[0].mxu0
  %v3141 = vadd.f32 0.0, %v3140
  %v3142 = vpop.f32.mrb[0].mxu0
  %3143 = vmatprep.mubr.f32.mxu0 0.0
  %3144 = vmatmul.mubr.f32.gmra.mrb[0].mxu0 %v1685
  %v3145 = vpop.f32.mrb[0].mxu0
  %v3146 = vadd.f32 0.0, %v3145
  %v3147 = vpop.f32.mrb[0].mxu0
  %3148 = vmatprep.mubr.f32.mxu0 0.0
  %3149 = vmatmul.mubr.f32.gmra.mrb[0].mxu0 %v1687
  %v3150 = vpop.f32.mrb[0].mxu0
  %v3151 = vadd.f32 0.0, %v3150
  %v3152 = vpop.f32.mrb[0].mxu0
  %3153 = vmatprep.mubr.f32.mxu0 0.0
  %3154 = vmatmul.mubr.f32.gmra.mrb[0].mxu0 %v1689
  %v3155 = vpop.f32.mrb[0].mxu0
  %v3156 = vadd.f32 0.0, %v3155
  %v3157 = vpop.f32.mrb[0].mxu0
  %3158 = vmatprep.mubr.f32.mxu0 0.0
  %3159 = vmatmul.mubr.f32.gmra.mrb[0].mxu0 %v1691
  %v3160 = vpop.f32.mrb[0].mxu0
  %v3161 = vadd.f32 0.0, %v3160
  %v3162 = vpop.f32.mrb[0].mxu0
  %3163 = vmatprep.mubr.f32.mxu0 0.0
  %3164 = vmatmul.mubr.f32.gmra.mrb[0].mxu0 %v1693
  %v3165 = vpop.f32.mrb[0].mxu0
  %v3166 = vadd.f32 0.0, %v3165
  %v3167 = vpop.f32.mrb[0].mxu0
  %3168 = vmatprep.mubr.f32.mxu0 0.0
  %3169 = vmatmul.mubr.f32.gmra.mrb[0].mxu0 %v1695
  %v3170 = vpop.f32.mrb[0].mxu0
  %v3171 = vadd.f32 0.0, %v3170
  %v3172 = vpop.f32.mrb[0].mxu0
  %3173 = vmatprep.mubr.f32.mxu0 0.0
  %3174 = vmatmul.mubr.f32.gmra.mrb[0].mxu0 %v1697
  %v3175 = vpop.f32.mrb[0].mxu0
  %v3176 = vadd.f32 0.0, %v3175
  %v3177 = vpop.f32.mrb[0].mxu0
  %3178 = vmatprep.mubr.f32.mxu0 0.0
  %3179 = vmatmul.mubr.f32.gmra.mrb[0].mxu0 %v1699
  %v3180 = vpop.f32.mrb[0].mxu0
  %v3181 = vadd.f32 0.0, %v3180
  %v3182 = vpop.f32.mrb[0].mxu0
  %3183 = vmatprep.mubr.f32.mxu0 0.0
  %3184 = vmatmul.mubr.f32.gmra.mrb[0].mxu0 %v1701
  %v3185 = vpop.f32.mrb[0].mxu0
  %v3186 = vadd.f32 0.0, %v3185
  %v3187 = vpop.f32.mrb[0].mxu0
  %3188 = vmatprep.mubr.f32.mxu0 0.0
  %3189 = vmatmul.mubr.f32.gmra.mrb[0].mxu0 %v1703
  %v3190 = vpop.f32.mrb[0].mxu0
  %v3191 = vadd.f32 0.0, %v3190
  %v3192 = vpop.f32.mrb[0].mxu0
  %3193 = vmatprep.mubr.f32.mxu0 0.0
  %3194 = vmatmul.mubr.f32.gmra.mrb[0].mxu0 %v1705
  %v3195 = vpop.f32.mrb[0].mxu0
  %v3196 = vadd.f32 0.0, %v3195
  %v3197 = vpop.f32.mrb[0].mxu0
  %3198 = vmatprep.mubr.f32.mxu0 0.0
  %3199 = vmatmul.mubr.f32.gmra.mrb[0].mxu0 %v1707
  %v3200 = vpop.f32.mrb[0].mxu0
  %v3201 = vadd.f32 0.0, %v3200
  %v3202 = vpop.f32.mrb[0].mxu0
  %3203 = vmatprep.mubr.f32.mxu0 0.0
  %3204 = vmatmul.mubr.f32.gmra.mrb[0].mxu0 %v1709
  %v3205 = vpop.f32.mrb[0].mxu0
  %v3206 = vadd.f32 0.0, %v3205
  %v3207 = vpop.f32.mrb[0].mxu0
  %3208 = vmatprep.mubr.f32.mxu0 0.0
  %3209 = vmatmul.mubr.f32.gmra.mrb[0].mxu0 %v1711
  %v3210 = vpop.f32.mrb[0].mxu0
  %v3211 = vadd.f32 0.0, %v3210
  %v3212 = vpop.f32.mrb[0].mxu0
  %3213 = vmatprep.mubr.f32.mxu0 0.0
  %3214 = vmatmul.mubr.f32.gmra.mrb[0].mxu0 %v1713
  %v3215 = vpop.f32.mrb[0].mxu0
  %v3216 = vadd.f32 0.0, %v3215
  %v3217 = vpop.f32.mrb[0].mxu0
  %3218 = vmatprep.mubr.f32.mxu0 0.0
  %3219 = vmatmul.mubr.f32.gmra.mrb[0].mxu0 %v1715
  %v3220 = vpop.f32.mrb[0].mxu0
  %v3221 = vadd.f32 0.0, %v3220
  %v3222 = vpop.f32.mrb[0].mxu0
  %3223 = vmatprep.mubr.f32.mxu0 0.0
  %3224 = vmatmul.mubr.f32.gmra.mrb[0].mxu0 %v1717
  %v3225 = vpop.f32.mrb[0].mxu0
  %v3226 = vadd.f32 0.0, %v3225
  %v3227 = vpop.f32.mrb[0].mxu0
  %3228 = vmatprep.mubr.f32.mxu0 0.0
  %3229 = vmatmul.mubr.f32.gmra.mrb[0].mxu0 %v1719
  %v3230 = vpop.f32.mrb[0].mxu0
  %v3231 = vadd.f32 0.0, %v3230
  %v3232 = vpop.f32.mrb[0].mxu0
  %3233 = vmatprep.mubr.f32.mxu0 0.0
  %3234 = vmatmul.mubr.f32.gmra.mrb[0].mxu0 %v1721
  %v3235 = vpop.f32.mrb[0].mxu0
  %v3236 = vadd.f32 0.0, %v3235
  %v3237 = vpop.f32.mrb[0].mxu0
  %3238 = vmatprep.mubr.f32.mxu0 0.0
  %3239 = vmatmul.mubr.f32.gmra.mrb[0].mxu0 %v1723
  %v3240 = vpop.f32.mrb[0].mxu0
  %v3241 = vadd.f32 0.0, %v3240
  %v3242 = vpop.f32.mrb[0].mxu0
  %3243 = vmatprep.mubr.f32.mxu0 0.0
  %3244 = vmatmul.mubr.f32.gmra.mrb[0].mxu0 %v2861
  %v3245 = vpop.f32.mrb[0].mxu0
  %v3246 = vadd.f32 0.0, %v3245
  %v3247 = vpop.f32.mrb[0].mxu0
  %3248 = vmatprep.mubr.f32.mxu0 0.0
  %3249 = vmatmul.mubr.f32.gmra.mrb[0].mxu0 %v2864
  %v3250 = vpop.f32.mrb[0].mxu0
  %v3251 = vadd.f32 0.0, %v3250
  %v3252 = vpop.f32.mrb[0].mxu0
  %3253 = vdwg.mxu0
  %v3254 = vadd.f32 %v2790, %v2936
  %v3255 = vadd.f32 %v2791, %v2941
  %v3256 = vadd.f32 %v2792, %v2946
  %v3257 = vadd.f32 %v2793, %v2951
  %v3258 = vadd.f32 %v2794, %v2956
  %v3259 = vadd.f32 %v2795, %v2961
  %v3260 = vadd.f32 %v2796, %v2966
  %v3261 = vadd.f32 %v2797, %v2971
  %v3262 = vadd.f32 %v2798, %v2976
  %v3263 = vadd.f32 %v2799, %v2981
  %v3264 = vadd.f32 %v2800, %v2986
  %v3265 = vadd.f32 %v2801, %v2991
  %v3266 = vadd.f32 %v2802, %v2996
  %v3267 = vadd.f32 %v2803, %v3001
  %v3268 = vadd.f32 %v2804, %v3006
  %v3269 = vadd.f32 %v2805, %v3011
  %v3270 = vadd.f32 %v2806, %v3016
  %v3271 = vadd.f32 %v2807, %v3021
  %v3272 = vadd.f32 %v2808, %v3026
  %v3273 = vadd.f32 %v2809, %v3031
  %v3274 = vadd.f32 %v2810, %v3036
  %v3275 = vadd.f32 %v2811, %v3041
  %v3276 = vadd.f32 %v2812, %v3046
  %v3277 = vadd.f32 %v2813, %v3051
  %v3278 = vadd.f32 %v2814, %v3056
  %v3279 = vadd.f32 %v2815, %v3061
  %v3280 = vadd.f32 %v2816, %v3066
  %v3281 = vadd.f32 %v2817, %v3071
  %v3282 = vadd.f32 %v2818, %v3076
  %v3283 = vadd.f32 %v2819, %v3081
  %v3284 = vadd.f32 %v2820, %v3086
  %v3285 = vadd.f32 %v2821, %v3091
  %v3286 = vadd.f32 %v2822, %v3096
  %v3287 = vadd.f32 %v2823, %v3101
  %v3288 = vadd.f32 %v2824, %v3106
  %v3289 = vadd.f32 %v2825, %v3111
  %v3290 = vadd.f32 %v2826, %v3116
  %v3291 = vadd.f32 %v2827, %v3121
  %v3292 = vadd.f32 %v2828, %v3126
  %v3293 = vadd.f32 %v2829, %v3131
  %v3294 = vadd.f32 %v2830, %v3136
  %v3295 = vadd.f32 %v2831, %v3141
  %v3296 = vadd.f32 %v2832, %v3146
  %v3297 = vadd.f32 %v2833, %v3151
  %v3298 = vadd.f32 %v2834, %v3156
  %v3299 = vadd.f32 %v2835, %v3161
  %v3300 = vadd.f32 %v2836, %v3166
  %v3301 = vadd.f32 %v2837, %v3171
  %v3302 = vadd.f32 %v2838, %v3176
  %v3303 = vadd.f32 %v2839, %v3181
  %v3304 = vadd.f32 %v2840, %v3186
  %v3305 = vadd.f32 %v2841, %v3191
  %v3306 = vadd.f32 %v2842, %v3196
  %v3307 = vadd.f32 %v2843, %v3201
  %v3308 = vadd.f32 %v2844, %v3206
  %v3309 = vadd.f32 %v2845, %v3211
  %v3310 = vadd.f32 %v2846, %v3216
  %v3311 = vadd.f32 %v2847, %v3221
  %v3312 = vadd.f32 %v2848, %v3226
  %v3313 = vadd.f32 %v2849, %v3231
  %v3314 = vadd.f32 %v2850, %v3236
  %v3315 = vadd.f32 %v2851, %v3241
  %v3316 = vadd.f32 %v2852, %v3246
  %v3317 = vadd.f32 %v2853, %v3251
  %v3320 = vrot.slane %v762, 1
  %v3321 = vrot.slane %v763, 1
  %v3322 = vsel %vm918, %v3320, %v3321
  %v3323 = vrot.slane %v764, 1
  %v3324 = vsel %vm918, %v3321, %v3323
  %v3325 = vrot.slane %v816, 1
  %v3326 = vrot.slane %v817, 1
  %v3327 = vsel %vm918, %v3325, %v3326
  %v3328 = vrot.slane %v818, 1
  %v3329 = vsel %vm918, %v3326, %v3328
  %v3330 = vsel %vm1079, %v3322, 0
  %v3332 = vsel %vm1079, %v3324, 0
  %v3334 = vsel %vm1079, %v3327, 0
  %v3336 = vsel %vm1079, %v3329, 0
  %v3339 = vsel %vm1208, %v132, 0
  %3341 = vmatprep.subr.mxu0 0.0
  %3342 = vmatpush1.msra.mxu0 %v3339
  %3343 = vmatprep.subr.mxu0 0.0
  %3344 = vmatpush1.msra.mxu0 0.0
  %3345 = vmatprep.subr.mxu0 0.0
  %3346 = vmatpush1.msra.mxu0 0.0
  %3347 = vmatprep.subr.mxu0 0.0
  %3348 = vmatpush1.msra.mxu0 0.0
  %3349 = vmatprep.subr.mxu0 0.0
  %3350 = vmatpush1.msra.mxu0 0.0
  %3351 = vmatprep.subr.mxu0 0.0
  %3352 = vmatpush1.msra.mxu0 0.0
  %3353 = vmatprep.subr.mxu0 0.0
  %3354 = vmatpush1.msra.mxu0 0.0
  %3355 = vmatprep.subr.mxu0 0.0
  %3356 = vmatpush1.msra.mxu0 0.0
  %3357 = vmatprep.subr.mxu0 0.0
  %3358 = vmatpush1.msra.mxu0 0.0
  %3359 = vmatprep.subr.mxu0 0.0
  %3360 = vmatpush1.msra.mxu0 0.0
  %3361 = vmatprep.subr.mxu0 0.0
  %3362 = vmatpush1.msra.mxu0 0.0
  %3363 = vmatprep.subr.mxu0 0.0
  %3364 = vmatpush1.msra.mxu0 0.0
  %3365 = vmatprep.subr.mxu0 0.0
  %3366 = vmatpush1.msra.mxu0 0.0
  %3367 = vmatprep.subr.mxu0 0.0
  %3368 = vmatpush1.msra.mxu0 0.0
  %3369 = vmatprep.subr.mxu0 0.0
  %3370 = vmatpush1.msra.mxu0 0.0
  %3371 = vmatprep.subr.mxu0 0.0
  %3372 = vmatpush1.msra.mxu0 0.0
  %3373 = vmatprep.subr.mxu0 0.0
  %3374 = vmatpush1.msra.mxu0 0.0
  %3375 = vmatprep.subr.mxu0 0.0
  %3376 = vmatpush1.msra.mxu0 0.0
  %3377 = vmatprep.subr.mxu0 0.0
  %3378 = vmatpush1.msra.mxu0 0.0
  %3379 = vmatprep.subr.mxu0 0.0
  %3380 = vmatpush1.msra.mxu0 0.0
  %3381 = vmatprep.subr.mxu0 0.0
  %3382 = vmatpush1.msra.mxu0 0.0
  %3383 = vmatprep.subr.mxu0 0.0
  %3384 = vmatpush1.msra.mxu0 0.0
  %3385 = vmatprep.subr.mxu0 0.0
  %3386 = vmatpush1.msra.mxu0 0.0
  %3387 = vmatprep.subr.mxu0 0.0
  %3388 = vmatpush1.msra.mxu0 0.0
  %3389 = vmatprep.subr.mxu0 0.0
  %3390 = vmatpush1.msra.mxu0 0.0
  %3391 = vmatprep.subr.mxu0 0.0
  %3392 = vmatpush1.msra.mxu0 0.0
  %3393 = vmatprep.subr.mxu0 0.0
  %3394 = vmatpush1.msra.mxu0 0.0
  %3395 = vmatprep.subr.mxu0 0.0
  %3396 = vmatpush1.msra.mxu0 0.0
  %3397 = vmatprep.subr.mxu0 0.0
  %3398 = vmatpush1.msra.mxu0 0.0
  %3399 = vmatprep.subr.mxu0 0.0
  %3400 = vmatpush1.msra.mxu0 0.0
  %3401 = vmatprep.subr.mxu0 0.0
  %3402 = vmatpush1.msra.mxu0 0.0
  %3403 = vmatprep.subr.mxu0 0.0
  %3404 = vmatpush1.msra.mxu0 0.0
  %3405 = vmatprep.mubr.f32.mxu0 0.0
  %3406 = vmatmul.mubr.f32.gmra.mrb[0].mxu0 %v1084
  %v3407 = vpop.f32.mrb[0].mxu0
  %v3408 = vadd.f32 0.0, %v3407
  %v3409 = vpop.f32.mrb[0].mxu0
  %3410 = vmatprep.mubr.f32.mxu0 0.0
  %3411 = vmatmul.mubr.f32.gmra.mrb[0].mxu0 %v1086
  %v3412 = vpop.f32.mrb[0].mxu0
  %v3413 = vadd.f32 0.0, %v3412
  %v3414 = vpop.f32.mrb[0].mxu0
  %3415 = vmatprep.mubr.f32.mxu0 0.0
  %3416 = vmatmul.mubr.f32.gmra.mrb[0].mxu0 %v1088
  %v3417 = vpop.f32.mrb[0].mxu0
  %v3418 = vadd.f32 0.0, %v3417
  %v3419 = vpop.f32.mrb[0].mxu0
  %3420 = vmatprep.mubr.f32.mxu0 0.0
  %3421 = vmatmul.mubr.f32.gmra.mrb[0].mxu0 %v1090
  %v3422 = vpop.f32.mrb[0].mxu0
  %v3423 = vadd.f32 0.0, %v3422
  %v3424 = vpop.f32.mrb[0].mxu0
  %3425 = vmatprep.mubr.f32.mxu0 0.0
  %3426 = vmatmul.mubr.f32.gmra.mrb[0].mxu0 %v1092
  %v3427 = vpop.f32.mrb[0].mxu0
  %v3428 = vadd.f32 0.0, %v3427
  %v3429 = vpop.f32.mrb[0].mxu0
  %3430 = vmatprep.mubr.f32.mxu0 0.0
  %3431 = vmatmul.mubr.f32.gmra.mrb[0].mxu0 %v1094
  %v3432 = vpop.f32.mrb[0].mxu0
  %v3433 = vadd.f32 0.0, %v3432
  %v3434 = vpop.f32.mrb[0].mxu0
  %3435 = vmatprep.mubr.f32.mxu0 0.0
  %3436 = vmatmul.mubr.f32.gmra.mrb[0].mxu0 %v1096
  %v3437 = vpop.f32.mrb[0].mxu0
  %v3438 = vadd.f32 0.0, %v3437
  %v3439 = vpop.f32.mrb[0].mxu0
  %3440 = vmatprep.mubr.f32.mxu0 0.0
  %3441 = vmatmul.mubr.f32.gmra.mrb[0].mxu0 %v1098
  %v3442 = vpop.f32.mrb[0].mxu0
  %v3443 = vadd.f32 0.0, %v3442
  %v3444 = vpop.f32.mrb[0].mxu0
  %3445 = vmatprep.mubr.f32.mxu0 0.0
  %3446 = vmatmul.mubr.f32.gmra.mrb[0].mxu0 %v1100
  %v3447 = vpop.f32.mrb[0].mxu0
  %v3448 = vadd.f32 0.0, %v3447
  %v3449 = vpop.f32.mrb[0].mxu0
  %3450 = vmatprep.mubr.f32.mxu0 0.0
  %3451 = vmatmul.mubr.f32.gmra.mrb[0].mxu0 %v1102
  %v3452 = vpop.f32.mrb[0].mxu0
  %v3453 = vadd.f32 0.0, %v3452
  %v3454 = vpop.f32.mrb[0].mxu0
  %3455 = vmatprep.mubr.f32.mxu0 0.0
  %3456 = vmatmul.mubr.f32.gmra.mrb[0].mxu0 %v1104
  %v3457 = vpop.f32.mrb[0].mxu0
  %v3458 = vadd.f32 0.0, %v3457
  %v3459 = vpop.f32.mrb[0].mxu0
  %3460 = vmatprep.mubr.f32.mxu0 0.0
  %3461 = vmatmul.mubr.f32.gmra.mrb[0].mxu0 %v1106
  %v3462 = vpop.f32.mrb[0].mxu0
  %v3463 = vadd.f32 0.0, %v3462
  %v3464 = vpop.f32.mrb[0].mxu0
  %3465 = vmatprep.mubr.f32.mxu0 0.0
  %3466 = vmatmul.mubr.f32.gmra.mrb[0].mxu0 %v1108
  %v3467 = vpop.f32.mrb[0].mxu0
  %v3468 = vadd.f32 0.0, %v3467
  %v3469 = vpop.f32.mrb[0].mxu0
  %3470 = vmatprep.mubr.f32.mxu0 0.0
  %3471 = vmatmul.mubr.f32.gmra.mrb[0].mxu0 %v1110
  %v3472 = vpop.f32.mrb[0].mxu0
  %v3473 = vadd.f32 0.0, %v3472
  %v3474 = vpop.f32.mrb[0].mxu0
  %3475 = vmatprep.mubr.f32.mxu0 0.0
  %3476 = vmatmul.mubr.f32.gmra.mrb[0].mxu0 %v1112
  %v3477 = vpop.f32.mrb[0].mxu0
  %v3478 = vadd.f32 0.0, %v3477
  %v3479 = vpop.f32.mrb[0].mxu0
  %3480 = vmatprep.mubr.f32.mxu0 0.0
  %3481 = vmatmul.mubr.f32.gmra.mrb[0].mxu0 %v1114
  %v3482 = vpop.f32.mrb[0].mxu0
  %v3483 = vadd.f32 0.0, %v3482
  %v3484 = vpop.f32.mrb[0].mxu0
  %3485 = vmatprep.mubr.f32.mxu0 0.0
  %3486 = vmatmul.mubr.f32.gmra.mrb[0].mxu0 %v1116
  %v3487 = vpop.f32.mrb[0].mxu0
  %v3488 = vadd.f32 0.0, %v3487
  %v3489 = vpop.f32.mrb[0].mxu0
  %3490 = vmatprep.mubr.f32.mxu0 0.0
  %3491 = vmatmul.mubr.f32.gmra.mrb[0].mxu0 %v1118
  %v3492 = vpop.f32.mrb[0].mxu0
  %v3493 = vadd.f32 0.0, %v3492
  %v3494 = vpop.f32.mrb[0].mxu0
  %3495 = vmatprep.mubr.f32.mxu0 0.0
  %3496 = vmatmul.mubr.f32.gmra.mrb[0].mxu0 %v1120
  %v3497 = vpop.f32.mrb[0].mxu0
  %v3498 = vadd.f32 0.0, %v3497
  %v3499 = vpop.f32.mrb[0].mxu0
  %3500 = vmatprep.mubr.f32.mxu0 0.0
  %3501 = vmatmul.mubr.f32.gmra.mrb[0].mxu0 %v1122
  %v3502 = vpop.f32.mrb[0].mxu0
  %v3503 = vadd.f32 0.0, %v3502
  %v3504 = vpop.f32.mrb[0].mxu0
  %3505 = vmatprep.mubr.f32.mxu0 0.0
  %3506 = vmatmul.mubr.f32.gmra.mrb[0].mxu0 %v1124
  %v3507 = vpop.f32.mrb[0].mxu0
  %v3508 = vadd.f32 0.0, %v3507
  %v3509 = vpop.f32.mrb[0].mxu0
  %3510 = vmatprep.mubr.f32.mxu0 0.0
  %3511 = vmatmul.mubr.f32.gmra.mrb[0].mxu0 %v1126
  %v3512 = vpop.f32.mrb[0].mxu0
  %v3513 = vadd.f32 0.0, %v3512
  %v3514 = vpop.f32.mrb[0].mxu0
  %3515 = vmatprep.mubr.f32.mxu0 0.0
  %3516 = vmatmul.mubr.f32.gmra.mrb[0].mxu0 %v1128
  %v3517 = vpop.f32.mrb[0].mxu0
  %v3518 = vadd.f32 0.0, %v3517
  %v3519 = vpop.f32.mrb[0].mxu0
  %3520 = vmatprep.mubr.f32.mxu0 0.0
  %3521 = vmatmul.mubr.f32.gmra.mrb[0].mxu0 %v1130
  %v3522 = vpop.f32.mrb[0].mxu0
  %v3523 = vadd.f32 0.0, %v3522
  %v3524 = vpop.f32.mrb[0].mxu0
  %3525 = vmatprep.mubr.f32.mxu0 0.0
  %3526 = vmatmul.mubr.f32.gmra.mrb[0].mxu0 %v1132
  %v3527 = vpop.f32.mrb[0].mxu0
  %v3528 = vadd.f32 0.0, %v3527
  %v3529 = vpop.f32.mrb[0].mxu0
  %3530 = vmatprep.mubr.f32.mxu0 0.0
  %3531 = vmatmul.mubr.f32.gmra.mrb[0].mxu0 %v1134
  %v3532 = vpop.f32.mrb[0].mxu0
  %v3533 = vadd.f32 0.0, %v3532
  %v3534 = vpop.f32.mrb[0].mxu0
  %3535 = vmatprep.mubr.f32.mxu0 0.0
  %3536 = vmatmul.mubr.f32.gmra.mrb[0].mxu0 %v1136
  %v3537 = vpop.f32.mrb[0].mxu0
  %v3538 = vadd.f32 0.0, %v3537
  %v3539 = vpop.f32.mrb[0].mxu0
  %3540 = vmatprep.mubr.f32.mxu0 0.0
  %3541 = vmatmul.mubr.f32.gmra.mrb[0].mxu0 %v1138
  %v3542 = vpop.f32.mrb[0].mxu0
  %v3543 = vadd.f32 0.0, %v3542
  %v3544 = vpop.f32.mrb[0].mxu0
  %3545 = vmatprep.mubr.f32.mxu0 0.0
  %3546 = vmatmul.mubr.f32.gmra.mrb[0].mxu0 %v1140
  %v3547 = vpop.f32.mrb[0].mxu0
  %v3548 = vadd.f32 0.0, %v3547
  %v3549 = vpop.f32.mrb[0].mxu0
  %3550 = vmatprep.mubr.f32.mxu0 0.0
  %3551 = vmatmul.mubr.f32.gmra.mrb[0].mxu0 %v1142
  %v3552 = vpop.f32.mrb[0].mxu0
  %v3553 = vadd.f32 0.0, %v3552
  %v3554 = vpop.f32.mrb[0].mxu0
  %3555 = vmatprep.mubr.f32.mxu0 0.0
  %3556 = vmatmul.mubr.f32.gmra.mrb[0].mxu0 %v3330
  %v3557 = vpop.f32.mrb[0].mxu0
  %v3558 = vadd.f32 0.0, %v3557
  %v3559 = vpop.f32.mrb[0].mxu0
  %3560 = vmatprep.mubr.f32.mxu0 0.0
  %3561 = vmatmul.mubr.f32.gmra.mrb[0].mxu0 %v3332
  %v3562 = vpop.f32.mrb[0].mxu0
  %v3563 = vadd.f32 0.0, %v3562
  %v3564 = vpop.f32.mrb[0].mxu0
  %3565 = vmatprep.mubr.f32.mxu0 0.0
  %3566 = vmatmul.mubr.f32.gmra.mrb[0].mxu0 %v1148
  %v3567 = vpop.f32.mrb[0].mxu0
  %v3568 = vadd.f32 0.0, %v3567
  %v3569 = vpop.f32.mrb[0].mxu0
  %3570 = vmatprep.mubr.f32.mxu0 0.0
  %3571 = vmatmul.mubr.f32.gmra.mrb[0].mxu0 %v1150
  %v3572 = vpop.f32.mrb[0].mxu0
  %v3573 = vadd.f32 0.0, %v3572
  %v3574 = vpop.f32.mrb[0].mxu0
  %3575 = vmatprep.mubr.f32.mxu0 0.0
  %3576 = vmatmul.mubr.f32.gmra.mrb[0].mxu0 %v1152
  %v3577 = vpop.f32.mrb[0].mxu0
  %v3578 = vadd.f32 0.0, %v3577
  %v3579 = vpop.f32.mrb[0].mxu0
  %3580 = vmatprep.mubr.f32.mxu0 0.0
  %3581 = vmatmul.mubr.f32.gmra.mrb[0].mxu0 %v1154
  %v3582 = vpop.f32.mrb[0].mxu0
  %v3583 = vadd.f32 0.0, %v3582
  %v3584 = vpop.f32.mrb[0].mxu0
  %3585 = vmatprep.mubr.f32.mxu0 0.0
  %3586 = vmatmul.mubr.f32.gmra.mrb[0].mxu0 %v1156
  %v3587 = vpop.f32.mrb[0].mxu0
  %v3588 = vadd.f32 0.0, %v3587
  %v3589 = vpop.f32.mrb[0].mxu0
  %3590 = vmatprep.mubr.f32.mxu0 0.0
  %3591 = vmatmul.mubr.f32.gmra.mrb[0].mxu0 %v1158
  %v3592 = vpop.f32.mrb[0].mxu0
  %v3593 = vadd.f32 0.0, %v3592
  %v3594 = vpop.f32.mrb[0].mxu0
  %3595 = vmatprep.mubr.f32.mxu0 0.0
  %3596 = vmatmul.mubr.f32.gmra.mrb[0].mxu0 %v1160
  %v3597 = vpop.f32.mrb[0].mxu0
  %v3598 = vadd.f32 0.0, %v3597
  %v3599 = vpop.f32.mrb[0].mxu0
  %3600 = vmatprep.mubr.f32.mxu0 0.0
  %3601 = vmatmul.mubr.f32.gmra.mrb[0].mxu0 %v1162
  %v3602 = vpop.f32.mrb[0].mxu0
  %v3603 = vadd.f32 0.0, %v3602
  %v3604 = vpop.f32.mrb[0].mxu0
  %3605 = vmatprep.mubr.f32.mxu0 0.0
  %3606 = vmatmul.mubr.f32.gmra.mrb[0].mxu0 %v1164
  %v3607 = vpop.f32.mrb[0].mxu0
  %v3608 = vadd.f32 0.0, %v3607
  %v3609 = vpop.f32.mrb[0].mxu0
  %3610 = vmatprep.mubr.f32.mxu0 0.0
  %3611 = vmatmul.mubr.f32.gmra.mrb[0].mxu0 %v1166
  %v3612 = vpop.f32.mrb[0].mxu0
  %v3613 = vadd.f32 0.0, %v3612
  %v3614 = vpop.f32.mrb[0].mxu0
  %3615 = vmatprep.mubr.f32.mxu0 0.0
  %3616 = vmatmul.mubr.f32.gmra.mrb[0].mxu0 %v1168
  %v3617 = vpop.f32.mrb[0].mxu0
  %v3618 = vadd.f32 0.0, %v3617
  %v3619 = vpop.f32.mrb[0].mxu0
  %3620 = vmatprep.mubr.f32.mxu0 0.0
  %3621 = vmatmul.mubr.f32.gmra.mrb[0].mxu0 %v1170
  %v3622 = vpop.f32.mrb[0].mxu0
  %v3623 = vadd.f32 0.0, %v3622
  %v3624 = vpop.f32.mrb[0].mxu0
  %3625 = vmatprep.mubr.f32.mxu0 0.0
  %3626 = vmatmul.mubr.f32.gmra.mrb[0].mxu0 %v1172
  %v3627 = vpop.f32.mrb[0].mxu0
  %v3628 = vadd.f32 0.0, %v3627
  %v3629 = vpop.f32.mrb[0].mxu0
  %3630 = vmatprep.mubr.f32.mxu0 0.0
  %3631 = vmatmul.mubr.f32.gmra.mrb[0].mxu0 %v1174
  %v3632 = vpop.f32.mrb[0].mxu0
  %v3633 = vadd.f32 0.0, %v3632
  %v3634 = vpop.f32.mrb[0].mxu0
  %3635 = vmatprep.mubr.f32.mxu0 0.0
  %3636 = vmatmul.mubr.f32.gmra.mrb[0].mxu0 %v1176
  %v3637 = vpop.f32.mrb[0].mxu0
  %v3638 = vadd.f32 0.0, %v3637
  %v3639 = vpop.f32.mrb[0].mxu0
  %3640 = vmatprep.mubr.f32.mxu0 0.0
  %3641 = vmatmul.mubr.f32.gmra.mrb[0].mxu0 %v1178
  %v3642 = vpop.f32.mrb[0].mxu0
  %v3643 = vadd.f32 0.0, %v3642
  %v3644 = vpop.f32.mrb[0].mxu0
  %3645 = vmatprep.mubr.f32.mxu0 0.0
  %3646 = vmatmul.mubr.f32.gmra.mrb[0].mxu0 %v1180
  %v3647 = vpop.f32.mrb[0].mxu0
  %v3648 = vadd.f32 0.0, %v3647
  %v3649 = vpop.f32.mrb[0].mxu0
  %3650 = vmatprep.mubr.f32.mxu0 0.0
  %3651 = vmatmul.mubr.f32.gmra.mrb[0].mxu0 %v1182
  %v3652 = vpop.f32.mrb[0].mxu0
  %v3653 = vadd.f32 0.0, %v3652
  %v3654 = vpop.f32.mrb[0].mxu0
  %3655 = vmatprep.mubr.f32.mxu0 0.0
  %3656 = vmatmul.mubr.f32.gmra.mrb[0].mxu0 %v1184
  %v3657 = vpop.f32.mrb[0].mxu0
  %v3658 = vadd.f32 0.0, %v3657
  %v3659 = vpop.f32.mrb[0].mxu0
  %3660 = vmatprep.mubr.f32.mxu0 0.0
  %3661 = vmatmul.mubr.f32.gmra.mrb[0].mxu0 %v1186
  %v3662 = vpop.f32.mrb[0].mxu0
  %v3663 = vadd.f32 0.0, %v3662
  %v3664 = vpop.f32.mrb[0].mxu0
  %3665 = vmatprep.mubr.f32.mxu0 0.0
  %3666 = vmatmul.mubr.f32.gmra.mrb[0].mxu0 %v1188
  %v3667 = vpop.f32.mrb[0].mxu0
  %v3668 = vadd.f32 0.0, %v3667
  %v3669 = vpop.f32.mrb[0].mxu0
  %3670 = vmatprep.mubr.f32.mxu0 0.0
  %3671 = vmatmul.mubr.f32.gmra.mrb[0].mxu0 %v1190
  %v3672 = vpop.f32.mrb[0].mxu0
  %v3673 = vadd.f32 0.0, %v3672
  %v3674 = vpop.f32.mrb[0].mxu0
  %3675 = vmatprep.mubr.f32.mxu0 0.0
  %3676 = vmatmul.mubr.f32.gmra.mrb[0].mxu0 %v1192
  %v3677 = vpop.f32.mrb[0].mxu0
  %v3678 = vadd.f32 0.0, %v3677
  %v3679 = vpop.f32.mrb[0].mxu0
  %3680 = vmatprep.mubr.f32.mxu0 0.0
  %3681 = vmatmul.mubr.f32.gmra.mrb[0].mxu0 %v1194
  %v3682 = vpop.f32.mrb[0].mxu0
  %v3683 = vadd.f32 0.0, %v3682
  %v3684 = vpop.f32.mrb[0].mxu0
  %3685 = vmatprep.mubr.f32.mxu0 0.0
  %3686 = vmatmul.mubr.f32.gmra.mrb[0].mxu0 %v1196
  %v3687 = vpop.f32.mrb[0].mxu0
  %v3688 = vadd.f32 0.0, %v3687
  %v3689 = vpop.f32.mrb[0].mxu0
  %3690 = vmatprep.mubr.f32.mxu0 0.0
  %3691 = vmatmul.mubr.f32.gmra.mrb[0].mxu0 %v1198
  %v3692 = vpop.f32.mrb[0].mxu0
  %v3693 = vadd.f32 0.0, %v3692
  %v3694 = vpop.f32.mrb[0].mxu0
  %3695 = vmatprep.mubr.f32.mxu0 0.0
  %3696 = vmatmul.mubr.f32.gmra.mrb[0].mxu0 %v1200
  %v3697 = vpop.f32.mrb[0].mxu0
  %v3698 = vadd.f32 0.0, %v3697
  %v3699 = vpop.f32.mrb[0].mxu0
  %3700 = vmatprep.mubr.f32.mxu0 0.0
  %3701 = vmatmul.mubr.f32.gmra.mrb[0].mxu0 %v1202
  %v3702 = vpop.f32.mrb[0].mxu0
  %v3703 = vadd.f32 0.0, %v3702
  %v3704 = vpop.f32.mrb[0].mxu0
  %3705 = vmatprep.mubr.f32.mxu0 0.0
  %3706 = vmatmul.mubr.f32.gmra.mrb[0].mxu0 %v1204
  %v3707 = vpop.f32.mrb[0].mxu0
  %v3708 = vadd.f32 0.0, %v3707
  %v3709 = vpop.f32.mrb[0].mxu0
  %3710 = vmatprep.mubr.f32.mxu0 0.0
  %3711 = vmatmul.mubr.f32.gmra.mrb[0].mxu0 %v1206
  %v3712 = vpop.f32.mrb[0].mxu0
  %v3713 = vadd.f32 0.0, %v3712
  %v3714 = vpop.f32.mrb[0].mxu0
  %3715 = vmatprep.mubr.f32.mxu0 0.0
  %3716 = vmatmul.mubr.f32.gmra.mrb[0].mxu0 %v3334
  %v3717 = vpop.f32.mrb[0].mxu0
  %v3718 = vadd.f32 0.0, %v3717
  %v3719 = vpop.f32.mrb[0].mxu0
  %3720 = vmatprep.mubr.f32.mxu0 0.0
  %3721 = vmatmul.mubr.f32.gmra.mrb[0].mxu0 %v3336
  %v3722 = vpop.f32.mrb[0].mxu0
  %v3723 = vadd.f32 0.0, %v3722
  %v3724 = vpop.f32.mrb[0].mxu0
  %3725 = vdwg.mxu0
  %v3726 = vadd.f32 %v3254, %v3408
  %v3727 = vadd.f32 %v3255, %v3413
  %v3728 = vadd.f32 %v3256, %v3418
  %v3729 = vadd.f32 %v3257, %v3423
  %v3730 = vadd.f32 %v3258, %v3428
  %v3731 = vadd.f32 %v3259, %v3433
  %v3732 = vadd.f32 %v3260, %v3438
  %v3733 = vadd.f32 %v3261, %v3443
  %v3734 = vadd.f32 %v3262, %v3448
  %v3735 = vadd.f32 %v3263, %v3453
  %v3736 = vadd.f32 %v3264, %v3458
  %v3737 = vadd.f32 %v3265, %v3463
  %v3738 = vadd.f32 %v3266, %v3468
  %v3739 = vadd.f32 %v3267, %v3473
  %v3740 = vadd.f32 %v3268, %v3478
  %v3741 = vadd.f32 %v3269, %v3483
  %v3742 = vadd.f32 %v3270, %v3488
  %v3743 = vadd.f32 %v3271, %v3493
  %v3744 = vadd.f32 %v3272, %v3498
  %v3745 = vadd.f32 %v3273, %v3503
  %v3746 = vadd.f32 %v3274, %v3508
  %v3747 = vadd.f32 %v3275, %v3513
  %v3748 = vadd.f32 %v3276, %v3518
  %v3749 = vadd.f32 %v3277, %v3523
  %v3750 = vadd.f32 %v3278, %v3528
  %v3751 = vadd.f32 %v3279, %v3533
  %v3752 = vadd.f32 %v3280, %v3538
  %v3753 = vadd.f32 %v3281, %v3543
  %v3754 = vadd.f32 %v3282, %v3548
  %v3755 = vadd.f32 %v3283, %v3553
  %v3756 = vadd.f32 %v3284, %v3558
  %v3757 = vadd.f32 %v3285, %v3563
  %v3758 = vadd.f32 %v3286, %v3568
  %v3759 = vadd.f32 %v3287, %v3573
  %v3760 = vadd.f32 %v3288, %v3578
  %v3761 = vadd.f32 %v3289, %v3583
  %v3762 = vadd.f32 %v3290, %v3588
  %v3763 = vadd.f32 %v3291, %v3593
  %v3764 = vadd.f32 %v3292, %v3598
  %v3765 = vadd.f32 %v3293, %v3603
  %v3766 = vadd.f32 %v3294, %v3608
  %v3767 = vadd.f32 %v3295, %v3613
  %v3768 = vadd.f32 %v3296, %v3618
  %v3769 = vadd.f32 %v3297, %v3623
  %v3770 = vadd.f32 %v3298, %v3628
  %v3771 = vadd.f32 %v3299, %v3633
  %v3772 = vadd.f32 %v3300, %v3638
  %v3773 = vadd.f32 %v3301, %v3643
  %v3774 = vadd.f32 %v3302, %v3648
  %v3775 = vadd.f32 %v3303, %v3653
  %v3776 = vadd.f32 %v3304, %v3658
  %v3777 = vadd.f32 %v3305, %v3663
  %v3778 = vadd.f32 %v3306, %v3668
  %v3779 = vadd.f32 %v3307, %v3673
  %v3780 = vadd.f32 %v3308, %v3678
  %v3781 = vadd.f32 %v3309, %v3683
  %v3782 = vadd.f32 %v3310, %v3688
  %v3783 = vadd.f32 %v3311, %v3693
  %v3784 = vadd.f32 %v3312, %v3698
  %v3785 = vadd.f32 %v3313, %v3703
  %v3786 = vadd.f32 %v3314, %v3708
  %v3787 = vadd.f32 %v3315, %v3713
  %v3788 = vadd.f32 %v3316, %v3718
  %v3789 = vadd.f32 %v3317, %v3723
  %v3790 = vrot.slane %v762, 2
  %v3791 = vrot.slane %v763, 2
  %v3792 = vsel %vm2113, %v3790, %v3791
  %v3793 = vrot.slane %v764, 2
  %v3794 = vsel %vm2113, %v3791, %v3793
  %v3795 = vrot.slane %v816, 2
  %v3796 = vrot.slane %v817, 2
  %v3797 = vsel %vm2113, %v3795, %v3796
  %v3798 = vrot.slane %v818, 2
  %v3799 = vsel %vm2113, %v3796, %v3798
  %v3800 = vsel %vm1079, %v3792, 0
  %v3802 = vsel %vm1079, %v3794, 0
  %v3804 = vsel %vm1079, %v3797, 0
  %v3806 = vsel %vm1079, %v3799, 0
  %v3809 = vsel %vm1208, %v133, 0
  %3811 = vmatprep.subr.mxu0 0.0
  %3812 = vmatpush1.msra.mxu0 %v3809
  %3813 = vmatprep.subr.mxu0 0.0
  %3814 = vmatpush1.msra.mxu0 0.0
  %3815 = vmatprep.subr.mxu0 0.0
  %3816 = vmatpush1.msra.mxu0 0.0
  %3817 = vmatprep.subr.mxu0 0.0
  %3818 = vmatpush1.msra.mxu0 0.0
  %3819 = vmatprep.subr.mxu0 0.0
  %3820 = vmatpush1.msra.mxu0 0.0
  %3821 = vmatprep.subr.mxu0 0.0
  %3822 = vmatpush1.msra.mxu0 0.0
  %3823 = vmatprep.subr.mxu0 0.0
  %3824 = vmatpush1.msra.mxu0 0.0
  %3825 = vmatprep.subr.mxu0 0.0
  %3826 = vmatpush1.msra.mxu0 0.0
  %3827 = vmatprep.subr.mxu0 0.0
  %3828 = vmatpush1.msra.mxu0 0.0
  %3829 = vmatprep.subr.mxu0 0.0
  %3830 = vmatpush1.msra.mxu0 0.0
  %3831 = vmatprep.subr.mxu0 0.0
  %3832 = vmatpush1.msra.mxu0 0.0
  %3833 = vmatprep.subr.mxu0 0.0
  %3834 = vmatpush1.msra.mxu0 0.0
  %3835 = vmatprep.subr.mxu0 0.0
  %3836 = vmatpush1.msra.mxu0 0.0
  %3837 = vmatprep.subr.mxu0 0.0
  %3838 = vmatpush1.msra.mxu0 0.0
  %3839 = vmatprep.subr.mxu0 0.0
  %3840 = vmatpush1.msra.mxu0 0.0
  %3841 = vmatprep.subr.mxu0 0.0
  %3842 = vmatpush1.msra.mxu0 0.0
  %3843 = vmatprep.subr.mxu0 0.0
  %3844 = vmatpush1.msra.mxu0 0.0
  %3845 = vmatprep.subr.mxu0 0.0
  %3846 = vmatpush1.msra.mxu0 0.0
  %3847 = vmatprep.subr.mxu0 0.0
  %3848 = vmatpush1.msra.mxu0 0.0
  %3849 = vmatprep.subr.mxu0 0.0
  %3850 = vmatpush1.msra.mxu0 0.0
  %3851 = vmatprep.subr.mxu0 0.0
  %3852 = vmatpush1.msra.mxu0 0.0
  %3853 = vmatprep.subr.mxu0 0.0
  %3854 = vmatpush1.msra.mxu0 0.0
  %3855 = vmatprep.subr.mxu0 0.0
  %3856 = vmatpush1.msra.mxu0 0.0
  %3857 = vmatprep.subr.mxu0 0.0
  %3858 = vmatpush1.msra.mxu0 0.0
  %3859 = vmatprep.subr.mxu0 0.0
  %3860 = vmatpush1.msra.mxu0 0.0
  %3861 = vmatprep.subr.mxu0 0.0
  %3862 = vmatpush1.msra.mxu0 0.0
  %3863 = vmatprep.subr.mxu0 0.0
  %3864 = vmatpush1.msra.mxu0 0.0
  %3865 = vmatprep.subr.mxu0 0.0
  %3866 = vmatpush1.msra.mxu0 0.0
  %3867 = vmatprep.subr.mxu0 0.0
  %3868 = vmatpush1.msra.mxu0 0.0
  %3869 = vmatprep.subr.mxu0 0.0
  %3870 = vmatpush1.msra.mxu0 0.0
  %3871 = vmatprep.subr.mxu0 0.0
  %3872 = vmatpush1.msra.mxu0 0.0
  %3873 = vmatprep.subr.mxu0 0.0
  %3874 = vmatpush1.msra.mxu0 0.0
  %3875 = vmatprep.mubr.f32.mxu0 0.0
  %3876 = vmatmul.mubr.f32.gmra.mrb[0].mxu0 %v2278
  %v3877 = vpop.f32.mrb[0].mxu0
  %v3878 = vadd.f32 0.0, %v3877
  %v3879 = vpop.f32.mrb[0].mxu0
  %3880 = vmatprep.mubr.f32.mxu0 0.0
  %3881 = vmatmul.mubr.f32.gmra.mrb[0].mxu0 %v2280
  %v3882 = vpop.f32.mrb[0].mxu0
  %v3883 = vadd.f32 0.0, %v3882
  %v3884 = vpop.f32.mrb[0].mxu0
  %3885 = vmatprep.mubr.f32.mxu0 0.0
  %3886 = vmatmul.mubr.f32.gmra.mrb[0].mxu0 %v2282
  %v3887 = vpop.f32.mrb[0].mxu0
  %v3888 = vadd.f32 0.0, %v3887
  %v3889 = vpop.f32.mrb[0].mxu0
  %3890 = vmatprep.mubr.f32.mxu0 0.0
  %3891 = vmatmul.mubr.f32.gmra.mrb[0].mxu0 %v2284
  %v3892 = vpop.f32.mrb[0].mxu0
  %v3893 = vadd.f32 0.0, %v3892
  %v3894 = vpop.f32.mrb[0].mxu0
  %3895 = vmatprep.mubr.f32.mxu0 0.0
  %3896 = vmatmul.mubr.f32.gmra.mrb[0].mxu0 %v2286
  %v3897 = vpop.f32.mrb[0].mxu0
  %v3898 = vadd.f32 0.0, %v3897
  %v3899 = vpop.f32.mrb[0].mxu0
  %3900 = vmatprep.mubr.f32.mxu0 0.0
  %3901 = vmatmul.mubr.f32.gmra.mrb[0].mxu0 %v2288
  %v3902 = vpop.f32.mrb[0].mxu0
  %v3903 = vadd.f32 0.0, %v3902
  %v3904 = vpop.f32.mrb[0].mxu0
  %3905 = vmatprep.mubr.f32.mxu0 0.0
  %3906 = vmatmul.mubr.f32.gmra.mrb[0].mxu0 %v2290
  %v3907 = vpop.f32.mrb[0].mxu0
  %v3908 = vadd.f32 0.0, %v3907
  %v3909 = vpop.f32.mrb[0].mxu0
  %3910 = vmatprep.mubr.f32.mxu0 0.0
  %3911 = vmatmul.mubr.f32.gmra.mrb[0].mxu0 %v2292
  %v3912 = vpop.f32.mrb[0].mxu0
  %v3913 = vadd.f32 0.0, %v3912
  %v3914 = vpop.f32.mrb[0].mxu0
  %3915 = vmatprep.mubr.f32.mxu0 0.0
  %3916 = vmatmul.mubr.f32.gmra.mrb[0].mxu0 %v2294
  %v3917 = vpop.f32.mrb[0].mxu0
  %v3918 = vadd.f32 0.0, %v3917
  %v3919 = vpop.f32.mrb[0].mxu0
  %3920 = vmatprep.mubr.f32.mxu0 0.0
  %3921 = vmatmul.mubr.f32.gmra.mrb[0].mxu0 %v2296
  %v3922 = vpop.f32.mrb[0].mxu0
  %v3923 = vadd.f32 0.0, %v3922
  %v3924 = vpop.f32.mrb[0].mxu0
  %3925 = vmatprep.mubr.f32.mxu0 0.0
  %3926 = vmatmul.mubr.f32.gmra.mrb[0].mxu0 %v2298
  %v3927 = vpop.f32.mrb[0].mxu0
  %v3928 = vadd.f32 0.0, %v3927
  %v3929 = vpop.f32.mrb[0].mxu0
  %3930 = vmatprep.mubr.f32.mxu0 0.0
  %3931 = vmatmul.mubr.f32.gmra.mrb[0].mxu0 %v2300
  %v3932 = vpop.f32.mrb[0].mxu0
  %v3933 = vadd.f32 0.0, %v3932
  %v3934 = vpop.f32.mrb[0].mxu0
  %3935 = vmatprep.mubr.f32.mxu0 0.0
  %3936 = vmatmul.mubr.f32.gmra.mrb[0].mxu0 %v2302
  %v3937 = vpop.f32.mrb[0].mxu0
  %v3938 = vadd.f32 0.0, %v3937
  %v3939 = vpop.f32.mrb[0].mxu0
  %3940 = vmatprep.mubr.f32.mxu0 0.0
  %3941 = vmatmul.mubr.f32.gmra.mrb[0].mxu0 %v2304
  %v3942 = vpop.f32.mrb[0].mxu0
  %v3943 = vadd.f32 0.0, %v3942
  %v3944 = vpop.f32.mrb[0].mxu0
  %3945 = vmatprep.mubr.f32.mxu0 0.0
  %3946 = vmatmul.mubr.f32.gmra.mrb[0].mxu0 %v2306
  %v3947 = vpop.f32.mrb[0].mxu0
  %v3948 = vadd.f32 0.0, %v3947
  %v3949 = vpop.f32.mrb[0].mxu0
  %3950 = vmatprep.mubr.f32.mxu0 0.0
  %3951 = vmatmul.mubr.f32.gmra.mrb[0].mxu0 %v2308
  %v3952 = vpop.f32.mrb[0].mxu0
  %v3953 = vadd.f32 0.0, %v3952
  %v3954 = vpop.f32.mrb[0].mxu0
  %3955 = vmatprep.mubr.f32.mxu0 0.0
  %3956 = vmatmul.mubr.f32.gmra.mrb[0].mxu0 %v2310
  %v3957 = vpop.f32.mrb[0].mxu0
  %v3958 = vadd.f32 0.0, %v3957
  %v3959 = vpop.f32.mrb[0].mxu0
  %3960 = vmatprep.mubr.f32.mxu0 0.0
  %3961 = vmatmul.mubr.f32.gmra.mrb[0].mxu0 %v2312
  %v3962 = vpop.f32.mrb[0].mxu0
  %v3963 = vadd.f32 0.0, %v3962
  %v3964 = vpop.f32.mrb[0].mxu0
  %3965 = vmatprep.mubr.f32.mxu0 0.0
  %3966 = vmatmul.mubr.f32.gmra.mrb[0].mxu0 %v2314
  %v3967 = vpop.f32.mrb[0].mxu0
  %v3968 = vadd.f32 0.0, %v3967
  %v3969 = vpop.f32.mrb[0].mxu0
  %3970 = vmatprep.mubr.f32.mxu0 0.0
  %3971 = vmatmul.mubr.f32.gmra.mrb[0].mxu0 %v2316
  %v3972 = vpop.f32.mrb[0].mxu0
  %v3973 = vadd.f32 0.0, %v3972
  %v3974 = vpop.f32.mrb[0].mxu0
  %3975 = vmatprep.mubr.f32.mxu0 0.0
  %3976 = vmatmul.mubr.f32.gmra.mrb[0].mxu0 %v2318
  %v3977 = vpop.f32.mrb[0].mxu0
  %v3978 = vadd.f32 0.0, %v3977
  %v3979 = vpop.f32.mrb[0].mxu0
  %3980 = vmatprep.mubr.f32.mxu0 0.0
  %3981 = vmatmul.mubr.f32.gmra.mrb[0].mxu0 %v2320
  %v3982 = vpop.f32.mrb[0].mxu0
  %v3983 = vadd.f32 0.0, %v3982
  %v3984 = vpop.f32.mrb[0].mxu0
  %3985 = vmatprep.mubr.f32.mxu0 0.0
  %3986 = vmatmul.mubr.f32.gmra.mrb[0].mxu0 %v2322
  %v3987 = vpop.f32.mrb[0].mxu0
  %v3988 = vadd.f32 0.0, %v3987
  %v3989 = vpop.f32.mrb[0].mxu0
  %3990 = vmatprep.mubr.f32.mxu0 0.0
  %3991 = vmatmul.mubr.f32.gmra.mrb[0].mxu0 %v2324
  %v3992 = vpop.f32.mrb[0].mxu0
  %v3993 = vadd.f32 0.0, %v3992
  %v3994 = vpop.f32.mrb[0].mxu0
  %3995 = vmatprep.mubr.f32.mxu0 0.0
  %3996 = vmatmul.mubr.f32.gmra.mrb[0].mxu0 %v2326
  %v3997 = vpop.f32.mrb[0].mxu0
  %v3998 = vadd.f32 0.0, %v3997
  %v3999 = vpop.f32.mrb[0].mxu0
  %4000 = vmatprep.mubr.f32.mxu0 0.0
  %4001 = vmatmul.mubr.f32.gmra.mrb[0].mxu0 %v2328
  %v4002 = vpop.f32.mrb[0].mxu0
  %v4003 = vadd.f32 0.0, %v4002
  %v4004 = vpop.f32.mrb[0].mxu0
  %4005 = vmatprep.mubr.f32.mxu0 0.0
  %4006 = vmatmul.mubr.f32.gmra.mrb[0].mxu0 %v2330
  %v4007 = vpop.f32.mrb[0].mxu0
  %v4008 = vadd.f32 0.0, %v4007
  %v4009 = vpop.f32.mrb[0].mxu0
  %4010 = vmatprep.mubr.f32.mxu0 0.0
  %4011 = vmatmul.mubr.f32.gmra.mrb[0].mxu0 %v2332
  %v4012 = vpop.f32.mrb[0].mxu0
  %v4013 = vadd.f32 0.0, %v4012
  %v4014 = vpop.f32.mrb[0].mxu0
  %4015 = vmatprep.mubr.f32.mxu0 0.0
  %4016 = vmatmul.mubr.f32.gmra.mrb[0].mxu0 %v2334
  %v4017 = vpop.f32.mrb[0].mxu0
  %v4018 = vadd.f32 0.0, %v4017
  %v4019 = vpop.f32.mrb[0].mxu0
  %4020 = vmatprep.mubr.f32.mxu0 0.0
  %4021 = vmatmul.mubr.f32.gmra.mrb[0].mxu0 %v2336
  %v4022 = vpop.f32.mrb[0].mxu0
  %v4023 = vadd.f32 0.0, %v4022
  %v4024 = vpop.f32.mrb[0].mxu0
  %4025 = vmatprep.mubr.f32.mxu0 0.0
  %4026 = vmatmul.mubr.f32.gmra.mrb[0].mxu0 %v3800
  %v4027 = vpop.f32.mrb[0].mxu0
  %v4028 = vadd.f32 0.0, %v4027
  %v4029 = vpop.f32.mrb[0].mxu0
  %4030 = vmatprep.mubr.f32.mxu0 0.0
  %4031 = vmatmul.mubr.f32.gmra.mrb[0].mxu0 %v3802
  %v4032 = vpop.f32.mrb[0].mxu0
  %v4033 = vadd.f32 0.0, %v4032
  %v4034 = vpop.f32.mrb[0].mxu0
  %4035 = vmatprep.mubr.f32.mxu0 0.0
  %4036 = vmatmul.mubr.f32.gmra.mrb[0].mxu0 %v2342
  %v4037 = vpop.f32.mrb[0].mxu0
  %v4038 = vadd.f32 0.0, %v4037
  %v4039 = vpop.f32.mrb[0].mxu0
  %4040 = vmatprep.mubr.f32.mxu0 0.0
  %4041 = vmatmul.mubr.f32.gmra.mrb[0].mxu0 %v2344
  %v4042 = vpop.f32.mrb[0].mxu0
  %v4043 = vadd.f32 0.0, %v4042
  %v4044 = vpop.f32.mrb[0].mxu0
  %4045 = vmatprep.mubr.f32.mxu0 0.0
  %4046 = vmatmul.mubr.f32.gmra.mrb[0].mxu0 %v2346
  %v4047 = vpop.f32.mrb[0].mxu0
  %v4048 = vadd.f32 0.0, %v4047
  %v4049 = vpop.f32.mrb[0].mxu0
  %4050 = vmatprep.mubr.f32.mxu0 0.0
  %4051 = vmatmul.mubr.f32.gmra.mrb[0].mxu0 %v2348
  %v4052 = vpop.f32.mrb[0].mxu0
  %v4053 = vadd.f32 0.0, %v4052
  %v4054 = vpop.f32.mrb[0].mxu0
  %4055 = vmatprep.mubr.f32.mxu0 0.0
  %4056 = vmatmul.mubr.f32.gmra.mrb[0].mxu0 %v2350
  %v4057 = vpop.f32.mrb[0].mxu0
  %v4058 = vadd.f32 0.0, %v4057
  %v4059 = vpop.f32.mrb[0].mxu0
  %4060 = vmatprep.mubr.f32.mxu0 0.0
  %4061 = vmatmul.mubr.f32.gmra.mrb[0].mxu0 %v2352
  %v4062 = vpop.f32.mrb[0].mxu0
  %v4063 = vadd.f32 0.0, %v4062
  %v4064 = vpop.f32.mrb[0].mxu0
  %4065 = vmatprep.mubr.f32.mxu0 0.0
  %4066 = vmatmul.mubr.f32.gmra.mrb[0].mxu0 %v2354
  %v4067 = vpop.f32.mrb[0].mxu0
  %v4068 = vadd.f32 0.0, %v4067
  %v4069 = vpop.f32.mrb[0].mxu0
  %4070 = vmatprep.mubr.f32.mxu0 0.0
  %4071 = vmatmul.mubr.f32.gmra.mrb[0].mxu0 %v2356
  %v4072 = vpop.f32.mrb[0].mxu0
  %v4073 = vadd.f32 0.0, %v4072
  %v4074 = vpop.f32.mrb[0].mxu0
  %4075 = vmatprep.mubr.f32.mxu0 0.0
  %4076 = vmatmul.mubr.f32.gmra.mrb[0].mxu0 %v2358
  %v4077 = vpop.f32.mrb[0].mxu0
  %v4078 = vadd.f32 0.0, %v4077
  %v4079 = vpop.f32.mrb[0].mxu0
  %4080 = vmatprep.mubr.f32.mxu0 0.0
  %4081 = vmatmul.mubr.f32.gmra.mrb[0].mxu0 %v2360
  %v4082 = vpop.f32.mrb[0].mxu0
  %v4083 = vadd.f32 0.0, %v4082
  %v4084 = vpop.f32.mrb[0].mxu0
  %4085 = vmatprep.mubr.f32.mxu0 0.0
  %4086 = vmatmul.mubr.f32.gmra.mrb[0].mxu0 %v2362
  %v4087 = vpop.f32.mrb[0].mxu0
  %v4088 = vadd.f32 0.0, %v4087
  %v4089 = vpop.f32.mrb[0].mxu0
  %4090 = vmatprep.mubr.f32.mxu0 0.0
  %4091 = vmatmul.mubr.f32.gmra.mrb[0].mxu0 %v2364
  %v4092 = vpop.f32.mrb[0].mxu0
  %v4093 = vadd.f32 0.0, %v4092
  %v4094 = vpop.f32.mrb[0].mxu0
  %4095 = vmatprep.mubr.f32.mxu0 0.0
  %4096 = vmatmul.mubr.f32.gmra.mrb[0].mxu0 %v2366
  %v4097 = vpop.f32.mrb[0].mxu0
  %v4098 = vadd.f32 0.0, %v4097
  %v4099 = vpop.f32.mrb[0].mxu0
  %4100 = vmatprep.mubr.f32.mxu0 0.0
  %4101 = vmatmul.mubr.f32.gmra.mrb[0].mxu0 %v2368
  %v4102 = vpop.f32.mrb[0].mxu0
  %v4103 = vadd.f32 0.0, %v4102
  %v4104 = vpop.f32.mrb[0].mxu0
  %4105 = vmatprep.mubr.f32.mxu0 0.0
  %4106 = vmatmul.mubr.f32.gmra.mrb[0].mxu0 %v2370
  %v4107 = vpop.f32.mrb[0].mxu0
  %v4108 = vadd.f32 0.0, %v4107
  %v4109 = vpop.f32.mrb[0].mxu0
  %4110 = vmatprep.mubr.f32.mxu0 0.0
  %4111 = vmatmul.mubr.f32.gmra.mrb[0].mxu0 %v2372
  %v4112 = vpop.f32.mrb[0].mxu0
  %v4113 = vadd.f32 0.0, %v4112
  %v4114 = vpop.f32.mrb[0].mxu0
  %4115 = vmatprep.mubr.f32.mxu0 0.0
  %4116 = vmatmul.mubr.f32.gmra.mrb[0].mxu0 %v2374
  %v4117 = vpop.f32.mrb[0].mxu0
  %v4118 = vadd.f32 0.0, %v4117
  %v4119 = vpop.f32.mrb[0].mxu0
  %4120 = vmatprep.mubr.f32.mxu0 0.0
  %4121 = vmatmul.mubr.f32.gmra.mrb[0].mxu0 %v2376
  %v4122 = vpop.f32.mrb[0].mxu0
  %v4123 = vadd.f32 0.0, %v4122
  %v4124 = vpop.f32.mrb[0].mxu0
  %4125 = vmatprep.mubr.f32.mxu0 0.0
  %4126 = vmatmul.mubr.f32.gmra.mrb[0].mxu0 %v2378
  %v4127 = vpop.f32.mrb[0].mxu0
  %v4128 = vadd.f32 0.0, %v4127
  %v4129 = vpop.f32.mrb[0].mxu0
  %4130 = vmatprep.mubr.f32.mxu0 0.0
  %4131 = vmatmul.mubr.f32.gmra.mrb[0].mxu0 %v2380
  %v4132 = vpop.f32.mrb[0].mxu0
  %v4133 = vadd.f32 0.0, %v4132
  %v4134 = vpop.f32.mrb[0].mxu0
  %4135 = vmatprep.mubr.f32.mxu0 0.0
  %4136 = vmatmul.mubr.f32.gmra.mrb[0].mxu0 %v2382
  %v4137 = vpop.f32.mrb[0].mxu0
  %v4138 = vadd.f32 0.0, %v4137
  %v4139 = vpop.f32.mrb[0].mxu0
  %4140 = vmatprep.mubr.f32.mxu0 0.0
  %4141 = vmatmul.mubr.f32.gmra.mrb[0].mxu0 %v2384
  %v4142 = vpop.f32.mrb[0].mxu0
  %v4143 = vadd.f32 0.0, %v4142
  %v4144 = vpop.f32.mrb[0].mxu0
  %4145 = vmatprep.mubr.f32.mxu0 0.0
  %4146 = vmatmul.mubr.f32.gmra.mrb[0].mxu0 %v2386
  %v4147 = vpop.f32.mrb[0].mxu0
  %v4148 = vadd.f32 0.0, %v4147
  %v4149 = vpop.f32.mrb[0].mxu0
  %4150 = vmatprep.mubr.f32.mxu0 0.0
  %4151 = vmatmul.mubr.f32.gmra.mrb[0].mxu0 %v2388
  %v4152 = vpop.f32.mrb[0].mxu0
  %v4153 = vadd.f32 0.0, %v4152
  %v4154 = vpop.f32.mrb[0].mxu0
  %4155 = vmatprep.mubr.f32.mxu0 0.0
  %4156 = vmatmul.mubr.f32.gmra.mrb[0].mxu0 %v2390
  %v4157 = vpop.f32.mrb[0].mxu0
  %v4158 = vadd.f32 0.0, %v4157
  %v4159 = vpop.f32.mrb[0].mxu0
  %4160 = vmatprep.mubr.f32.mxu0 0.0
  %4161 = vmatmul.mubr.f32.gmra.mrb[0].mxu0 %v2392
  %v4162 = vpop.f32.mrb[0].mxu0
  %v4163 = vadd.f32 0.0, %v4162
  %v4164 = vpop.f32.mrb[0].mxu0
  %4165 = vmatprep.mubr.f32.mxu0 0.0
  %4166 = vmatmul.mubr.f32.gmra.mrb[0].mxu0 %v2394
  %v4167 = vpop.f32.mrb[0].mxu0
  %v4168 = vadd.f32 0.0, %v4167
  %v4169 = vpop.f32.mrb[0].mxu0
  %4170 = vmatprep.mubr.f32.mxu0 0.0
  %4171 = vmatmul.mubr.f32.gmra.mrb[0].mxu0 %v2396
  %v4172 = vpop.f32.mrb[0].mxu0
  %v4173 = vadd.f32 0.0, %v4172
  %v4174 = vpop.f32.mrb[0].mxu0
  %4175 = vmatprep.mubr.f32.mxu0 0.0
  %4176 = vmatmul.mubr.f32.gmra.mrb[0].mxu0 %v2398
  %v4177 = vpop.f32.mrb[0].mxu0
  %v4178 = vadd.f32 0.0, %v4177
  %v4179 = vpop.f32.mrb[0].mxu0
  %4180 = vmatprep.mubr.f32.mxu0 0.0
  %4181 = vmatmul.mubr.f32.gmra.mrb[0].mxu0 %v2400
  %v4182 = vpop.f32.mrb[0].mxu0
  %v4183 = vadd.f32 0.0, %v4182
  %v4184 = vpop.f32.mrb[0].mxu0
  %4185 = vmatprep.mubr.f32.mxu0 0.0
  %4186 = vmatmul.mubr.f32.gmra.mrb[0].mxu0 %v3804
  %v4187 = vpop.f32.mrb[0].mxu0
  %v4188 = vadd.f32 0.0, %v4187
  %v4189 = vpop.f32.mrb[0].mxu0
  %4190 = vmatprep.mubr.f32.mxu0 0.0
  %4191 = vmatmul.mubr.f32.gmra.mrb[0].mxu0 %v3806
  %v4192 = vpop.f32.mrb[0].mxu0
  %v4193 = vadd.f32 0.0, %v4192
  %v4194 = vpop.f32.mrb[0].mxu0
  %4195 = vdwg.mxu0
  %v4196 = vadd.f32 %v3726, %v3878
  %v4197 = vadd.f32 %v3727, %v3883
  %v4198 = vadd.f32 %v3728, %v3888
  %v4199 = vadd.f32 %v3729, %v3893
  %v4200 = vadd.f32 %v3730, %v3898
  %v4201 = vadd.f32 %v3731, %v3903
  %v4202 = vadd.f32 %v3732, %v3908
  %v4203 = vadd.f32 %v3733, %v3913
  %v4204 = vadd.f32 %v3734, %v3918
  %v4205 = vadd.f32 %v3735, %v3923
  %v4206 = vadd.f32 %v3736, %v3928
  %v4207 = vadd.f32 %v3737, %v3933
  %v4208 = vadd.f32 %v3738, %v3938
  %v4209 = vadd.f32 %v3739, %v3943
  %v4210 = vadd.f32 %v3740, %v3948
  %v4211 = vadd.f32 %v3741, %v3953
  %v4212 = vadd.f32 %v3742, %v3958
  %v4213 = vadd.f32 %v3743, %v3963
  %v4214 = vadd.f32 %v3744, %v3968
  %v4215 = vadd.f32 %v3745, %v3973
  %v4216 = vadd.f32 %v3746, %v3978
  %v4217 = vadd.f32 %v3747, %v3983
  %v4218 = vadd.f32 %v3748, %v3988
  %v4219 = vadd.f32 %v3749, %v3993
  %v4220 = vadd.f32 %v3750, %v3998
  %v4221 = vadd.f32 %v3751, %v4003
  %v4222 = vadd.f32 %v3752, %v4008
  %v4223 = vadd.f32 %v3753, %v4013
  %v4224 = vadd.f32 %v3754, %v4018
  %v4225 = vadd.f32 %v3755, %v4023
  %v4226 = vadd.f32 %v3756, %v4028
  %v4227 = vadd.f32 %v3757, %v4033
  %v4228 = vadd.f32 %v3758, %v4038
  %v4229 = vadd.f32 %v3759, %v4043
  %v4230 = vadd.f32 %v3760, %v4048
  %v4231 = vadd.f32 %v3761, %v4053
  %v4232 = vadd.f32 %v3762, %v4058
  %v4233 = vadd.f32 %v3763, %v4063
  %v4234 = vadd.f32 %v3764, %v4068
  %v4235 = vadd.f32 %v3765, %v4073
  %v4236 = vadd.f32 %v3766, %v4078
  %v4237 = vadd.f32 %v3767, %v4083
  %v4238 = vadd.f32 %v3768, %v4088
  %v4239 = vadd.f32 %v3769, %v4093
  %v4240 = vadd.f32 %v3770, %v4098
  %v4241 = vadd.f32 %v3771, %v4103
  %v4242 = vadd.f32 %v3772, %v4108
  %v4243 = vadd.f32 %v3773, %v4113
  %v4244 = vadd.f32 %v3774, %v4118
  %v4245 = vadd.f32 %v3775, %v4123
  %v4246 = vadd.f32 %v3776, %v4128
  %v4247 = vadd.f32 %v3777, %v4133
  %v4248 = vadd.f32 %v3778, %v4138
  %v4249 = vadd.f32 %v3779, %v4143
  %v4250 = vadd.f32 %v3780, %v4148
  %v4251 = vadd.f32 %v3781, %v4153
  %v4252 = vadd.f32 %v3782, %v4158
  %v4253 = vadd.f32 %v3783, %v4163
  %v4254 = vadd.f32 %v3784, %v4168
  %v4255 = vadd.f32 %v3785, %v4173
  %v4256 = vadd.f32 %v3786, %v4178
  %v4257 = vadd.f32 %v3787, %v4183
  %v4258 = vadd.f32 %v3788, %v4188
  %v4259 = vadd.f32 %v3789, %v4193
  %v4261 = vsel %vm1079, %v765, 0
  %v4264 = vsel %vm1079, %v766, 0
  %v4267 = vsel %vm1079, %v819, 0
  %v4270 = vsel %vm1079, %v820, 0
  %v4273 = vsel %vm1208, %v134, 0
  %4275 = vmatprep.subr.mxu0 0.0
  %4276 = vmatpush1.msra.mxu0 %v4273
  %4277 = vmatprep.subr.mxu0 0.0
  %4278 = vmatpush1.msra.mxu0 0.0
  %4279 = vmatprep.subr.mxu0 0.0
  %4280 = vmatpush1.msra.mxu0 0.0
  %4281 = vmatprep.subr.mxu0 0.0
  %4282 = vmatpush1.msra.mxu0 0.0
  %4283 = vmatprep.subr.mxu0 0.0
  %4284 = vmatpush1.msra.mxu0 0.0
  %4285 = vmatprep.subr.mxu0 0.0
  %4286 = vmatpush1.msra.mxu0 0.0
  %4287 = vmatprep.subr.mxu0 0.0
  %4288 = vmatpush1.msra.mxu0 0.0
  %4289 = vmatprep.subr.mxu0 0.0
  %4290 = vmatpush1.msra.mxu0 0.0
  %4291 = vmatprep.subr.mxu0 0.0
  %4292 = vmatpush1.msra.mxu0 0.0
  %4293 = vmatprep.subr.mxu0 0.0
  %4294 = vmatpush1.msra.mxu0 0.0
  %4295 = vmatprep.subr.mxu0 0.0
  %4296 = vmatpush1.msra.mxu0 0.0
  %4297 = vmatprep.subr.mxu0 0.0
  %4298 = vmatpush1.msra.mxu0 0.0
  %4299 = vmatprep.subr.mxu0 0.0
  %4300 = vmatpush1.msra.mxu0 0.0
  %4301 = vmatprep.subr.mxu0 0.0
  %4302 = vmatpush1.msra.mxu0 0.0
  %4303 = vmatprep.subr.mxu0 0.0
  %4304 = vmatpush1.msra.mxu0 0.0
  %4305 = vmatprep.subr.mxu0 0.0
  %4306 = vmatpush1.msra.mxu0 0.0
  %4307 = vmatprep.subr.mxu0 0.0
  %4308 = vmatpush1.msra.mxu0 0.0
  %4309 = vmatprep.subr.mxu0 0.0
  %4310 = vmatpush1.msra.mxu0 0.0
  %4311 = vmatprep.subr.mxu0 0.0
  %4312 = vmatpush1.msra.mxu0 0.0
  %4313 = vmatprep.subr.mxu0 0.0
  %4314 = vmatpush1.msra.mxu0 0.0
  %4315 = vmatprep.subr.mxu0 0.0
  %4316 = vmatpush1.msra.mxu0 0.0
  %4317 = vmatprep.subr.mxu0 0.0
  %4318 = vmatpush1.msra.mxu0 0.0
  %4319 = vmatprep.subr.mxu0 0.0
  %4320 = vmatpush1.msra.mxu0 0.0
  %4321 = vmatprep.subr.mxu0 0.0
  %4322 = vmatpush1.msra.mxu0 0.0
  %4323 = vmatprep.subr.mxu0 0.0
  %4324 = vmatpush1.msra.mxu0 0.0
  %4325 = vmatprep.subr.mxu0 0.0
  %4326 = vmatpush1.msra.mxu0 0.0
  %4327 = vmatprep.subr.mxu0 0.0
  %4328 = vmatpush1.msra.mxu0 0.0
  %4329 = vmatprep.subr.mxu0 0.0
  %4330 = vmatpush1.msra.mxu0 0.0
  %4331 = vmatprep.subr.mxu0 0.0
  %4332 = vmatpush1.msra.mxu0 0.0
  %4333 = vmatprep.subr.mxu0 0.0
  %4334 = vmatpush1.msra.mxu0 0.0
  %4335 = vmatprep.subr.mxu0 0.0
  %4336 = vmatpush1.msra.mxu0 0.0
  %4337 = vmatprep.subr.mxu0 0.0
  %4338 = vmatpush1.msra.mxu0 0.0
  %4339 = vmatprep.mubr.f32.mxu0 0.0
  %4340 = vmatmul.mubr.f32.gmra.mrb[0].mxu0 %v1605
  %v4341 = vpop.f32.mrb[0].mxu0
  %v4342 = vadd.f32 0.0, %v4341
  %v4343 = vpop.f32.mrb[0].mxu0
  %4344 = vmatprep.mubr.f32.mxu0 0.0
  %4345 = vmatmul.mubr.f32.gmra.mrb[0].mxu0 %v1607
  %v4346 = vpop.f32.mrb[0].mxu0
  %v4347 = vadd.f32 0.0, %v4346
  %v4348 = vpop.f32.mrb[0].mxu0
  %4349 = vmatprep.mubr.f32.mxu0 0.0
  %4350 = vmatmul.mubr.f32.gmra.mrb[0].mxu0 %v1609
  %v4351 = vpop.f32.mrb[0].mxu0
  %v4352 = vadd.f32 0.0, %v4351
  %v4353 = vpop.f32.mrb[0].mxu0
  %4354 = vmatprep.mubr.f32.mxu0 0.0
  %4355 = vmatmul.mubr.f32.gmra.mrb[0].mxu0 %v1611
  %v4356 = vpop.f32.mrb[0].mxu0
  %v4357 = vadd.f32 0.0, %v4356
  %v4358 = vpop.f32.mrb[0].mxu0
  %4359 = vmatprep.mubr.f32.mxu0 0.0
  %4360 = vmatmul.mubr.f32.gmra.mrb[0].mxu0 %v1613
  %v4361 = vpop.f32.mrb[0].mxu0
  %v4362 = vadd.f32 0.0, %v4361
  %v4363 = vpop.f32.mrb[0].mxu0
  %4364 = vmatprep.mubr.f32.mxu0 0.0
  %4365 = vmatmul.mubr.f32.gmra.mrb[0].mxu0 %v1615
  %v4366 = vpop.f32.mrb[0].mxu0
  %v4367 = vadd.f32 0.0, %v4366
  %v4368 = vpop.f32.mrb[0].mxu0
  %4369 = vmatprep.mubr.f32.mxu0 0.0
  %4370 = vmatmul.mubr.f32.gmra.mrb[0].mxu0 %v1617
  %v4371 = vpop.f32.mrb[0].mxu0
  %v4372 = vadd.f32 0.0, %v4371
  %v4373 = vpop.f32.mrb[0].mxu0
  %4374 = vmatprep.mubr.f32.mxu0 0.0
  %4375 = vmatmul.mubr.f32.gmra.mrb[0].mxu0 %v1619
  %v4376 = vpop.f32.mrb[0].mxu0
  %v4377 = vadd.f32 0.0, %v4376
  %v4378 = vpop.f32.mrb[0].mxu0
  %4379 = vmatprep.mubr.f32.mxu0 0.0
  %4380 = vmatmul.mubr.f32.gmra.mrb[0].mxu0 %v1621
  %v4381 = vpop.f32.mrb[0].mxu0
  %v4382 = vadd.f32 0.0, %v4381
  %v4383 = vpop.f32.mrb[0].mxu0
  %4384 = vmatprep.mubr.f32.mxu0 0.0
  %4385 = vmatmul.mubr.f32.gmra.mrb[0].mxu0 %v1623
  %v4386 = vpop.f32.mrb[0].mxu0
  %v4387 = vadd.f32 0.0, %v4386
  %v4388 = vpop.f32.mrb[0].mxu0
  %4389 = vmatprep.mubr.f32.mxu0 0.0
  %4390 = vmatmul.mubr.f32.gmra.mrb[0].mxu0 %v1625
  %v4391 = vpop.f32.mrb[0].mxu0
  %v4392 = vadd.f32 0.0, %v4391
  %v4393 = vpop.f32.mrb[0].mxu0
  %4394 = vmatprep.mubr.f32.mxu0 0.0
  %4395 = vmatmul.mubr.f32.gmra.mrb[0].mxu0 %v1627
  %v4396 = vpop.f32.mrb[0].mxu0
  %v4397 = vadd.f32 0.0, %v4396
  %v4398 = vpop.f32.mrb[0].mxu0
  %4399 = vmatprep.mubr.f32.mxu0 0.0
  %4400 = vmatmul.mubr.f32.gmra.mrb[0].mxu0 %v1629
  %v4401 = vpop.f32.mrb[0].mxu0
  %v4402 = vadd.f32 0.0, %v4401
  %v4403 = vpop.f32.mrb[0].mxu0
  %4404 = vmatprep.mubr.f32.mxu0 0.0
  %4405 = vmatmul.mubr.f32.gmra.mrb[0].mxu0 %v1631
  %v4406 = vpop.f32.mrb[0].mxu0
  %v4407 = vadd.f32 0.0, %v4406
  %v4408 = vpop.f32.mrb[0].mxu0
  %4409 = vmatprep.mubr.f32.mxu0 0.0
  %4410 = vmatmul.mubr.f32.gmra.mrb[0].mxu0 %v1633
  %v4411 = vpop.f32.mrb[0].mxu0
  %v4412 = vadd.f32 0.0, %v4411
  %v4413 = vpop.f32.mrb[0].mxu0
  %4414 = vmatprep.mubr.f32.mxu0 0.0
  %4415 = vmatmul.mubr.f32.gmra.mrb[0].mxu0 %v1635
  %v4416 = vpop.f32.mrb[0].mxu0
  %v4417 = vadd.f32 0.0, %v4416
  %v4418 = vpop.f32.mrb[0].mxu0
  %4419 = vmatprep.mubr.f32.mxu0 0.0
  %4420 = vmatmul.mubr.f32.gmra.mrb[0].mxu0 %v1637
  %v4421 = vpop.f32.mrb[0].mxu0
  %v4422 = vadd.f32 0.0, %v4421
  %v4423 = vpop.f32.mrb[0].mxu0
  %4424 = vmatprep.mubr.f32.mxu0 0.0
  %4425 = vmatmul.mubr.f32.gmra.mrb[0].mxu0 %v1639
  %v4426 = vpop.f32.mrb[0].mxu0
  %v4427 = vadd.f32 0.0, %v4426
  %v4428 = vpop.f32.mrb[0].mxu0
  %4429 = vmatprep.mubr.f32.mxu0 0.0
  %4430 = vmatmul.mubr.f32.gmra.mrb[0].mxu0 %v1641
  %v4431 = vpop.f32.mrb[0].mxu0
  %v4432 = vadd.f32 0.0, %v4431
  %v4433 = vpop.f32.mrb[0].mxu0
  %4434 = vmatprep.mubr.f32.mxu0 0.0
  %4435 = vmatmul.mubr.f32.gmra.mrb[0].mxu0 %v1643
  %v4436 = vpop.f32.mrb[0].mxu0
  %v4437 = vadd.f32 0.0, %v4436
  %v4438 = vpop.f32.mrb[0].mxu0
  %4439 = vmatprep.mubr.f32.mxu0 0.0
  %4440 = vmatmul.mubr.f32.gmra.mrb[0].mxu0 %v1645
  %v4441 = vpop.f32.mrb[0].mxu0
  %v4442 = vadd.f32 0.0, %v4441
  %v4443 = vpop.f32.mrb[0].mxu0
  %4444 = vmatprep.mubr.f32.mxu0 0.0
  %4445 = vmatmul.mubr.f32.gmra.mrb[0].mxu0 %v1647
  %v4446 = vpop.f32.mrb[0].mxu0
  %v4447 = vadd.f32 0.0, %v4446
  %v4448 = vpop.f32.mrb[0].mxu0
  %4449 = vmatprep.mubr.f32.mxu0 0.0
  %4450 = vmatmul.mubr.f32.gmra.mrb[0].mxu0 %v1649
  %v4451 = vpop.f32.mrb[0].mxu0
  %v4452 = vadd.f32 0.0, %v4451
  %v4453 = vpop.f32.mrb[0].mxu0
  %4454 = vmatprep.mubr.f32.mxu0 0.0
  %4455 = vmatmul.mubr.f32.gmra.mrb[0].mxu0 %v1651
  %v4456 = vpop.f32.mrb[0].mxu0
  %v4457 = vadd.f32 0.0, %v4456
  %v4458 = vpop.f32.mrb[0].mxu0
  %4459 = vmatprep.mubr.f32.mxu0 0.0
  %4460 = vmatmul.mubr.f32.gmra.mrb[0].mxu0 %v1653
  %v4461 = vpop.f32.mrb[0].mxu0
  %v4462 = vadd.f32 0.0, %v4461
  %v4463 = vpop.f32.mrb[0].mxu0
  %4464 = vmatprep.mubr.f32.mxu0 0.0
  %4465 = vmatmul.mubr.f32.gmra.mrb[0].mxu0 %v1655
  %v4466 = vpop.f32.mrb[0].mxu0
  %v4467 = vadd.f32 0.0, %v4466
  %v4468 = vpop.f32.mrb[0].mxu0
  %4469 = vmatprep.mubr.f32.mxu0 0.0
  %4470 = vmatmul.mubr.f32.gmra.mrb[0].mxu0 %v1657
  %v4471 = vpop.f32.mrb[0].mxu0
  %v4472 = vadd.f32 0.0, %v4471
  %v4473 = vpop.f32.mrb[0].mxu0
  %4474 = vmatprep.mubr.f32.mxu0 0.0
  %4475 = vmatmul.mubr.f32.gmra.mrb[0].mxu0 %v1659
  %v4476 = vpop.f32.mrb[0].mxu0
  %v4477 = vadd.f32 0.0, %v4476
  %v4478 = vpop.f32.mrb[0].mxu0
  %4479 = vmatprep.mubr.f32.mxu0 0.0
  %4480 = vmatmul.mubr.f32.gmra.mrb[0].mxu0 %v2855
  %v4481 = vpop.f32.mrb[0].mxu0
  %v4482 = vadd.f32 0.0, %v4481
  %v4483 = vpop.f32.mrb[0].mxu0
  %4484 = vmatprep.mubr.f32.mxu0 0.0
  %4485 = vmatmul.mubr.f32.gmra.mrb[0].mxu0 %v2858
  %v4486 = vpop.f32.mrb[0].mxu0
  %v4487 = vadd.f32 0.0, %v4486
  %v4488 = vpop.f32.mrb[0].mxu0
  %4489 = vmatprep.mubr.f32.mxu0 0.0
  %4490 = vmatmul.mubr.f32.gmra.mrb[0].mxu0 %v4261
  %v4491 = vpop.f32.mrb[0].mxu0
  %v4492 = vadd.f32 0.0, %v4491
  %v4493 = vpop.f32.mrb[0].mxu0
  %4494 = vmatprep.mubr.f32.mxu0 0.0
  %4495 = vmatmul.mubr.f32.gmra.mrb[0].mxu0 %v4264
  %v4496 = vpop.f32.mrb[0].mxu0
  %v4497 = vadd.f32 0.0, %v4496
  %v4498 = vpop.f32.mrb[0].mxu0
  %4499 = vmatprep.mubr.f32.mxu0 0.0
  %4500 = vmatmul.mubr.f32.gmra.mrb[0].mxu0 %v1669
  %v4501 = vpop.f32.mrb[0].mxu0
  %v4502 = vadd.f32 0.0, %v4501
  %v4503 = vpop.f32.mrb[0].mxu0
  %4504 = vmatprep.mubr.f32.mxu0 0.0
  %4505 = vmatmul.mubr.f32.gmra.mrb[0].mxu0 %v1671
  %v4506 = vpop.f32.mrb[0].mxu0
  %v4507 = vadd.f32 0.0, %v4506
  %v4508 = vpop.f32.mrb[0].mxu0
  %4509 = vmatprep.mubr.f32.mxu0 0.0
  %4510 = vmatmul.mubr.f32.gmra.mrb[0].mxu0 %v1673
  %v4511 = vpop.f32.mrb[0].mxu0
  %v4512 = vadd.f32 0.0, %v4511
  %v4513 = vpop.f32.mrb[0].mxu0
  %4514 = vmatprep.mubr.f32.mxu0 0.0
  %4515 = vmatmul.mubr.f32.gmra.mrb[0].mxu0 %v1675
  %v4516 = vpop.f32.mrb[0].mxu0
  %v4517 = vadd.f32 0.0, %v4516
  %v4518 = vpop.f32.mrb[0].mxu0
  %4519 = vmatprep.mubr.f32.mxu0 0.0
  %4520 = vmatmul.mubr.f32.gmra.mrb[0].mxu0 %v1677
  %v4521 = vpop.f32.mrb[0].mxu0
  %v4522 = vadd.f32 0.0, %v4521
  %v4523 = vpop.f32.mrb[0].mxu0
  %4524 = vmatprep.mubr.f32.mxu0 0.0
  %4525 = vmatmul.mubr.f32.gmra.mrb[0].mxu0 %v1679
  %v4526 = vpop.f32.mrb[0].mxu0
  %v4527 = vadd.f32 0.0, %v4526
  %v4528 = vpop.f32.mrb[0].mxu0
  %4529 = vmatprep.mubr.f32.mxu0 0.0
  %4530 = vmatmul.mubr.f32.gmra.mrb[0].mxu0 %v1681
  %v4531 = vpop.f32.mrb[0].mxu0
  %v4532 = vadd.f32 0.0, %v4531
  %v4533 = vpop.f32.mrb[0].mxu0
  %4534 = vmatprep.mubr.f32.mxu0 0.0
  %4535 = vmatmul.mubr.f32.gmra.mrb[0].mxu0 %v1683
  %v4536 = vpop.f32.mrb[0].mxu0
  %v4537 = vadd.f32 0.0, %v4536
  %v4538 = vpop.f32.mrb[0].mxu0
  %4539 = vmatprep.mubr.f32.mxu0 0.0
  %4540 = vmatmul.mubr.f32.gmra.mrb[0].mxu0 %v1685
  %v4541 = vpop.f32.mrb[0].mxu0
  %v4542 = vadd.f32 0.0, %v4541
  %v4543 = vpop.f32.mrb[0].mxu0
  %4544 = vmatprep.mubr.f32.mxu0 0.0
  %4545 = vmatmul.mubr.f32.gmra.mrb[0].mxu0 %v1687
  %v4546 = vpop.f32.mrb[0].mxu0
  %v4547 = vadd.f32 0.0, %v4546
  %v4548 = vpop.f32.mrb[0].mxu0
  %4549 = vmatprep.mubr.f32.mxu0 0.0
  %4550 = vmatmul.mubr.f32.gmra.mrb[0].mxu0 %v1689
  %v4551 = vpop.f32.mrb[0].mxu0
  %v4552 = vadd.f32 0.0, %v4551
  %v4553 = vpop.f32.mrb[0].mxu0
  %4554 = vmatprep.mubr.f32.mxu0 0.0
  %4555 = vmatmul.mubr.f32.gmra.mrb[0].mxu0 %v1691
  %v4556 = vpop.f32.mrb[0].mxu0
  %v4557 = vadd.f32 0.0, %v4556
  %v4558 = vpop.f32.mrb[0].mxu0
  %4559 = vmatprep.mubr.f32.mxu0 0.0
  %4560 = vmatmul.mubr.f32.gmra.mrb[0].mxu0 %v1693
  %v4561 = vpop.f32.mrb[0].mxu0
  %v4562 = vadd.f32 0.0, %v4561
  %v4563 = vpop.f32.mrb[0].mxu0
  %4564 = vmatprep.mubr.f32.mxu0 0.0
  %4565 = vmatmul.mubr.f32.gmra.mrb[0].mxu0 %v1695
  %v4566 = vpop.f32.mrb[0].mxu0
  %v4567 = vadd.f32 0.0, %v4566
  %v4568 = vpop.f32.mrb[0].mxu0
  %4569 = vmatprep.mubr.f32.mxu0 0.0
  %4570 = vmatmul.mubr.f32.gmra.mrb[0].mxu0 %v1697
  %v4571 = vpop.f32.mrb[0].mxu0
  %v4572 = vadd.f32 0.0, %v4571
  %v4573 = vpop.f32.mrb[0].mxu0
  %4574 = vmatprep.mubr.f32.mxu0 0.0
  %4575 = vmatmul.mubr.f32.gmra.mrb[0].mxu0 %v1699
  %v4576 = vpop.f32.mrb[0].mxu0
  %v4577 = vadd.f32 0.0, %v4576
  %v4578 = vpop.f32.mrb[0].mxu0
  %4579 = vmatprep.mubr.f32.mxu0 0.0
  %4580 = vmatmul.mubr.f32.gmra.mrb[0].mxu0 %v1701
  %v4581 = vpop.f32.mrb[0].mxu0
  %v4582 = vadd.f32 0.0, %v4581
  %v4583 = vpop.f32.mrb[0].mxu0
  %4584 = vmatprep.mubr.f32.mxu0 0.0
  %4585 = vmatmul.mubr.f32.gmra.mrb[0].mxu0 %v1703
  %v4586 = vpop.f32.mrb[0].mxu0
  %v4587 = vadd.f32 0.0, %v4586
  %v4588 = vpop.f32.mrb[0].mxu0
  %4589 = vmatprep.mubr.f32.mxu0 0.0
  %4590 = vmatmul.mubr.f32.gmra.mrb[0].mxu0 %v1705
  %v4591 = vpop.f32.mrb[0].mxu0
  %v4592 = vadd.f32 0.0, %v4591
  %v4593 = vpop.f32.mrb[0].mxu0
  %4594 = vmatprep.mubr.f32.mxu0 0.0
  %4595 = vmatmul.mubr.f32.gmra.mrb[0].mxu0 %v1707
  %v4596 = vpop.f32.mrb[0].mxu0
  %v4597 = vadd.f32 0.0, %v4596
  %v4598 = vpop.f32.mrb[0].mxu0
  %4599 = vmatprep.mubr.f32.mxu0 0.0
  %4600 = vmatmul.mubr.f32.gmra.mrb[0].mxu0 %v1709
  %v4601 = vpop.f32.mrb[0].mxu0
  %v4602 = vadd.f32 0.0, %v4601
  %v4603 = vpop.f32.mrb[0].mxu0
  %4604 = vmatprep.mubr.f32.mxu0 0.0
  %4605 = vmatmul.mubr.f32.gmra.mrb[0].mxu0 %v1711
  %v4606 = vpop.f32.mrb[0].mxu0
  %v4607 = vadd.f32 0.0, %v4606
  %v4608 = vpop.f32.mrb[0].mxu0
  %4609 = vmatprep.mubr.f32.mxu0 0.0
  %4610 = vmatmul.mubr.f32.gmra.mrb[0].mxu0 %v1713
  %v4611 = vpop.f32.mrb[0].mxu0
  %v4612 = vadd.f32 0.0, %v4611
  %v4613 = vpop.f32.mrb[0].mxu0
  %4614 = vmatprep.mubr.f32.mxu0 0.0
  %4615 = vmatmul.mubr.f32.gmra.mrb[0].mxu0 %v1715
  %v4616 = vpop.f32.mrb[0].mxu0
  %v4617 = vadd.f32 0.0, %v4616
  %v4618 = vpop.f32.mrb[0].mxu0
  %4619 = vmatprep.mubr.f32.mxu0 0.0
  %4620 = vmatmul.mubr.f32.gmra.mrb[0].mxu0 %v1717
  %v4621 = vpop.f32.mrb[0].mxu0
  %v4622 = vadd.f32 0.0, %v4621
  %v4623 = vpop.f32.mrb[0].mxu0
  %4624 = vmatprep.mubr.f32.mxu0 0.0
  %4625 = vmatmul.mubr.f32.gmra.mrb[0].mxu0 %v1719
  %v4626 = vpop.f32.mrb[0].mxu0
  %v4627 = vadd.f32 0.0, %v4626
  %v4628 = vpop.f32.mrb[0].mxu0
  %4629 = vmatprep.mubr.f32.mxu0 0.0
  %4630 = vmatmul.mubr.f32.gmra.mrb[0].mxu0 %v1721
  %v4631 = vpop.f32.mrb[0].mxu0
  %v4632 = vadd.f32 0.0, %v4631
  %v4633 = vpop.f32.mrb[0].mxu0
  %4634 = vmatprep.mubr.f32.mxu0 0.0
  %4635 = vmatmul.mubr.f32.gmra.mrb[0].mxu0 %v1723
  %v4636 = vpop.f32.mrb[0].mxu0
  %v4637 = vadd.f32 0.0, %v4636
  %v4638 = vpop.f32.mrb[0].mxu0
  %4639 = vmatprep.mubr.f32.mxu0 0.0
  %4640 = vmatmul.mubr.f32.gmra.mrb[0].mxu0 %v2861
  %v4641 = vpop.f32.mrb[0].mxu0
  %v4642 = vadd.f32 0.0, %v4641
  %v4643 = vpop.f32.mrb[0].mxu0
  %4644 = vmatprep.mubr.f32.mxu0 0.0
  %4645 = vmatmul.mubr.f32.gmra.mrb[0].mxu0 %v2864
  %v4646 = vpop.f32.mrb[0].mxu0
  %v4647 = vadd.f32 0.0, %v4646
  %v4648 = vpop.f32.mrb[0].mxu0
  %4649 = vmatprep.mubr.f32.mxu0 0.0
  %4650 = vmatmul.mubr.f32.gmra.mrb[0].mxu0 %v4267
  %v4651 = vpop.f32.mrb[0].mxu0
  %v4652 = vadd.f32 0.0, %v4651
  %v4653 = vpop.f32.mrb[0].mxu0
  %4654 = vmatprep.mubr.f32.mxu0 0.0
  %4655 = vmatmul.mubr.f32.gmra.mrb[0].mxu0 %v4270
  %v4656 = vpop.f32.mrb[0].mxu0
  %v4657 = vadd.f32 0.0, %v4656
  %v4658 = vpop.f32.mrb[0].mxu0
  %4659 = vdwg.mxu0
  %v4660 = vadd.f32 %v4196, %v4342
  %v4661 = vadd.f32 %v4197, %v4347
  %v4662 = vadd.f32 %v4198, %v4352
  %v4663 = vadd.f32 %v4199, %v4357
  %v4664 = vadd.f32 %v4200, %v4362
  %v4665 = vadd.f32 %v4201, %v4367
  %v4666 = vadd.f32 %v4202, %v4372
  %v4667 = vadd.f32 %v4203, %v4377
  %v4668 = vadd.f32 %v4204, %v4382
  %v4669 = vadd.f32 %v4205, %v4387
  %v4670 = vadd.f32 %v4206, %v4392
  %v4671 = vadd.f32 %v4207, %v4397
  %v4672 = vadd.f32 %v4208, %v4402
  %v4673 = vadd.f32 %v4209, %v4407
  %v4674 = vadd.f32 %v4210, %v4412
  %v4675 = vadd.f32 %v4211, %v4417
  %v4676 = vadd.f32 %v4212, %v4422
  %v4677 = vadd.f32 %v4213, %v4427
  %v4678 = vadd.f32 %v4214, %v4432
  %v4679 = vadd.f32 %v4215, %v4437
  %v4680 = vadd.f32 %v4216, %v4442
  %v4681 = vadd.f32 %v4217, %v4447
  %v4682 = vadd.f32 %v4218, %v4452
  %v4683 = vadd.f32 %v4219, %v4457
  %v4684 = vadd.f32 %v4220, %v4462
  %v4685 = vadd.f32 %v4221, %v4467
  %v4686 = vadd.f32 %v4222, %v4472
  %v4687 = vadd.f32 %v4223, %v4477
  %v4688 = vadd.f32 %v4224, %v4482
  %v4689 = vadd.f32 %v4225, %v4487
  %v4690 = vadd.f32 %v4226, %v4492
  %v4691 = vadd.f32 %v4227, %v4497
  %v4692 = vadd.f32 %v4228, %v4502
  %v4693 = vadd.f32 %v4229, %v4507
  %v4694 = vadd.f32 %v4230, %v4512
  %v4695 = vadd.f32 %v4231, %v4517
  %v4696 = vadd.f32 %v4232, %v4522
  %v4697 = vadd.f32 %v4233, %v4527
  %v4698 = vadd.f32 %v4234, %v4532
  %v4699 = vadd.f32 %v4235, %v4537
  %v4700 = vadd.f32 %v4236, %v4542
  %v4701 = vadd.f32 %v4237, %v4547
  %v4702 = vadd.f32 %v4238, %v4552
  %v4703 = vadd.f32 %v4239, %v4557
  %v4704 = vadd.f32 %v4240, %v4562
  %v4705 = vadd.f32 %v4241, %v4567
  %v4706 = vadd.f32 %v4242, %v4572
  %v4707 = vadd.f32 %v4243, %v4577
  %v4708 = vadd.f32 %v4244, %v4582
  %v4709 = vadd.f32 %v4245, %v4587
  %v4710 = vadd.f32 %v4246, %v4592
  %v4711 = vadd.f32 %v4247, %v4597
  %v4712 = vadd.f32 %v4248, %v4602
  %v4713 = vadd.f32 %v4249, %v4607
  %v4714 = vadd.f32 %v4250, %v4612
  %v4715 = vadd.f32 %v4251, %v4617
  %v4716 = vadd.f32 %v4252, %v4622
  %v4717 = vadd.f32 %v4253, %v4627
  %v4718 = vadd.f32 %v4254, %v4632
  %v4719 = vadd.f32 %v4255, %v4637
  %v4720 = vadd.f32 %v4256, %v4642
  %v4721 = vadd.f32 %v4257, %v4647
  %v4722 = vadd.f32 %v4258, %v4652
  %v4723 = vadd.f32 %v4259, %v4657
  %v4726 = vrot.slane %v765, 1
  %v4727 = vrot.slane %v766, 1
  %v4728 = vsel %vm918, %v4726, %v4727
  %v4729 = vrot.slane %v767, 1
  %v4730 = vsel %vm918, %v4727, %v4729
  %v4731 = vrot.slane %v819, 1
  %v4732 = vrot.slane %v820, 1
  %v4733 = vsel %vm918, %v4731, %v4732
  %v4734 = vrot.slane %v821, 1
  %v4735 = vsel %vm918, %v4732, %v4734
  %v4736 = vsel %vm1079, %v4728, 0
  %v4738 = vsel %vm1079, %v4730, 0
  %v4740 = vsel %vm1079, %v4733, 0
  %v4742 = vsel %vm1079, %v4735, 0
  %v4745 = vsel %vm1208, %v135, 0
  %4747 = vmatprep.subr.mxu0 0.0
  %4748 = vmatpush1.msra.mxu0 %v4745
  %4749 = vmatprep.subr.mxu0 0.0
  %4750 = vmatpush1.msra.mxu0 0.0
  %4751 = vmatprep.subr.mxu0 0.0
  %4752 = vmatpush1.msra.mxu0 0.0
  %4753 = vmatprep.subr.mxu0 0.0
  %4754 = vmatpush1.msra.mxu0 0.0
  %4755 = vmatprep.subr.mxu0 0.0
  %4756 = vmatpush1.msra.mxu0 0.0
  %4757 = vmatprep.subr.mxu0 0.0
  %4758 = vmatpush1.msra.mxu0 0.0
  %4759 = vmatprep.subr.mxu0 0.0
  %4760 = vmatpush1.msra.mxu0 0.0
  %4761 = vmatprep.subr.mxu0 0.0
  %4762 = vmatpush1.msra.mxu0 0.0
  %4763 = vmatprep.subr.mxu0 0.0
  %4764 = vmatpush1.msra.mxu0 0.0
  %4765 = vmatprep.subr.mxu0 0.0
  %4766 = vmatpush1.msra.mxu0 0.0
  %4767 = vmatprep.subr.mxu0 0.0
  %4768 = vmatpush1.msra.mxu0 0.0
  %4769 = vmatprep.subr.mxu0 0.0
  %4770 = vmatpush1.msra.mxu0 0.0
  %4771 = vmatprep.subr.mxu0 0.0
  %4772 = vmatpush1.msra.mxu0 0.0
  %4773 = vmatprep.subr.mxu0 0.0
  %4774 = vmatpush1.msra.mxu0 0.0
  %4775 = vmatprep.subr.mxu0 0.0
  %4776 = vmatpush1.msra.mxu0 0.0
  %4777 = vmatprep.subr.mxu0 0.0
  %4778 = vmatpush1.msra.mxu0 0.0
  %4779 = vmatprep.subr.mxu0 0.0
  %4780 = vmatpush1.msra.mxu0 0.0
  %4781 = vmatprep.subr.mxu0 0.0
  %4782 = vmatpush1.msra.mxu0 0.0
  %4783 = vmatprep.subr.mxu0 0.0
  %4784 = vmatpush1.msra.mxu0 0.0
  %4785 = vmatprep.subr.mxu0 0.0
  %4786 = vmatpush1.msra.mxu0 0.0
  %4787 = vmatprep.subr.mxu0 0.0
  %4788 = vmatpush1.msra.mxu0 0.0
  %4789 = vmatprep.subr.mxu0 0.0
  %4790 = vmatpush1.msra.mxu0 0.0
  %4791 = vmatprep.subr.mxu0 0.0
  %4792 = vmatpush1.msra.mxu0 0.0
  %4793 = vmatprep.subr.mxu0 0.0
  %4794 = vmatpush1.msra.mxu0 0.0
  %4795 = vmatprep.subr.mxu0 0.0
  %4796 = vmatpush1.msra.mxu0 0.0
  %4797 = vmatprep.subr.mxu0 0.0
  %4798 = vmatpush1.msra.mxu0 0.0
  %4799 = vmatprep.subr.mxu0 0.0
  %4800 = vmatpush1.msra.mxu0 0.0
  %4801 = vmatprep.subr.mxu0 0.0
  %4802 = vmatpush1.msra.mxu0 0.0
  %4803 = vmatprep.subr.mxu0 0.0
  %4804 = vmatpush1.msra.mxu0 0.0
  %4805 = vmatprep.subr.mxu0 0.0
  %4806 = vmatpush1.msra.mxu0 0.0
  %4807 = vmatprep.subr.mxu0 0.0
  %4808 = vmatpush1.msra.mxu0 0.0
  %4809 = vmatprep.subr.mxu0 0.0
  %4810 = vmatpush1.msra.mxu0 0.0
  %4811 = vmatprep.mubr.f32.mxu0 0.0
  %4812 = vmatmul.mubr.f32.gmra.mrb[0].mxu0 %v1088
  %v4813 = vpop.f32.mrb[0].mxu0
  %v4814 = vadd.f32 0.0, %v4813
  %v4815 = vpop.f32.mrb[0].mxu0
  %4816 = vmatprep.mubr.f32.mxu0 0.0
  %4817 = vmatmul.mubr.f32.gmra.mrb[0].mxu0 %v1090
  %v4818 = vpop.f32.mrb[0].mxu0
  %v4819 = vadd.f32 0.0, %v4818
  %v4820 = vpop.f32.mrb[0].mxu0
  %4821 = vmatprep.mubr.f32.mxu0 0.0
  %4822 = vmatmul.mubr.f32.gmra.mrb[0].mxu0 %v1092
  %v4823 = vpop.f32.mrb[0].mxu0
  %v4824 = vadd.f32 0.0, %v4823
  %v4825 = vpop.f32.mrb[0].mxu0
  %4826 = vmatprep.mubr.f32.mxu0 0.0
  %4827 = vmatmul.mubr.f32.gmra.mrb[0].mxu0 %v1094
  %v4828 = vpop.f32.mrb[0].mxu0
  %v4829 = vadd.f32 0.0, %v4828
  %v4830 = vpop.f32.mrb[0].mxu0
  %4831 = vmatprep.mubr.f32.mxu0 0.0
  %4832 = vmatmul.mubr.f32.gmra.mrb[0].mxu0 %v1096
  %v4833 = vpop.f32.mrb[0].mxu0
  %v4834 = vadd.f32 0.0, %v4833
  %v4835 = vpop.f32.mrb[0].mxu0
  %4836 = vmatprep.mubr.f32.mxu0 0.0
  %4837 = vmatmul.mubr.f32.gmra.mrb[0].mxu0 %v1098
  %v4838 = vpop.f32.mrb[0].mxu0
  %v4839 = vadd.f32 0.0, %v4838
  %v4840 = vpop.f32.mrb[0].mxu0
  %4841 = vmatprep.mubr.f32.mxu0 0.0
  %4842 = vmatmul.mubr.f32.gmra.mrb[0].mxu0 %v1100
  %v4843 = vpop.f32.mrb[0].mxu0
  %v4844 = vadd.f32 0.0, %v4843
  %v4845 = vpop.f32.mrb[0].mxu0
  %4846 = vmatprep.mubr.f32.mxu0 0.0
  %4847 = vmatmul.mubr.f32.gmra.mrb[0].mxu0 %v1102
  %v4848 = vpop.f32.mrb[0].mxu0
  %v4849 = vadd.f32 0.0, %v4848
  %v4850 = vpop.f32.mrb[0].mxu0
  %4851 = vmatprep.mubr.f32.mxu0 0.0
  %4852 = vmatmul.mubr.f32.gmra.mrb[0].mxu0 %v1104
  %v4853 = vpop.f32.mrb[0].mxu0
  %v4854 = vadd.f32 0.0, %v4853
  %v4855 = vpop.f32.mrb[0].mxu0
  %4856 = vmatprep.mubr.f32.mxu0 0.0
  %4857 = vmatmul.mubr.f32.gmra.mrb[0].mxu0 %v1106
  %v4858 = vpop.f32.mrb[0].mxu0
  %v4859 = vadd.f32 0.0, %v4858
  %v4860 = vpop.f32.mrb[0].mxu0
  %4861 = vmatprep.mubr.f32.mxu0 0.0
  %4862 = vmatmul.mubr.f32.gmra.mrb[0].mxu0 %v1108
  %v4863 = vpop.f32.mrb[0].mxu0
  %v4864 = vadd.f32 0.0, %v4863
  %v4865 = vpop.f32.mrb[0].mxu0
  %4866 = vmatprep.mubr.f32.mxu0 0.0
  %4867 = vmatmul.mubr.f32.gmra.mrb[0].mxu0 %v1110
  %v4868 = vpop.f32.mrb[0].mxu0
  %v4869 = vadd.f32 0.0, %v4868
  %v4870 = vpop.f32.mrb[0].mxu0
  %4871 = vmatprep.mubr.f32.mxu0 0.0
  %4872 = vmatmul.mubr.f32.gmra.mrb[0].mxu0 %v1112
  %v4873 = vpop.f32.mrb[0].mxu0
  %v4874 = vadd.f32 0.0, %v4873
  %v4875 = vpop.f32.mrb[0].mxu0
  %4876 = vmatprep.mubr.f32.mxu0 0.0
  %4877 = vmatmul.mubr.f32.gmra.mrb[0].mxu0 %v1114
  %v4878 = vpop.f32.mrb[0].mxu0
  %v4879 = vadd.f32 0.0, %v4878
  %v4880 = vpop.f32.mrb[0].mxu0
  %4881 = vmatprep.mubr.f32.mxu0 0.0
  %4882 = vmatmul.mubr.f32.gmra.mrb[0].mxu0 %v1116
  %v4883 = vpop.f32.mrb[0].mxu0
  %v4884 = vadd.f32 0.0, %v4883
  %v4885 = vpop.f32.mrb[0].mxu0
  %4886 = vmatprep.mubr.f32.mxu0 0.0
  %4887 = vmatmul.mubr.f32.gmra.mrb[0].mxu0 %v1118
  %v4888 = vpop.f32.mrb[0].mxu0
  %v4889 = vadd.f32 0.0, %v4888
  %v4890 = vpop.f32.mrb[0].mxu0
  %4891 = vmatprep.mubr.f32.mxu0 0.0
  %4892 = vmatmul.mubr.f32.gmra.mrb[0].mxu0 %v1120
  %v4893 = vpop.f32.mrb[0].mxu0
  %v4894 = vadd.f32 0.0, %v4893
  %v4895 = vpop.f32.mrb[0].mxu0
  %4896 = vmatprep.mubr.f32.mxu0 0.0
  %4897 = vmatmul.mubr.f32.gmra.mrb[0].mxu0 %v1122
  %v4898 = vpop.f32.mrb[0].mxu0
  %v4899 = vadd.f32 0.0, %v4898
  %v4900 = vpop.f32.mrb[0].mxu0
  %4901 = vmatprep.mubr.f32.mxu0 0.0
  %4902 = vmatmul.mubr.f32.gmra.mrb[0].mxu0 %v1124
  %v4903 = vpop.f32.mrb[0].mxu0
  %v4904 = vadd.f32 0.0, %v4903
  %v4905 = vpop.f32.mrb[0].mxu0
  %4906 = vmatprep.mubr.f32.mxu0 0.0
  %4907 = vmatmul.mubr.f32.gmra.mrb[0].mxu0 %v1126
  %v4908 = vpop.f32.mrb[0].mxu0
  %v4909 = vadd.f32 0.0, %v4908
  %v4910 = vpop.f32.mrb[0].mxu0
  %4911 = vmatprep.mubr.f32.mxu0 0.0
  %4912 = vmatmul.mubr.f32.gmra.mrb[0].mxu0 %v1128
  %v4913 = vpop.f32.mrb[0].mxu0
  %v4914 = vadd.f32 0.0, %v4913
  %v4915 = vpop.f32.mrb[0].mxu0
  %4916 = vmatprep.mubr.f32.mxu0 0.0
  %4917 = vmatmul.mubr.f32.gmra.mrb[0].mxu0 %v1130
  %v4918 = vpop.f32.mrb[0].mxu0
  %v4919 = vadd.f32 0.0, %v4918
  %v4920 = vpop.f32.mrb[0].mxu0
  %4921 = vmatprep.mubr.f32.mxu0 0.0
  %4922 = vmatmul.mubr.f32.gmra.mrb[0].mxu0 %v1132
  %v4923 = vpop.f32.mrb[0].mxu0
  %v4924 = vadd.f32 0.0, %v4923
  %v4925 = vpop.f32.mrb[0].mxu0
  %4926 = vmatprep.mubr.f32.mxu0 0.0
  %4927 = vmatmul.mubr.f32.gmra.mrb[0].mxu0 %v1134
  %v4928 = vpop.f32.mrb[0].mxu0
  %v4929 = vadd.f32 0.0, %v4928
  %v4930 = vpop.f32.mrb[0].mxu0
  %4931 = vmatprep.mubr.f32.mxu0 0.0
  %4932 = vmatmul.mubr.f32.gmra.mrb[0].mxu0 %v1136
  %v4933 = vpop.f32.mrb[0].mxu0
  %v4934 = vadd.f32 0.0, %v4933
  %v4935 = vpop.f32.mrb[0].mxu0
  %4936 = vmatprep.mubr.f32.mxu0 0.0
  %4937 = vmatmul.mubr.f32.gmra.mrb[0].mxu0 %v1138
  %v4938 = vpop.f32.mrb[0].mxu0
  %v4939 = vadd.f32 0.0, %v4938
  %v4940 = vpop.f32.mrb[0].mxu0
  %4941 = vmatprep.mubr.f32.mxu0 0.0
  %4942 = vmatmul.mubr.f32.gmra.mrb[0].mxu0 %v1140
  %v4943 = vpop.f32.mrb[0].mxu0
  %v4944 = vadd.f32 0.0, %v4943
  %v4945 = vpop.f32.mrb[0].mxu0
  %4946 = vmatprep.mubr.f32.mxu0 0.0
  %4947 = vmatmul.mubr.f32.gmra.mrb[0].mxu0 %v1142
  %v4948 = vpop.f32.mrb[0].mxu0
  %v4949 = vadd.f32 0.0, %v4948
  %v4950 = vpop.f32.mrb[0].mxu0
  %4951 = vmatprep.mubr.f32.mxu0 0.0
  %4952 = vmatmul.mubr.f32.gmra.mrb[0].mxu0 %v3330
  %v4953 = vpop.f32.mrb[0].mxu0
  %v4954 = vadd.f32 0.0, %v4953
  %v4955 = vpop.f32.mrb[0].mxu0
  %4956 = vmatprep.mubr.f32.mxu0 0.0
  %4957 = vmatmul.mubr.f32.gmra.mrb[0].mxu0 %v3332
  %v4958 = vpop.f32.mrb[0].mxu0
  %v4959 = vadd.f32 0.0, %v4958
  %v4960 = vpop.f32.mrb[0].mxu0
  %4961 = vmatprep.mubr.f32.mxu0 0.0
  %4962 = vmatmul.mubr.f32.gmra.mrb[0].mxu0 %v4736
  %v4963 = vpop.f32.mrb[0].mxu0
  %v4964 = vadd.f32 0.0, %v4963
  %v4965 = vpop.f32.mrb[0].mxu0
  %4966 = vmatprep.mubr.f32.mxu0 0.0
  %4967 = vmatmul.mubr.f32.gmra.mrb[0].mxu0 %v4738
  %v4968 = vpop.f32.mrb[0].mxu0
  %v4969 = vadd.f32 0.0, %v4968
  %v4970 = vpop.f32.mrb[0].mxu0
  %4971 = vmatprep.mubr.f32.mxu0 0.0
  %4972 = vmatmul.mubr.f32.gmra.mrb[0].mxu0 %v1152
  %v4973 = vpop.f32.mrb[0].mxu0
  %v4974 = vadd.f32 0.0, %v4973
  %v4975 = vpop.f32.mrb[0].mxu0
  %4976 = vmatprep.mubr.f32.mxu0 0.0
  %4977 = vmatmul.mubr.f32.gmra.mrb[0].mxu0 %v1154
  %v4978 = vpop.f32.mrb[0].mxu0
  %v4979 = vadd.f32 0.0, %v4978
  %v4980 = vpop.f32.mrb[0].mxu0
  %4981 = vmatprep.mubr.f32.mxu0 0.0
  %4982 = vmatmul.mubr.f32.gmra.mrb[0].mxu0 %v1156
  %v4983 = vpop.f32.mrb[0].mxu0
  %v4984 = vadd.f32 0.0, %v4983
  %v4985 = vpop.f32.mrb[0].mxu0
  %4986 = vmatprep.mubr.f32.mxu0 0.0
  %4987 = vmatmul.mubr.f32.gmra.mrb[0].mxu0 %v1158
  %v4988 = vpop.f32.mrb[0].mxu0
  %v4989 = vadd.f32 0.0, %v4988
  %v4990 = vpop.f32.mrb[0].mxu0
  %4991 = vmatprep.mubr.f32.mxu0 0.0
  %4992 = vmatmul.mubr.f32.gmra.mrb[0].mxu0 %v1160
  %v4993 = vpop.f32.mrb[0].mxu0
  %v4994 = vadd.f32 0.0, %v4993
  %v4995 = vpop.f32.mrb[0].mxu0
  %4996 = vmatprep.mubr.f32.mxu0 0.0
  %4997 = vmatmul.mubr.f32.gmra.mrb[0].mxu0 %v1162
  %v4998 = vpop.f32.mrb[0].mxu0
  %v4999 = vadd.f32 0.0, %v4998
  %v5000 = vpop.f32.mrb[0].mxu0
  %5001 = vmatprep.mubr.f32.mxu0 0.0
  %5002 = vmatmul.mubr.f32.gmra.mrb[0].mxu0 %v1164
  %v5003 = vpop.f32.mrb[0].mxu0
  %v5004 = vadd.f32 0.0, %v5003
  %v5005 = vpop.f32.mrb[0].mxu0
  %5006 = vmatprep.mubr.f32.mxu0 0.0
  %5007 = vmatmul.mubr.f32.gmra.mrb[0].mxu0 %v1166
  %v5008 = vpop.f32.mrb[0].mxu0
  %v5009 = vadd.f32 0.0, %v5008
  %v5010 = vpop.f32.mrb[0].mxu0
  %5011 = vmatprep.mubr.f32.mxu0 0.0
  %5012 = vmatmul.mubr.f32.gmra.mrb[0].mxu0 %v1168
  %v5013 = vpop.f32.mrb[0].mxu0
  %v5014 = vadd.f32 0.0, %v5013
  %v5015 = vpop.f32.mrb[0].mxu0
  %5016 = vmatprep.mubr.f32.mxu0 0.0
  %5017 = vmatmul.mubr.f32.gmra.mrb[0].mxu0 %v1170
  %v5018 = vpop.f32.mrb[0].mxu0
  %v5019 = vadd.f32 0.0, %v5018
  %v5020 = vpop.f32.mrb[0].mxu0
  %5021 = vmatprep.mubr.f32.mxu0 0.0
  %5022 = vmatmul.mubr.f32.gmra.mrb[0].mxu0 %v1172
  %v5023 = vpop.f32.mrb[0].mxu0
  %v5024 = vadd.f32 0.0, %v5023
  %v5025 = vpop.f32.mrb[0].mxu0
  %5026 = vmatprep.mubr.f32.mxu0 0.0
  %5027 = vmatmul.mubr.f32.gmra.mrb[0].mxu0 %v1174
  %v5028 = vpop.f32.mrb[0].mxu0
  %v5029 = vadd.f32 0.0, %v5028
  %v5030 = vpop.f32.mrb[0].mxu0
  %5031 = vmatprep.mubr.f32.mxu0 0.0
  %5032 = vmatmul.mubr.f32.gmra.mrb[0].mxu0 %v1176
  %v5033 = vpop.f32.mrb[0].mxu0
  %v5034 = vadd.f32 0.0, %v5033
  %v5035 = vpop.f32.mrb[0].mxu0
  %5036 = vmatprep.mubr.f32.mxu0 0.0
  %5037 = vmatmul.mubr.f32.gmra.mrb[0].mxu0 %v1178
  %v5038 = vpop.f32.mrb[0].mxu0
  %v5039 = vadd.f32 0.0, %v5038
  %v5040 = vpop.f32.mrb[0].mxu0
  %5041 = vmatprep.mubr.f32.mxu0 0.0
  %5042 = vmatmul.mubr.f32.gmra.mrb[0].mxu0 %v1180
  %v5043 = vpop.f32.mrb[0].mxu0
  %v5044 = vadd.f32 0.0, %v5043
  %v5045 = vpop.f32.mrb[0].mxu0
  %5046 = vmatprep.mubr.f32.mxu0 0.0
  %5047 = vmatmul.mubr.f32.gmra.mrb[0].mxu0 %v1182
  %v5048 = vpop.f32.mrb[0].mxu0
  %v5049 = vadd.f32 0.0, %v5048
  %v5050 = vpop.f32.mrb[0].mxu0
  %5051 = vmatprep.mubr.f32.mxu0 0.0
  %5052 = vmatmul.mubr.f32.gmra.mrb[0].mxu0 %v1184
  %v5053 = vpop.f32.mrb[0].mxu0
  %v5054 = vadd.f32 0.0, %v5053
  %v5055 = vpop.f32.mrb[0].mxu0
  %5056 = vmatprep.mubr.f32.mxu0 0.0
  %5057 = vmatmul.mubr.f32.gmra.mrb[0].mxu0 %v1186
  %v5058 = vpop.f32.mrb[0].mxu0
  %v5059 = vadd.f32 0.0, %v5058
  %v5060 = vpop.f32.mrb[0].mxu0
  %5061 = vmatprep.mubr.f32.mxu0 0.0
  %5062 = vmatmul.mubr.f32.gmra.mrb[0].mxu0 %v1188
  %v5063 = vpop.f32.mrb[0].mxu0
  %v5064 = vadd.f32 0.0, %v5063
  %v5065 = vpop.f32.mrb[0].mxu0
  %5066 = vmatprep.mubr.f32.mxu0 0.0
  %5067 = vmatmul.mubr.f32.gmra.mrb[0].mxu0 %v1190
  %v5068 = vpop.f32.mrb[0].mxu0
  %v5069 = vadd.f32 0.0, %v5068
  %v5070 = vpop.f32.mrb[0].mxu0
  %5071 = vmatprep.mubr.f32.mxu0 0.0
  %5072 = vmatmul.mubr.f32.gmra.mrb[0].mxu0 %v1192
  %v5073 = vpop.f32.mrb[0].mxu0
  %v5074 = vadd.f32 0.0, %v5073
  %v5075 = vpop.f32.mrb[0].mxu0
  %5076 = vmatprep.mubr.f32.mxu0 0.0
  %5077 = vmatmul.mubr.f32.gmra.mrb[0].mxu0 %v1194
  %v5078 = vpop.f32.mrb[0].mxu0
  %v5079 = vadd.f32 0.0, %v5078
  %v5080 = vpop.f32.mrb[0].mxu0
  %5081 = vmatprep.mubr.f32.mxu0 0.0
  %5082 = vmatmul.mubr.f32.gmra.mrb[0].mxu0 %v1196
  %v5083 = vpop.f32.mrb[0].mxu0
  %v5084 = vadd.f32 0.0, %v5083
  %v5085 = vpop.f32.mrb[0].mxu0
  %5086 = vmatprep.mubr.f32.mxu0 0.0
  %5087 = vmatmul.mubr.f32.gmra.mrb[0].mxu0 %v1198
  %v5088 = vpop.f32.mrb[0].mxu0
  %v5089 = vadd.f32 0.0, %v5088
  %v5090 = vpop.f32.mrb[0].mxu0
  %5091 = vmatprep.mubr.f32.mxu0 0.0
  %5092 = vmatmul.mubr.f32.gmra.mrb[0].mxu0 %v1200
  %v5093 = vpop.f32.mrb[0].mxu0
  %v5094 = vadd.f32 0.0, %v5093
  %v5095 = vpop.f32.mrb[0].mxu0
  %5096 = vmatprep.mubr.f32.mxu0 0.0
  %5097 = vmatmul.mubr.f32.gmra.mrb[0].mxu0 %v1202
  %v5098 = vpop.f32.mrb[0].mxu0
  %v5099 = vadd.f32 0.0, %v5098
  %v5100 = vpop.f32.mrb[0].mxu0
  %5101 = vmatprep.mubr.f32.mxu0 0.0
  %5102 = vmatmul.mubr.f32.gmra.mrb[0].mxu0 %v1204
  %v5103 = vpop.f32.mrb[0].mxu0
  %v5104 = vadd.f32 0.0, %v5103
  %v5105 = vpop.f32.mrb[0].mxu0
  %5106 = vmatprep.mubr.f32.mxu0 0.0
  %5107 = vmatmul.mubr.f32.gmra.mrb[0].mxu0 %v1206
  %v5108 = vpop.f32.mrb[0].mxu0
  %v5109 = vadd.f32 0.0, %v5108
  %v5110 = vpop.f32.mrb[0].mxu0
  %5111 = vmatprep.mubr.f32.mxu0 0.0
  %5112 = vmatmul.mubr.f32.gmra.mrb[0].mxu0 %v3334
  %v5113 = vpop.f32.mrb[0].mxu0
  %v5114 = vadd.f32 0.0, %v5113
  %v5115 = vpop.f32.mrb[0].mxu0
  %5116 = vmatprep.mubr.f32.mxu0 0.0
  %5117 = vmatmul.mubr.f32.gmra.mrb[0].mxu0 %v3336
  %v5118 = vpop.f32.mrb[0].mxu0
  %v5119 = vadd.f32 0.0, %v5118
  %v5120 = vpop.f32.mrb[0].mxu0
  %5121 = vmatprep.mubr.f32.mxu0 0.0
  %5122 = vmatmul.mubr.f32.gmra.mrb[0].mxu0 %v4740
  %v5123 = vpop.f32.mrb[0].mxu0
  %v5124 = vadd.f32 0.0, %v5123
  %v5125 = vpop.f32.mrb[0].mxu0
  %5126 = vmatprep.mubr.f32.mxu0 0.0
  %5127 = vmatmul.mubr.f32.gmra.mrb[0].mxu0 %v4742
  %v5128 = vpop.f32.mrb[0].mxu0
  %v5129 = vadd.f32 0.0, %v5128
  %v5130 = vpop.f32.mrb[0].mxu0
  %5131 = vdwg.mxu0
  %v5132 = vadd.f32 %v4660, %v4814
  %v5133 = vadd.f32 %v4661, %v4819
  %v5134 = vadd.f32 %v4662, %v4824
  %v5135 = vadd.f32 %v4663, %v4829
  %v5136 = vadd.f32 %v4664, %v4834
  %v5137 = vadd.f32 %v4665, %v4839
  %v5138 = vadd.f32 %v4666, %v4844
  %v5139 = vadd.f32 %v4667, %v4849
  %v5140 = vadd.f32 %v4668, %v4854
  %v5141 = vadd.f32 %v4669, %v4859
  %v5142 = vadd.f32 %v4670, %v4864
  %v5143 = vadd.f32 %v4671, %v4869
  %v5144 = vadd.f32 %v4672, %v4874
  %v5145 = vadd.f32 %v4673, %v4879
  %v5146 = vadd.f32 %v4674, %v4884
  %v5147 = vadd.f32 %v4675, %v4889
  %v5148 = vadd.f32 %v4676, %v4894
  %v5149 = vadd.f32 %v4677, %v4899
  %v5150 = vadd.f32 %v4678, %v4904
  %v5151 = vadd.f32 %v4679, %v4909
  %v5152 = vadd.f32 %v4680, %v4914
  %v5153 = vadd.f32 %v4681, %v4919
  %v5154 = vadd.f32 %v4682, %v4924
  %v5155 = vadd.f32 %v4683, %v4929
  %v5156 = vadd.f32 %v4684, %v4934
  %v5157 = vadd.f32 %v4685, %v4939
  %v5158 = vadd.f32 %v4686, %v4944
  %v5159 = vadd.f32 %v4687, %v4949
  %v5160 = vadd.f32 %v4688, %v4954
  %v5161 = vadd.f32 %v4689, %v4959
  %v5162 = vadd.f32 %v4690, %v4964
  %v5163 = vadd.f32 %v4691, %v4969
  %v5164 = vadd.f32 %v4692, %v4974
  %v5165 = vadd.f32 %v4693, %v4979
  %v5166 = vadd.f32 %v4694, %v4984
  %v5167 = vadd.f32 %v4695, %v4989
  %v5168 = vadd.f32 %v4696, %v4994
  %v5169 = vadd.f32 %v4697, %v4999
  %v5170 = vadd.f32 %v4698, %v5004
  %v5171 = vadd.f32 %v4699, %v5009
  %v5172 = vadd.f32 %v4700, %v5014
  %v5173 = vadd.f32 %v4701, %v5019
  %v5174 = vadd.f32 %v4702, %v5024
  %v5175 = vadd.f32 %v4703, %v5029
  %v5176 = vadd.f32 %v4704, %v5034
  %v5177 = vadd.f32 %v4705, %v5039
  %v5178 = vadd.f32 %v4706, %v5044
  %v5179 = vadd.f32 %v4707, %v5049
  %v5180 = vadd.f32 %v4708, %v5054
  %v5181 = vadd.f32 %v4709, %v5059
  %v5182 = vadd.f32 %v4710, %v5064
  %v5183 = vadd.f32 %v4711, %v5069
  %v5184 = vadd.f32 %v4712, %v5074
  %v5185 = vadd.f32 %v4713, %v5079
  %v5186 = vadd.f32 %v4714, %v5084
  %v5187 = vadd.f32 %v4715, %v5089
  %v5188 = vadd.f32 %v4716, %v5094
  %v5189 = vadd.f32 %v4717, %v5099
  %v5190 = vadd.f32 %v4718, %v5104
  %v5191 = vadd.f32 %v4719, %v5109
  %v5192 = vadd.f32 %v4720, %v5114
  %v5193 = vadd.f32 %v4721, %v5119
  %v5194 = vadd.f32 %v4722, %v5124
  %v5195 = vadd.f32 %v4723, %v5129
  %v5196 = vrot.slane %v765, 2
  %v5197 = vrot.slane %v766, 2
  %v5198 = vsel %vm2113, %v5196, %v5197
  %v5199 = vrot.slane %v767, 2
  %v5200 = vsel %vm2113, %v5197, %v5199
  %v5201 = vrot.slane %v819, 2
  %v5202 = vrot.slane %v820, 2
  %v5203 = vsel %vm2113, %v5201, %v5202
  %v5204 = vrot.slane %v821, 2
  %v5205 = vsel %vm2113, %v5202, %v5204
  %v5206 = vsel %vm1079, %v5198, 0
  %v5208 = vsel %vm1079, %v5200, 0
  %v5210 = vsel %vm1079, %v5203, 0
  %v5212 = vsel %vm1079, %v5205, 0
  %v5215 = vsel %vm1208, %v136, 0
  %5217 = vmatprep.subr.mxu0 0.0
  %5218 = vmatpush1.msra.mxu0 %v5215
  %5219 = vmatprep.subr.mxu0 0.0
  %5220 = vmatpush1.msra.mxu0 0.0
  %5221 = vmatprep.subr.mxu0 0.0
  %5222 = vmatpush1.msra.mxu0 0.0
  %5223 = vmatprep.subr.mxu0 0.0
  %5224 = vmatpush1.msra.mxu0 0.0
  %5225 = vmatprep.subr.mxu0 0.0
  %5226 = vmatpush1.msra.mxu0 0.0
  %5227 = vmatprep.subr.mxu0 0.0
  %5228 = vmatpush1.msra.mxu0 0.0
  %5229 = vmatprep.subr.mxu0 0.0
  %5230 = vmatpush1.msra.mxu0 0.0
  %5231 = vmatprep.subr.mxu0 0.0
  %5232 = vmatpush1.msra.mxu0 0.0
  %5233 = vmatprep.subr.mxu0 0.0
  %5234 = vmatpush1.msra.mxu0 0.0
  %5235 = vmatprep.subr.mxu0 0.0
  %5236 = vmatpush1.msra.mxu0 0.0
  %5237 = vmatprep.subr.mxu0 0.0
  %5238 = vmatpush1.msra.mxu0 0.0
  %5239 = vmatprep.subr.mxu0 0.0
  %5240 = vmatpush1.msra.mxu0 0.0
  %5241 = vmatprep.subr.mxu0 0.0
  %5242 = vmatpush1.msra.mxu0 0.0
  %5243 = vmatprep.subr.mxu0 0.0
  %5244 = vmatpush1.msra.mxu0 0.0
  %5245 = vmatprep.subr.mxu0 0.0
  %5246 = vmatpush1.msra.mxu0 0.0
  %5247 = vmatprep.subr.mxu0 0.0
  %5248 = vmatpush1.msra.mxu0 0.0
  %5249 = vmatprep.subr.mxu0 0.0
  %5250 = vmatpush1.msra.mxu0 0.0
  %5251 = vmatprep.subr.mxu0 0.0
  %5252 = vmatpush1.msra.mxu0 0.0
  %5253 = vmatprep.subr.mxu0 0.0
  %5254 = vmatpush1.msra.mxu0 0.0
  %5255 = vmatprep.subr.mxu0 0.0
  %5256 = vmatpush1.msra.mxu0 0.0
  %5257 = vmatprep.subr.mxu0 0.0
  %5258 = vmatpush1.msra.mxu0 0.0
  %5259 = vmatprep.subr.mxu0 0.0
  %5260 = vmatpush1.msra.mxu0 0.0
  %5261 = vmatprep.subr.mxu0 0.0
  %5262 = vmatpush1.msra.mxu0 0.0
  %5263 = vmatprep.subr.mxu0 0.0
  %5264 = vmatpush1.msra.mxu0 0.0
  %5265 = vmatprep.subr.mxu0 0.0
  %5266 = vmatpush1.msra.mxu0 0.0
  %5267 = vmatprep.subr.mxu0 0.0
  %5268 = vmatpush1.msra.mxu0 0.0
  %5269 = vmatprep.subr.mxu0 0.0
  %5270 = vmatpush1.msra.mxu0 0.0
  %5271 = vmatprep.subr.mxu0 0.0
  %5272 = vmatpush1.msra.mxu0 0.0
  %5273 = vmatprep.subr.mxu0 0.0
  %5274 = vmatpush1.msra.mxu0 0.0
  %5275 = vmatprep.subr.mxu0 0.0
  %5276 = vmatpush1.msra.mxu0 0.0
  %5277 = vmatprep.subr.mxu0 0.0
  %5278 = vmatpush1.msra.mxu0 0.0
  %5279 = vmatprep.subr.mxu0 0.0
  %5280 = vmatpush1.msra.mxu0 0.0
  %5281 = vmatprep.mubr.f32.mxu0 0.0
  %5282 = vmatmul.mubr.f32.gmra.mrb[0].mxu0 %v2282
  %v5283 = vpop.f32.mrb[0].mxu0
  %v5284 = vadd.f32 0.0, %v5283
  %v5285 = vpop.f32.mrb[0].mxu0
  %5286 = vmatprep.mubr.f32.mxu0 0.0
  %5287 = vmatmul.mubr.f32.gmra.mrb[0].mxu0 %v2284
  %v5288 = vpop.f32.mrb[0].mxu0
  %v5289 = vadd.f32 0.0, %v5288
  %v5290 = vpop.f32.mrb[0].mxu0
  %5291 = vmatprep.mubr.f32.mxu0 0.0
  %5292 = vmatmul.mubr.f32.gmra.mrb[0].mxu0 %v2286
  %v5293 = vpop.f32.mrb[0].mxu0
  %v5294 = vadd.f32 0.0, %v5293
  %v5295 = vpop.f32.mrb[0].mxu0
  %5296 = vmatprep.mubr.f32.mxu0 0.0
  %5297 = vmatmul.mubr.f32.gmra.mrb[0].mxu0 %v2288
  %v5298 = vpop.f32.mrb[0].mxu0
  %v5299 = vadd.f32 0.0, %v5298
  %v5300 = vpop.f32.mrb[0].mxu0
  %5301 = vmatprep.mubr.f32.mxu0 0.0
  %5302 = vmatmul.mubr.f32.gmra.mrb[0].mxu0 %v2290
  %v5303 = vpop.f32.mrb[0].mxu0
  %v5304 = vadd.f32 0.0, %v5303
  %v5305 = vpop.f32.mrb[0].mxu0
  %5306 = vmatprep.mubr.f32.mxu0 0.0
  %5307 = vmatmul.mubr.f32.gmra.mrb[0].mxu0 %v2292
  %v5308 = vpop.f32.mrb[0].mxu0
  %v5309 = vadd.f32 0.0, %v5308
  %v5310 = vpop.f32.mrb[0].mxu0
  %5311 = vmatprep.mubr.f32.mxu0 0.0
  %5312 = vmatmul.mubr.f32.gmra.mrb[0].mxu0 %v2294
  %v5313 = vpop.f32.mrb[0].mxu0
  %v5314 = vadd.f32 0.0, %v5313
  %v5315 = vpop.f32.mrb[0].mxu0
  %5316 = vmatprep.mubr.f32.mxu0 0.0
  %5317 = vmatmul.mubr.f32.gmra.mrb[0].mxu0 %v2296
  %v5318 = vpop.f32.mrb[0].mxu0
  %v5319 = vadd.f32 0.0, %v5318
  %v5320 = vpop.f32.mrb[0].mxu0
  %5321 = vmatprep.mubr.f32.mxu0 0.0
  %5322 = vmatmul.mubr.f32.gmra.mrb[0].mxu0 %v2298
  %v5323 = vpop.f32.mrb[0].mxu0
  %v5324 = vadd.f32 0.0, %v5323
  %v5325 = vpop.f32.mrb[0].mxu0
  %5326 = vmatprep.mubr.f32.mxu0 0.0
  %5327 = vmatmul.mubr.f32.gmra.mrb[0].mxu0 %v2300
  %v5328 = vpop.f32.mrb[0].mxu0
  %v5329 = vadd.f32 0.0, %v5328
  %v5330 = vpop.f32.mrb[0].mxu0
  %5331 = vmatprep.mubr.f32.mxu0 0.0
  %5332 = vmatmul.mubr.f32.gmra.mrb[0].mxu0 %v2302
  %v5333 = vpop.f32.mrb[0].mxu0
  %v5334 = vadd.f32 0.0, %v5333
  %v5335 = vpop.f32.mrb[0].mxu0
  %5336 = vmatprep.mubr.f32.mxu0 0.0
  %5337 = vmatmul.mubr.f32.gmra.mrb[0].mxu0 %v2304
  %v5338 = vpop.f32.mrb[0].mxu0
  %v5339 = vadd.f32 0.0, %v5338
  %v5340 = vpop.f32.mrb[0].mxu0
  %5341 = vmatprep.mubr.f32.mxu0 0.0
  %5342 = vmatmul.mubr.f32.gmra.mrb[0].mxu0 %v2306
  %v5343 = vpop.f32.mrb[0].mxu0
  %v5344 = vadd.f32 0.0, %v5343
  %v5345 = vpop.f32.mrb[0].mxu0
  %5346 = vmatprep.mubr.f32.mxu0 0.0
  %5347 = vmatmul.mubr.f32.gmra.mrb[0].mxu0 %v2308
  %v5348 = vpop.f32.mrb[0].mxu0
  %v5349 = vadd.f32 0.0, %v5348
  %v5350 = vpop.f32.mrb[0].mxu0
  %5351 = vmatprep.mubr.f32.mxu0 0.0
  %5352 = vmatmul.mubr.f32.gmra.mrb[0].mxu0 %v2310
  %v5353 = vpop.f32.mrb[0].mxu0
  %v5354 = vadd.f32 0.0, %v5353
  %v5355 = vpop.f32.mrb[0].mxu0
  %5356 = vmatprep.mubr.f32.mxu0 0.0
  %5357 = vmatmul.mubr.f32.gmra.mrb[0].mxu0 %v2312
  %v5358 = vpop.f32.mrb[0].mxu0
  %v5359 = vadd.f32 0.0, %v5358
  %v5360 = vpop.f32.mrb[0].mxu0
  %5361 = vmatprep.mubr.f32.mxu0 0.0
  %5362 = vmatmul.mubr.f32.gmra.mrb[0].mxu0 %v2314
  %v5363 = vpop.f32.mrb[0].mxu0
  %v5364 = vadd.f32 0.0, %v5363
  %v5365 = vpop.f32.mrb[0].mxu0
  %5366 = vmatprep.mubr.f32.mxu0 0.0
  %5367 = vmatmul.mubr.f32.gmra.mrb[0].mxu0 %v2316
  %v5368 = vpop.f32.mrb[0].mxu0
  %v5369 = vadd.f32 0.0, %v5368
  %v5370 = vpop.f32.mrb[0].mxu0
  %5371 = vmatprep.mubr.f32.mxu0 0.0
  %5372 = vmatmul.mubr.f32.gmra.mrb[0].mxu0 %v2318
  %v5373 = vpop.f32.mrb[0].mxu0
  %v5374 = vadd.f32 0.0, %v5373
  %v5375 = vpop.f32.mrb[0].mxu0
  %5376 = vmatprep.mubr.f32.mxu0 0.0
  %5377 = vmatmul.mubr.f32.gmra.mrb[0].mxu0 %v2320
  %v5378 = vpop.f32.mrb[0].mxu0
  %v5379 = vadd.f32 0.0, %v5378
  %v5380 = vpop.f32.mrb[0].mxu0
  %5381 = vmatprep.mubr.f32.mxu0 0.0
  %5382 = vmatmul.mubr.f32.gmra.mrb[0].mxu0 %v2322
  %v5383 = vpop.f32.mrb[0].mxu0
  %v5384 = vadd.f32 0.0, %v5383
  %v5385 = vpop.f32.mrb[0].mxu0
  %5386 = vmatprep.mubr.f32.mxu0 0.0
  %5387 = vmatmul.mubr.f32.gmra.mrb[0].mxu0 %v2324
  %v5388 = vpop.f32.mrb[0].mxu0
  %v5389 = vadd.f32 0.0, %v5388
  %v5390 = vpop.f32.mrb[0].mxu0
  %5391 = vmatprep.mubr.f32.mxu0 0.0
  %5392 = vmatmul.mubr.f32.gmra.mrb[0].mxu0 %v2326
  %v5393 = vpop.f32.mrb[0].mxu0
  %v5394 = vadd.f32 0.0, %v5393
  %v5395 = vpop.f32.mrb[0].mxu0
  %5396 = vmatprep.mubr.f32.mxu0 0.0
  %5397 = vmatmul.mubr.f32.gmra.mrb[0].mxu0 %v2328
  %v5398 = vpop.f32.mrb[0].mxu0
  %v5399 = vadd.f32 0.0, %v5398
  %v5400 = vpop.f32.mrb[0].mxu0
  %5401 = vmatprep.mubr.f32.mxu0 0.0
  %5402 = vmatmul.mubr.f32.gmra.mrb[0].mxu0 %v2330
  %v5403 = vpop.f32.mrb[0].mxu0
  %v5404 = vadd.f32 0.0, %v5403
  %v5405 = vpop.f32.mrb[0].mxu0
  %5406 = vmatprep.mubr.f32.mxu0 0.0
  %5407 = vmatmul.mubr.f32.gmra.mrb[0].mxu0 %v2332
  %v5408 = vpop.f32.mrb[0].mxu0
  %v5409 = vadd.f32 0.0, %v5408
  %v5410 = vpop.f32.mrb[0].mxu0
  %5411 = vmatprep.mubr.f32.mxu0 0.0
  %5412 = vmatmul.mubr.f32.gmra.mrb[0].mxu0 %v2334
  %v5413 = vpop.f32.mrb[0].mxu0
  %v5414 = vadd.f32 0.0, %v5413
  %v5415 = vpop.f32.mrb[0].mxu0
  %5416 = vmatprep.mubr.f32.mxu0 0.0
  %5417 = vmatmul.mubr.f32.gmra.mrb[0].mxu0 %v2336
  %v5418 = vpop.f32.mrb[0].mxu0
  %v5419 = vadd.f32 0.0, %v5418
  %v5420 = vpop.f32.mrb[0].mxu0
  %5421 = vmatprep.mubr.f32.mxu0 0.0
  %5422 = vmatmul.mubr.f32.gmra.mrb[0].mxu0 %v3800
  %v5423 = vpop.f32.mrb[0].mxu0
  %v5424 = vadd.f32 0.0, %v5423
  %v5425 = vpop.f32.mrb[0].mxu0
  %5426 = vmatprep.mubr.f32.mxu0 0.0
  %5427 = vmatmul.mubr.f32.gmra.mrb[0].mxu0 %v3802
  %v5428 = vpop.f32.mrb[0].mxu0
  %v5429 = vadd.f32 0.0, %v5428
  %v5430 = vpop.f32.mrb[0].mxu0
  %5431 = vmatprep.mubr.f32.mxu0 0.0
  %5432 = vmatmul.mubr.f32.gmra.mrb[0].mxu0 %v5206
  %v5433 = vpop.f32.mrb[0].mxu0
  %v5434 = vadd.f32 0.0, %v5433
  %v5435 = vpop.f32.mrb[0].mxu0
  %5436 = vmatprep.mubr.f32.mxu0 0.0
  %5437 = vmatmul.mubr.f32.gmra.mrb[0].mxu0 %v5208
  %v5438 = vpop.f32.mrb[0].mxu0
  %v5439 = vadd.f32 0.0, %v5438
  %v5440 = vpop.f32.mrb[0].mxu0
  %5441 = vmatprep.mubr.f32.mxu0 0.0
  %5442 = vmatmul.mubr.f32.gmra.mrb[0].mxu0 %v2346
  %v5443 = vpop.f32.mrb[0].mxu0
  %v5444 = vadd.f32 0.0, %v5443
  %v5445 = vpop.f32.mrb[0].mxu0
  %5446 = vmatprep.mubr.f32.mxu0 0.0
  %5447 = vmatmul.mubr.f32.gmra.mrb[0].mxu0 %v2348
  %v5448 = vpop.f32.mrb[0].mxu0
  %v5449 = vadd.f32 0.0, %v5448
  %v5450 = vpop.f32.mrb[0].mxu0
  %5451 = vmatprep.mubr.f32.mxu0 0.0
  %5452 = vmatmul.mubr.f32.gmra.mrb[0].mxu0 %v2350
  %v5453 = vpop.f32.mrb[0].mxu0
  %v5454 = vadd.f32 0.0, %v5453
  %v5455 = vpop.f32.mrb[0].mxu0
  %5456 = vmatprep.mubr.f32.mxu0 0.0
  %5457 = vmatmul.mubr.f32.gmra.mrb[0].mxu0 %v2352
  %v5458 = vpop.f32.mrb[0].mxu0
  %v5459 = vadd.f32 0.0, %v5458
  %v5460 = vpop.f32.mrb[0].mxu0
  %5461 = vmatprep.mubr.f32.mxu0 0.0
  %5462 = vmatmul.mubr.f32.gmra.mrb[0].mxu0 %v2354
  %v5463 = vpop.f32.mrb[0].mxu0
  %v5464 = vadd.f32 0.0, %v5463
  %v5465 = vpop.f32.mrb[0].mxu0
  %5466 = vmatprep.mubr.f32.mxu0 0.0
  %5467 = vmatmul.mubr.f32.gmra.mrb[0].mxu0 %v2356
  %v5468 = vpop.f32.mrb[0].mxu0
  %v5469 = vadd.f32 0.0, %v5468
  %v5470 = vpop.f32.mrb[0].mxu0
  %5471 = vmatprep.mubr.f32.mxu0 0.0
  %5472 = vmatmul.mubr.f32.gmra.mrb[0].mxu0 %v2358
  %v5473 = vpop.f32.mrb[0].mxu0
  %v5474 = vadd.f32 0.0, %v5473
  %v5475 = vpop.f32.mrb[0].mxu0
  %5476 = vmatprep.mubr.f32.mxu0 0.0
  %5477 = vmatmul.mubr.f32.gmra.mrb[0].mxu0 %v2360
  %v5478 = vpop.f32.mrb[0].mxu0
  %v5479 = vadd.f32 0.0, %v5478
  %v5480 = vpop.f32.mrb[0].mxu0
  %5481 = vmatprep.mubr.f32.mxu0 0.0
  %5482 = vmatmul.mubr.f32.gmra.mrb[0].mxu0 %v2362
  %v5483 = vpop.f32.mrb[0].mxu0
  %v5484 = vadd.f32 0.0, %v5483
  %v5485 = vpop.f32.mrb[0].mxu0
  %5486 = vmatprep.mubr.f32.mxu0 0.0
  %5487 = vmatmul.mubr.f32.gmra.mrb[0].mxu0 %v2364
  %v5488 = vpop.f32.mrb[0].mxu0
  %v5489 = vadd.f32 0.0, %v5488
  %v5490 = vpop.f32.mrb[0].mxu0
  %5491 = vmatprep.mubr.f32.mxu0 0.0
  %5492 = vmatmul.mubr.f32.gmra.mrb[0].mxu0 %v2366
  %v5493 = vpop.f32.mrb[0].mxu0
  %v5494 = vadd.f32 0.0, %v5493
  %v5495 = vpop.f32.mrb[0].mxu0
  %5496 = vmatprep.mubr.f32.mxu0 0.0
  %5497 = vmatmul.mubr.f32.gmra.mrb[0].mxu0 %v2368
  %v5498 = vpop.f32.mrb[0].mxu0
  %v5499 = vadd.f32 0.0, %v5498
  %v5500 = vpop.f32.mrb[0].mxu0
  %5501 = vmatprep.mubr.f32.mxu0 0.0
  %5502 = vmatmul.mubr.f32.gmra.mrb[0].mxu0 %v2370
  %v5503 = vpop.f32.mrb[0].mxu0
  %v5504 = vadd.f32 0.0, %v5503
  %v5505 = vpop.f32.mrb[0].mxu0
  %5506 = vmatprep.mubr.f32.mxu0 0.0
  %5507 = vmatmul.mubr.f32.gmra.mrb[0].mxu0 %v2372
  %v5508 = vpop.f32.mrb[0].mxu0
  %v5509 = vadd.f32 0.0, %v5508
  %v5510 = vpop.f32.mrb[0].mxu0
  %5511 = vmatprep.mubr.f32.mxu0 0.0
  %5512 = vmatmul.mubr.f32.gmra.mrb[0].mxu0 %v2374
  %v5513 = vpop.f32.mrb[0].mxu0
  %v5514 = vadd.f32 0.0, %v5513
  %v5515 = vpop.f32.mrb[0].mxu0
  %5516 = vmatprep.mubr.f32.mxu0 0.0
  %5517 = vmatmul.mubr.f32.gmra.mrb[0].mxu0 %v2376
  %v5518 = vpop.f32.mrb[0].mxu0
  %v5519 = vadd.f32 0.0, %v5518
  %v5520 = vpop.f32.mrb[0].mxu0
  %5521 = vmatprep.mubr.f32.mxu0 0.0
  %5522 = vmatmul.mubr.f32.gmra.mrb[0].mxu0 %v2378
  %v5523 = vpop.f32.mrb[0].mxu0
  %v5524 = vadd.f32 0.0, %v5523
  %v5525 = vpop.f32.mrb[0].mxu0
  %5526 = vmatprep.mubr.f32.mxu0 0.0
  %5527 = vmatmul.mubr.f32.gmra.mrb[0].mxu0 %v2380
  %v5528 = vpop.f32.mrb[0].mxu0
  %v5529 = vadd.f32 0.0, %v5528
  %v5530 = vpop.f32.mrb[0].mxu0
  %5531 = vmatprep.mubr.f32.mxu0 0.0
  %5532 = vmatmul.mubr.f32.gmra.mrb[0].mxu0 %v2382
  %v5533 = vpop.f32.mrb[0].mxu0
  %v5534 = vadd.f32 0.0, %v5533
  %v5535 = vpop.f32.mrb[0].mxu0
  %5536 = vmatprep.mubr.f32.mxu0 0.0
  %5537 = vmatmul.mubr.f32.gmra.mrb[0].mxu0 %v2384
  %v5538 = vpop.f32.mrb[0].mxu0
  %v5539 = vadd.f32 0.0, %v5538
  %v5540 = vpop.f32.mrb[0].mxu0
  %5541 = vmatprep.mubr.f32.mxu0 0.0
  %5542 = vmatmul.mubr.f32.gmra.mrb[0].mxu0 %v2386
  %v5543 = vpop.f32.mrb[0].mxu0
  %v5544 = vadd.f32 0.0, %v5543
  %v5545 = vpop.f32.mrb[0].mxu0
  %5546 = vmatprep.mubr.f32.mxu0 0.0
  %5547 = vmatmul.mubr.f32.gmra.mrb[0].mxu0 %v2388
  %v5548 = vpop.f32.mrb[0].mxu0
  %v5549 = vadd.f32 0.0, %v5548
  %v5550 = vpop.f32.mrb[0].mxu0
  %5551 = vmatprep.mubr.f32.mxu0 0.0
  %5552 = vmatmul.mubr.f32.gmra.mrb[0].mxu0 %v2390
  %v5553 = vpop.f32.mrb[0].mxu0
  %v5554 = vadd.f32 0.0, %v5553
  %v5555 = vpop.f32.mrb[0].mxu0
  %5556 = vmatprep.mubr.f32.mxu0 0.0
  %5557 = vmatmul.mubr.f32.gmra.mrb[0].mxu0 %v2392
  %v5558 = vpop.f32.mrb[0].mxu0
  %v5559 = vadd.f32 0.0, %v5558
  %v5560 = vpop.f32.mrb[0].mxu0
  %5561 = vmatprep.mubr.f32.mxu0 0.0
  %5562 = vmatmul.mubr.f32.gmra.mrb[0].mxu0 %v2394
  %v5563 = vpop.f32.mrb[0].mxu0
  %v5564 = vadd.f32 0.0, %v5563
  %v5565 = vpop.f32.mrb[0].mxu0
  %5566 = vmatprep.mubr.f32.mxu0 0.0
  %5567 = vmatmul.mubr.f32.gmra.mrb[0].mxu0 %v2396
  %v5568 = vpop.f32.mrb[0].mxu0
  %v5569 = vadd.f32 0.0, %v5568
  %v5570 = vpop.f32.mrb[0].mxu0
  %5571 = vmatprep.mubr.f32.mxu0 0.0
  %5572 = vmatmul.mubr.f32.gmra.mrb[0].mxu0 %v2398
  %v5573 = vpop.f32.mrb[0].mxu0
  %v5574 = vadd.f32 0.0, %v5573
  %v5575 = vpop.f32.mrb[0].mxu0
  %5576 = vmatprep.mubr.f32.mxu0 0.0
  %5577 = vmatmul.mubr.f32.gmra.mrb[0].mxu0 %v2400
  %v5578 = vpop.f32.mrb[0].mxu0
  %v5579 = vadd.f32 0.0, %v5578
  %v5580 = vpop.f32.mrb[0].mxu0
  %5581 = vmatprep.mubr.f32.mxu0 0.0
  %5582 = vmatmul.mubr.f32.gmra.mrb[0].mxu0 %v3804
  %v5583 = vpop.f32.mrb[0].mxu0
  %v5584 = vadd.f32 0.0, %v5583
  %v5585 = vpop.f32.mrb[0].mxu0
  %5586 = vmatprep.mubr.f32.mxu0 0.0
  %5587 = vmatmul.mubr.f32.gmra.mrb[0].mxu0 %v3806
  %v5588 = vpop.f32.mrb[0].mxu0
  %v5589 = vadd.f32 0.0, %v5588
  %v5590 = vpop.f32.mrb[0].mxu0
  %5591 = vmatprep.mubr.f32.mxu0 0.0
  %5592 = vmatmul.mubr.f32.gmra.mrb[0].mxu0 %v5210
  %v5593 = vpop.f32.mrb[0].mxu0
  %v5594 = vadd.f32 0.0, %v5593
  %v5595 = vpop.f32.mrb[0].mxu0
  %5596 = vmatprep.mubr.f32.mxu0 0.0
  %5597 = vmatmul.mubr.f32.gmra.mrb[0].mxu0 %v5212
  %v5598 = vpop.f32.mrb[0].mxu0
  %v5599 = vadd.f32 0.0, %v5598
  %v5600 = vpop.f32.mrb[0].mxu0
  %5601 = vdwg.mxu0
  %v5602 = vadd.f32 %v5132, %v5284
  %v5603 = vadd.f32 %v5133, %v5289
  %v5604 = vadd.f32 %v5134, %v5294
  %v5605 = vadd.f32 %v5135, %v5299
  %v5606 = vadd.f32 %v5136, %v5304
  %v5607 = vadd.f32 %v5137, %v5309
  %v5608 = vadd.f32 %v5138, %v5314
  %v5609 = vadd.f32 %v5139, %v5319
  %v5610 = vadd.f32 %v5140, %v5324
  %v5611 = vadd.f32 %v5141, %v5329
  %v5612 = vadd.f32 %v5142, %v5334
  %v5613 = vadd.f32 %v5143, %v5339
  %v5614 = vadd.f32 %v5144, %v5344
  %v5615 = vadd.f32 %v5145, %v5349
  %v5616 = vadd.f32 %v5146, %v5354
  %v5617 = vadd.f32 %v5147, %v5359
  %v5618 = vadd.f32 %v5148, %v5364
  %v5619 = vadd.f32 %v5149, %v5369
  %v5620 = vadd.f32 %v5150, %v5374
  %v5621 = vadd.f32 %v5151, %v5379
  %v5622 = vadd.f32 %v5152, %v5384
  %v5623 = vadd.f32 %v5153, %v5389
  %v5624 = vadd.f32 %v5154, %v5394
  %v5625 = vadd.f32 %v5155, %v5399
  %v5626 = vadd.f32 %v5156, %v5404
  %v5627 = vadd.f32 %v5157, %v5409
  %v5628 = vadd.f32 %v5158, %v5414
  %v5629 = vadd.f32 %v5159, %v5419
  %v5630 = vadd.f32 %v5160, %v5424
  %v5631 = vadd.f32 %v5161, %v5429
  %v5632 = vadd.f32 %v5162, %v5434
  %v5633 = vadd.f32 %v5163, %v5439
  %v5634 = vadd.f32 %v5164, %v5444
  %v5635 = vadd.f32 %v5165, %v5449
  %v5636 = vadd.f32 %v5166, %v5454
  %v5637 = vadd.f32 %v5167, %v5459
  %v5638 = vadd.f32 %v5168, %v5464
  %v5639 = vadd.f32 %v5169, %v5469
  %v5640 = vadd.f32 %v5170, %v5474
  %v5641 = vadd.f32 %v5171, %v5479
  %v5642 = vadd.f32 %v5172, %v5484
  %v5643 = vadd.f32 %v5173, %v5489
  %v5644 = vadd.f32 %v5174, %v5494
  %v5645 = vadd.f32 %v5175, %v5499
  %v5646 = vadd.f32 %v5176, %v5504
  %v5647 = vadd.f32 %v5177, %v5509
  %v5648 = vadd.f32 %v5178, %v5514
  %v5649 = vadd.f32 %v5179, %v5519
  %v5650 = vadd.f32 %v5180, %v5524
  %v5651 = vadd.f32 %v5181, %v5529
  %v5652 = vadd.f32 %v5182, %v5534
  %v5653 = vadd.f32 %v5183, %v5539
  %v5654 = vadd.f32 %v5184, %v5544
  %v5655 = vadd.f32 %v5185, %v5549
  %v5656 = vadd.f32 %v5186, %v5554
  %v5657 = vadd.f32 %v5187, %v5559
  %v5658 = vadd.f32 %v5188, %v5564
  %v5659 = vadd.f32 %v5189, %v5569
  %v5660 = vadd.f32 %v5190, %v5574
  %v5661 = vadd.f32 %v5191, %v5579
  %v5662 = vadd.f32 %v5192, %v5584
  %v5663 = vadd.f32 %v5193, %v5589
  %v5664 = vadd.f32 %v5194, %v5594
  %v5665 = vadd.f32 %v5195, %v5599
  %v5667 = vlaneseq
  %v5668 = vshrl.u32 %v5667, 7
  %v5669 = vsub.s32 0, %v5668
  %v5670 = vrot.slane %v137, %v5669
  %v5672 = vadd.f32 %v5602, %v5670
  %v5673 = vadd.f32 %v5603, %v5670
  %v5674 = vadd.f32 %v5604, %v5670
  %v5675 = vadd.f32 %v5605, %v5670
  %v5676 = vadd.f32 %v5606, %v5670
  %v5677 = vadd.f32 %v5607, %v5670
  %v5678 = vadd.f32 %v5608, %v5670
  %v5679 = vadd.f32 %v5609, %v5670
  %v5680 = vadd.f32 %v5610, %v5670
  %v5681 = vadd.f32 %v5611, %v5670
  %v5682 = vadd.f32 %v5612, %v5670
  %v5683 = vadd.f32 %v5613, %v5670
  %v5684 = vadd.f32 %v5614, %v5670
  %v5685 = vadd.f32 %v5615, %v5670
  %v5686 = vadd.f32 %v5616, %v5670
  %v5687 = vadd.f32 %v5617, %v5670
  %v5688 = vadd.f32 %v5618, %v5670
  %v5689 = vadd.f32 %v5619, %v5670
  %v5690 = vadd.f32 %v5620, %v5670
  %v5691 = vadd.f32 %v5621, %v5670
  %v5692 = vadd.f32 %v5622, %v5670
  %v5693 = vadd.f32 %v5623, %v5670
  %v5694 = vadd.f32 %v5624, %v5670
  %v5695 = vadd.f32 %v5625, %v5670
  %v5696 = vadd.f32 %v5626, %v5670
  %v5697 = vadd.f32 %v5627, %v5670
  %v5698 = vadd.f32 %v5628, %v5670
  %v5699 = vadd.f32 %v5629, %v5670
  %v5700 = vadd.f32 %v5630, %v5670
  %v5701 = vadd.f32 %v5631, %v5670
  %v5702 = vadd.f32 %v5632, %v5670
  %v5703 = vadd.f32 %v5633, %v5670
  %v5704 = vadd.f32 %v5634, %v5670
  %v5705 = vadd.f32 %v5635, %v5670
  %v5706 = vadd.f32 %v5636, %v5670
  %v5707 = vadd.f32 %v5637, %v5670
  %v5708 = vadd.f32 %v5638, %v5670
  %v5709 = vadd.f32 %v5639, %v5670
  %v5710 = vadd.f32 %v5640, %v5670
  %v5711 = vadd.f32 %v5641, %v5670
  %v5712 = vadd.f32 %v5642, %v5670
  %v5713 = vadd.f32 %v5643, %v5670
  %v5714 = vadd.f32 %v5644, %v5670
  %v5715 = vadd.f32 %v5645, %v5670
  %v5716 = vadd.f32 %v5646, %v5670
  %v5717 = vadd.f32 %v5647, %v5670
  %v5718 = vadd.f32 %v5648, %v5670
  %v5719 = vadd.f32 %v5649, %v5670
  %v5720 = vadd.f32 %v5650, %v5670
  %v5721 = vadd.f32 %v5651, %v5670
  %v5722 = vadd.f32 %v5652, %v5670
  %v5723 = vadd.f32 %v5653, %v5670
  %v5724 = vadd.f32 %v5654, %v5670
  %v5725 = vadd.f32 %v5655, %v5670
  %v5726 = vadd.f32 %v5656, %v5670
  %v5727 = vadd.f32 %v5657, %v5670
  %v5728 = vadd.f32 %v5658, %v5670
  %v5729 = vadd.f32 %v5659, %v5670
  %v5730 = vadd.f32 %v5660, %v5670
  %v5731 = vadd.f32 %v5661, %v5670
  %v5732 = vadd.f32 %v5662, %v5670
  %v5733 = vadd.f32 %v5663, %v5670
  %v5734 = vadd.f32 %v5664, %v5670
  %v5735 = vadd.f32 %v5665, %v5670
  %5736 = vst.msk [vmem:[%s5] sm:$0xff] %vm1079, %v5672
  %5737 = vst.msk [vmem:[%s5 + $0x8] sm:$0xff] %vm1079, %v5673
  %5738 = vst.msk [vmem:[%s5 + $0x10] sm:$0xff] %vm1079, %v5674
  %5739 = vst.msk [vmem:[%s5 + $0x18] sm:$0xff] %vm1079, %v5675
  %5740 = vst.msk [vmem:[%s5 + $0x20] sm:$0xff] %vm1079, %v5676
  %5741 = vst.msk [vmem:[%s5 + $0x28] sm:$0xff] %vm1079, %v5677
  %5742 = vst.msk [vmem:[%s5 + $0x30] sm:$0xff] %vm1079, %v5678
  %5743 = vst.msk [vmem:[%s5 + $0x38] sm:$0xff] %vm1079, %v5679
  %5744 = vst.msk [vmem:[%s5 + $0x40] sm:$0xff] %vm1079, %v5680
  %5745 = vst.msk [vmem:[%s5 + $0x48] sm:$0xff] %vm1079, %v5681
  %5746 = vst.msk [vmem:[%s5 + $0x50] sm:$0xff] %vm1079, %v5682
  %5747 = vst.msk [vmem:[%s5 + $0x58] sm:$0xff] %vm1079, %v5683
  %5748 = vst.msk [vmem:[%s5 + $0x60] sm:$0xff] %vm1079, %v5684
  %5749 = vst.msk [vmem:[%s5 + $0x68] sm:$0xff] %vm1079, %v5685
  %5750 = vst.msk [vmem:[%s5 + $0x70] sm:$0xff] %vm1079, %v5686
  %5751 = vst.msk [vmem:[%s5 + $0x78] sm:$0xff] %vm1079, %v5687
  %5752 = vst.msk [vmem:[%s5 + $0x80] sm:$0xff] %vm1079, %v5688
  %5753 = vst.msk [vmem:[%s5 + $0x88] sm:$0xff] %vm1079, %v5689
  %5754 = vst.msk [vmem:[%s5 + $0x90] sm:$0xff] %vm1079, %v5690
  %5755 = vst.msk [vmem:[%s5 + $0x98] sm:$0xff] %vm1079, %v5691
  %5756 = vst.msk [vmem:[%s5 + $0xa0] sm:$0xff] %vm1079, %v5692
  %5757 = vst.msk [vmem:[%s5 + $0xa8] sm:$0xff] %vm1079, %v5693
  %5758 = vst.msk [vmem:[%s5 + $0xb0] sm:$0xff] %vm1079, %v5694
  %5759 = vst.msk [vmem:[%s5 + $0xb8] sm:$0xff] %vm1079, %v5695
  %5760 = vst.msk [vmem:[%s5 + $0xc0] sm:$0xff] %vm1079, %v5696
  %5761 = vst.msk [vmem:[%s5 + $0xc8] sm:$0xff] %vm1079, %v5697
  %5762 = vst.msk [vmem:[%s5 + $0xd0] sm:$0xff] %vm1079, %v5698
  %5763 = vst.msk [vmem:[%s5 + $0xd8] sm:$0xff] %vm1079, %v5699
  %5764 = vst.msk [vmem:[%s5 + $0xe0] sm:$0xff] %vm1079, %v5700
  %5765 = vst.msk [vmem:[%s5 + $0xe8] sm:$0xff] %vm1079, %v5701
  %5766 = vst.msk [vmem:[%s5 + $0xf0] sm:$0xff] %vm1079, %v5702
  %5767 = vst.msk [vmem:[%s5 + $0xf8] sm:$0xff] %vm1079, %v5703
  %5768 = vst.msk [vmem:[%s5 + $0x100] sm:$0xff] %vm1079, %v5704
  %5769 = vst.msk [vmem:[%s5 + $0x108] sm:$0xff] %vm1079, %v5705
  %5770 = vst.msk [vmem:[%s5 + $0x110] sm:$0xff] %vm1079, %v5706
  %5771 = vst.msk [vmem:[%s5 + $0x118] sm:$0xff] %vm1079, %v5707
  %5772 = vst.msk [vmem:[%s5 + $0x120] sm:$0xff] %vm1079, %v5708
  %5773 = vst.msk [vmem:[%s5 + $0x128] sm:$0xff] %vm1079, %v5709
  %5774 = vst.msk [vmem:[%s5 + $0x130] sm:$0xff] %vm1079, %v5710
  %5775 = vst.msk [vmem:[%s5 + $0x138] sm:$0xff] %vm1079, %v5711
  %5776 = vst.msk [vmem:[%s5 + $0x140] sm:$0xff] %vm1079, %v5712
  %5777 = vst.msk [vmem:[%s5 + $0x148] sm:$0xff] %vm1079, %v5713
  %5778 = vst.msk [vmem:[%s5 + $0x150] sm:$0xff] %vm1079, %v5714
  %5779 = vst.msk [vmem:[%s5 + $0x158] sm:$0xff] %vm1079, %v5715
  %5780 = vst.msk [vmem:[%s5 + $0x160] sm:$0xff] %vm1079, %v5716
  %5781 = vst.msk [vmem:[%s5 + $0x168] sm:$0xff] %vm1079, %v5717
  %5782 = vst.msk [vmem:[%s5 + $0x170] sm:$0xff] %vm1079, %v5718
  %5783 = vst.msk [vmem:[%s5 + $0x178] sm:$0xff] %vm1079, %v5719
  %5784 = vst.msk [vmem:[%s5 + $0x180] sm:$0xff] %vm1079, %v5720
  %5785 = vst.msk [vmem:[%s5 + $0x188] sm:$0xff] %vm1079, %v5721
  %5786 = vst.msk [vmem:[%s5 + $0x190] sm:$0xff] %vm1079, %v5722
  %5787 = vst.msk [vmem:[%s5 + $0x198] sm:$0xff] %vm1079, %v5723
  %5788 = vst.msk [vmem:[%s5 + $0x1a0] sm:$0xff] %vm1079, %v5724
  %5789 = vst.msk [vmem:[%s5 + $0x1a8] sm:$0xff] %vm1079, %v5725
  %5790 = vst.msk [vmem:[%s5 + $0x1b0] sm:$0xff] %vm1079, %v5726
  %5791 = vst.msk [vmem:[%s5 + $0x1b8] sm:$0xff] %vm1079, %v5727
  %5792 = vst.msk [vmem:[%s5 + $0x1c0] sm:$0xff] %vm1079, %v5728
  %5793 = vst.msk [vmem:[%s5 + $0x1c8] sm:$0xff] %vm1079, %v5729
  %5794 = vst.msk [vmem:[%s5 + $0x1d0] sm:$0xff] %vm1079, %v5730
  %5795 = vst.msk [vmem:[%s5 + $0x1d8] sm:$0xff] %vm1079, %v5731
  %5796 = vst.msk [vmem:[%s5 + $0x1e0] sm:$0xff] %vm1079, %v5732
  %5797 = vst.msk [vmem:[%s5 + $0x1e8] sm:$0xff] %vm1079, %v5733
  %5798 = vst.msk [vmem:[%s5 + $0x1f0] sm:$0xff] %vm1079, %v5734
  %5799 = vst.msk [vmem:[%s5 + $0x1f8] sm:$0xff] %vm1079, %v5735
  // Predicated region
  $region22: #{tpu_custom_call.1} parent=0 // pred_check
    _
  $region23: #{tpu_custom_call.1} parent=0 // pred_check_branch
    %5801 = sbr.rel (0) target = $region25
  $region24: #{tpu_custom_call.1} parent=0 // pred_region
    _
  $region25: #{tpu_custom_call.1} parent=0 // pred_fallthru
    _
  // Predicated region
  $region26: #{tpu_custom_call.1} parent=0 // pred_check
    _
  $region27: #{tpu_custom_call.1} parent=0 // pred_check_branch
    %5803 = sbr.rel (0) target = $region29
  $region28: #{tpu_custom_call.1} parent=0 // pred_region
    _
  $region29: #{tpu_custom_call.1} parent=0 // pred_fallthru
    _

</llo_original>
